<compile_context>
chip_gen: v6e
topology: v6e:2x2x1
jax: 0.10.0
libtpu: 0.0.40
codegen_flags: <defaults>
</compile_context>

<pallas_src>
import functools

import jax
import jax.numpy as jnp
from jax.experimental import pallas as pl
from jax.experimental.pallas import tpu as pltpu


def _round_up(v, m):
    return ((v + m - 1) // m) * m


def _vmem_capacity_bytes():
    try:
        return int(pltpu.get_tpu_info().vmem_capacity_bytes)
    except Exception:
        return 64 * 1024 * 1024   # conservative fallback (v7x per-core VMEM)


def _random_shift_kernel(pad, nb, shifts_ref, x_ref, out_ref):
    # shifts_ref: SMEM (2, N) int32; [0, n] = dx (width), [1, n] = dy (height)
    # x_ref / out_ref: VMEM (NB, C, H, W)
    g = pl.program_id(0)
    _, C, H, W = x_ref.shape
    dt = x_ref.dtype

    # Hoisted iotas for selection-matrix construction (shared by all images).
    w_src = jax.lax.broadcasted_iota(jnp.int32, (W, W), 0)   # source column w
    w_dst = jax.lax.broadcasted_iota(jnp.int32, (W, W), 1)   # output column j
    h_dst = jax.lax.broadcasted_iota(jnp.int32, (H, H), 0)   # output row i
    h_src = jax.lax.broadcasted_iota(jnp.int32, (H, H), 1)   # source row h

    def per_image(b, carry):
        idx = g * nb + b
        dx = shifts_ref[0, idx]
        dy = shifts_ref[1, idx]

        # S_wT[w, j] = 1 iff w == clamp(j + dx - pad, 0, W-1)  (used as x @ S_wT)
        s_wt = (w_src == jnp.clip(w_dst + dx - pad, 0, W - 1)).astype(dt)
        # S_h[i, h]  = 1 iff h == clamp(i + dy - pad, 0, H-1)  (used as S_h @ .)
        s_h = (h_src == jnp.clip(h_dst + dy - pad, 0, H - 1)).astype(jnp.float32)

        # 0/1 selection weights + f32 accumulation + HIGHEST precision make the
        # gather bit-exact for f32 and bf16 inputs.  Per-channel matmuls keep
        # the (H, W) intermediate in vregs and write straight to out_ref (no
        # scratch round-trip); the kernel is HBM-bound, so the small MXU fill
        # of these matmuls is irrelevant.
        for c in range(C):                       # C is small and static
            xc = x_ref[b, c]                                        # (H, W)
            yw = jnp.dot(xc, s_wt,
                         preferred_element_type=jnp.float32,
                         precision=jax.lax.Precision.HIGHEST)       # width shift
            yc = jnp.dot(s_h, yw,
                         preferred_element_type=jnp.float32,
                         precision=jax.lax.Precision.HIGHEST)       # height shift
            out_ref[b, c] = yc.astype(dt)
        return carry

    # fori_loop (not a static Python unroll) bounds live ranges per image;
    # a small unroll keeps LLO scheduling visibility.
    jax.lax.fori_loop(0, nb, per_image, 0, unroll=min(2, nb))


def random_shifts_aug(x, shifts, pad, nb=None):
    """x: (N, C, H, W) float; shifts: (N, 2) int32 in [0, 2*pad].

    shifts[:, 0] = width shift (dx), shifts[:, 1] = height shift (dy).
    Returns the randomly shifted batch, shape (N, C, H, W), dtype of x.
    """
    N, C, H, W = x.shape
    assert H == W  # matches the PyTorch module's assert

    itemsize = jnp.dtype(x.dtype).itemsize
    # Real (padded) VMEM footprint of one image block: lane dim rounds to 128,
    # second-minor dim to 8 (f32) / 16 (bf16) / 32 (int8).
    sublane = 8 * max(1, 4 // itemsize)
    padded_img = C * _round_up(H, sublane) * _round_up(W, 128) * itemsize

    # Explicit VMEM limit: 3/4 of physical, capped at 96 MiB (v5e/v6e have
    # 128 MiB, v7x has 64 MiB per TensorCore).  Blocks (in + out, double
    # buffered) get 3/4 of that; the rest is headroom for compiler scratch.
    vmem_limit = min((_vmem_capacity_bytes() * 3) // 4, 96 * 1024 * 1024)
    block_budget = (vmem_limit * 3) // 4

    if nb is None:
        max_nb = max(1, block_budget // (4 * padded_img))
        if N >= 2:
            max_nb = min(max_nb, N // 2)   # grid >= 2: both v7x TCs get work
        max_nb = min(max_nb, N)
        nb = 1
        for d in range(max_nb, 0, -1):     # largest divisor of N that fits
            if N % d == 0:
                nb = d
                break
    assert N % nb == 0

    # Long-axis-last layout keeps the SMEM copy of the shifts tiny.
    shifts_t = jnp.transpose(shifts.astype(jnp.int32))   # (2, N)

    kernel = functools.partial(_random_shift_kernel, pad, nb)
    return pl.pallas_call(
        kernel,
        out_shape=jax.ShapeDtypeStruct((N, C, H, W), x.dtype),
        grid_spec=pltpu.PrefetchScalarGridSpec(
            num_scalar_prefetch=1,                 # shifts land in SMEM
            grid=(N // nb,),
            in_specs=[pl.BlockSpec((nb, C, H, W), lambda g, s: (g, 0, 0, 0))],
            out_specs=pl.BlockSpec((nb, C, H, W), lambda g, s: (g, 0, 0, 0)),
        ),
        # Each grid step writes a unique output block -> "parallel" is legal;
        # lets v7x shard the batch axis across its two TensorCores.
        compiler_params=pltpu.CompilerParams(
            dimension_semantics=("parallel",),
            vmem_limit_bytes=int(vmem_limit)),
    )(shifts_t, x)


def _reference(x, shifts, pad):
    # Pure-JAX reference: replicate-pad then crop the shifted window.
    N, C, H, W = x.shape
    xp = jnp.pad(x, ((0, 0), (0, 0), (pad, pad), (pad, pad)), mode="edge")
    outs = []
    for i in range(N):
        dx = int(shifts[i, 0])
        dy = int(shifts[i, 1])
        outs.append(xp[i, :, dy:dy + H, dx:dx + W])
    return jnp.stack(outs, axis=0)


if __name__ == "__main__":
    key = jax.random.PRNGKey(0)
    kx, ks = jax.random.split(key)
    N, C, H, W = 2, 4, 16, 16
    pad = 4

    x = jax.random.normal(kx, (N, C, H, W), dtype=jnp.float32)
    # Equivalent of torch.randint(0, 2*pad+1, size=(n, 1, 1, 2)): (x-shift, y-shift)
    # TODO(synk): torch RNG stream is not reproducible in JAX; distribution matches.
    shifts = jax.random.randint(ks, (N, 2), 0, 2 * pad + 1, dtype=jnp.int32)

    out = random_shifts_aug(x, shifts, pad)
    out = jax.block_until_ready(out)

    ref = _reference(x, shifts, pad)
    assert out.shape == (N, C, H, W) and out.dtype == x.dtype
    # 0/1 selection weights + HIGHEST precision => the gather is a bit-exact copy.
    assert bool(jnp.array_equal(out, ref)), "mismatch vs reference"
    print("KERNEL_OK")
</pallas_src>

<mosaic_0001>
module attributes {stable_mosaic.version = 11 : i64} {
  func.func @_random_shift_kernel(%arg0: i32, %arg1: memref<2x2xi32, #tpu.memory_space<smem>>, %arg2: memref<1x4x16x16xf32, #tpu.memory_space<vmem>>, %arg3: memref<1x4x16x16xf32, #tpu.memory_space<vmem>>) attributes {dimension_semantics = [#tpu.dimension_semantics<parallel>], iteration_bounds = array<i64: 2>, scalar_prefetch = 1 : i64, scratch_operands = 0 : i64, tpu.core_type = #tpu.core_type<tc>, window_params = [{transform_indices = @transform_0, window_bounds = array<i64: 1, 4, 16, 16>}, {transform_indices = @transform_1, window_bounds = array<i64: 1, 4, 16, 16>}]} {
    %0 = tpu.iota {dimensions = array<i32: 0>} : vector<16x16xi32>
    %1 = tpu.iota {dimensions = array<i32: 1>} : vector<16x16xi32>
    %2 = tpu.iota {dimensions = array<i32: 0>} : vector<16x16xi32>
    %3 = tpu.iota {dimensions = array<i32: 1>} : vector<16x16xi32>
    %c0_i32 = arith.constant 0 : i32
    %c1_i32 = arith.constant 1 : i32
    %4 = arith.muli %arg0, %c1_i32 : i32
    %5 = arith.addi %4, %c0_i32 : i32
    %c0 = arith.constant 0 : index
    %6 = arith.index_cast %5 : i32 to index
    %7 = memref.load %arg1[%c0, %6] : memref<2x2xi32, #tpu.memory_space<smem>>
    %c1 = arith.constant 1 : index
    %8 = arith.index_cast %5 : i32 to index
    %9 = memref.load %arg1[%c1, %8] : memref<2x2xi32, #tpu.memory_space<smem>>
    %10 = vector.broadcast %7 : i32 to vector<16x16xi32>
    %11 = arith.addi %1, %10 : vector<16x16xi32>
    %c4_i32 = arith.constant 4 : i32
    %12 = vector.broadcast %c4_i32 : i32 to vector<16x16xi32>
    %13 = arith.subi %11, %12 : vector<16x16xi32>
    %c0_i32_0 = arith.constant 0 : i32
    %c15_i32 = arith.constant 15 : i32
    %14 = vector.broadcast %c0_i32_0 : i32 to vector<16x16xi32>
    %15 = arith.maxsi %14, %13 : vector<16x16xi32>
    %16 = vector.broadcast %c15_i32 : i32 to vector<16x16xi32>
    %17 = arith.minsi %16, %15 : vector<16x16xi32>
    %18 = arith.cmpi eq, %0, %17 : vector<16x16xi32>
    %19 = arith.extui %18 : vector<16x16xi1> to vector<16x16xi32>
    %20 = arith.sitofp %19 : vector<16x16xi32> to vector<16x16xf32>
    %21 = vector.broadcast %9 : i32 to vector<16x16xi32>
    %22 = arith.addi %2, %21 : vector<16x16xi32>
    %c4_i32_1 = arith.constant 4 : i32
    %23 = vector.broadcast %c4_i32_1 : i32 to vector<16x16xi32>
    %24 = arith.subi %22, %23 : vector<16x16xi32>
    %c0_i32_2 = arith.constant 0 : i32
    %c15_i32_3 = arith.constant 15 : i32
    %25 = vector.broadcast %c0_i32_2 : i32 to vector<16x16xi32>
    %26 = arith.maxsi %25, %24 : vector<16x16xi32>
    %27 = vector.broadcast %c15_i32_3 : i32 to vector<16x16xi32>
    %28 = arith.minsi %27, %26 : vector<16x16xi32>
    %29 = arith.cmpi eq, %3, %28 : vector<16x16xi32>
    %30 = arith.extui %29 : vector<16x16xi1> to vector<16x16xi32>
    %31 = arith.sitofp %30 : vector<16x16xi32> to vector<16x16xf32>
    %32 = arith.index_cast %c0_i32 : i32 to index
    %c0_4 = arith.constant 0 : index
    %c0_5 = arith.constant 0 : index
    %c0_6 = arith.constant 0 : index
    %33 = vector.load %arg2[%32, %c0_4, %c0_5, %c0_6] : memref<1x4x16x16xf32, #tpu.memory_space<vmem>>, vector<1x1x16x16xf32>
    %34 = vector.shape_cast %33 : vector<1x1x16x16xf32> to vector<16x16xf32>
    %cst = arith.constant dense<0.000000e+00> : vector<16x16xf32>
    %35 = tpu.matmul %34, %20, %cst {dimension_numbers = #tpu.dot_dimension_numbers<[1], [0], [0], [1], [0, 0, 1, 1], [], []>, precision = #tpu.contract_precision<fp32>} : vector<16x16xf32>, vector<16x16xf32>, vector<16x16xf32> -> vector<16x16xf32>
    %cst_7 = arith.constant dense<0.000000e+00> : vector<16x16xf32>
    %36 = tpu.matmul %31, %35, %cst_7 {dimension_numbers = #tpu.dot_dimension_numbers<[1], [0], [0], [1], [0, 0, 1, 1], [], []>, precision = #tpu.contract_precision<fp32>} : vector<16x16xf32>, vector<16x16xf32>, vector<16x16xf32> -> vector<16x16xf32>
    %37 = arith.index_cast %c0_i32 : i32 to index
    %c0_8 = arith.constant 0 : index
    %c0_9 = arith.constant 0 : index
    %c0_10 = arith.constant 0 : index
    %38 = vector.load %arg3[%37, %c0_8, %c0_9, %c0_10] : memref<1x4x16x16xf32, #tpu.memory_space<vmem>>, vector<1x1x16x16xf32>
    %39 = vector.shape_cast %38 : vector<1x1x16x16xf32> to vector<16x16xf32>
    %40 = vector.shape_cast %36 : vector<16x16xf32> to vector<1x1x16x16xf32>
    tpu.vector_store %arg3[%37, %c0_8, %c0_9, %c0_10], %40 {strides = array<i32>} : memref<1x4x16x16xf32, #tpu.memory_space<vmem>>, vector<1x1x16x16xf32>,
    %41 = arith.index_cast %c0_i32 : i32 to index
    %c1_11 = arith.constant 1 : index
    %c0_12 = arith.constant 0 : index
    %c0_13 = arith.constant 0 : index
    %42 = vector.load %arg2[%41, %c1_11, %c0_12, %c0_13] : memref<1x4x16x16xf32, #tpu.memory_space<vmem>>, vector<1x1x16x16xf32>
    %43 = vector.shape_cast %42 : vector<1x1x16x16xf32> to vector<16x16xf32>
    %cst_14 = arith.constant dense<0.000000e+00> : vector<16x16xf32>
    %44 = tpu.matmul %43, %20, %cst_14 {dimension_numbers = #tpu.dot_dimension_numbers<[1], [0], [0], [1], [0, 0, 1, 1], [], []>, precision = #tpu.contract_precision<fp32>} : vector<16x16xf32>, vector<16x16xf32>, vector<16x16xf32> -> vector<16x16xf32>
    %cst_15 = arith.constant dense<0.000000e+00> : vector<16x16xf32>
    %45 = tpu.matmul %31, %44, %cst_15 {dimension_numbers = #tpu.dot_dimension_numbers<[1], [0], [0], [1], [0, 0, 1, 1], [], []>, precision = #tpu.contract_precision<fp32>} : vector<16x16xf32>, vector<16x16xf32>, vector<16x16xf32> -> vector<16x16xf32>
    %46 = arith.index_cast %c0_i32 : i32 to index
    %c1_16 = arith.constant 1 : index
    %c0_17 = arith.constant 0 : index
    %c0_18 = arith.constant 0 : index
    %47 = vector.load %arg3[%46, %c1_16, %c0_17, %c0_18] : memref<1x4x16x16xf32, #tpu.memory_space<vmem>>, vector<1x1x16x16xf32>
    %48 = vector.shape_cast %47 : vector<1x1x16x16xf32> to vector<16x16xf32>
    %49 = vector.shape_cast %45 : vector<16x16xf32> to vector<1x1x16x16xf32>
    tpu.vector_store %arg3[%46, %c1_16, %c0_17, %c0_18], %49 {strides = array<i32>} : memref<1x4x16x16xf32, #tpu.memory_space<vmem>>, vector<1x1x16x16xf32>,
    %50 = arith.index_cast %c0_i32 : i32 to index
    %c2 = arith.constant 2 : index
    %c0_19 = arith.constant 0 : index
    %c0_20 = arith.constant 0 : index
    %51 = vector.load %arg2[%50, %c2, %c0_19, %c0_20] : memref<1x4x16x16xf32, #tpu.memory_space<vmem>>, vector<1x1x16x16xf32>
    %52 = vector.shape_cast %51 : vector<1x1x16x16xf32> to vector<16x16xf32>
    %cst_21 = arith.constant dense<0.000000e+00> : vector<16x16xf32>
    %53 = tpu.matmul %52, %20, %cst_21 {dimension_numbers = #tpu.dot_dimension_numbers<[1], [0], [0], [1], [0, 0, 1, 1], [], []>, precision = #tpu.contract_precision<fp32>} : vector<16x16xf32>, vector<16x16xf32>, vector<16x16xf32> -> vector<16x16xf32>
    %cst_22 = arith.constant dense<0.000000e+00> : vector<16x16xf32>
    %54 = tpu.matmul %31, %53, %cst_22 {dimension_numbers = #tpu.dot_dimension_numbers<[1], [0], [0], [1], [0, 0, 1, 1], [], []>, precision = #tpu.contract_precision<fp32>} : vector<16x16xf32>, vector<16x16xf32>, vector<16x16xf32> -> vector<16x16xf32>
    %55 = arith.index_cast %c0_i32 : i32 to index
    %c2_23 = arith.constant 2 : index
    %c0_24 = arith.constant 0 : index
    %c0_25 = arith.constant 0 : index
    %56 = vector.load %arg3[%55, %c2_23, %c0_24, %c0_25] : memref<1x4x16x16xf32, #tpu.memory_space<vmem>>, vector<1x1x16x16xf32>
    %57 = vector.shape_cast %56 : vector<1x1x16x16xf32> to vector<16x16xf32>
    %58 = vector.shape_cast %54 : vector<16x16xf32> to vector<1x1x16x16xf32>
    tpu.vector_store %arg3[%55, %c2_23, %c0_24, %c0_25], %58 {strides = array<i32>} : memref<1x4x16x16xf32, #tpu.memory_space<vmem>>, vector<1x1x16x16xf32>,
    %59 = arith.index_cast %c0_i32 : i32 to index
    %c3 = arith.constant 3 : index
    %c0_26 = arith.constant 0 : index
    %c0_27 = arith.constant 0 : index
    %60 = vector.load %arg2[%59, %c3, %c0_26, %c0_27] : memref<1x4x16x16xf32, #tpu.memory_space<vmem>>, vector<1x1x16x16xf32>
    %61 = vector.shape_cast %60 : vector<1x1x16x16xf32> to vector<16x16xf32>
    %cst_28 = arith.constant dense<0.000000e+00> : vector<16x16xf32>
    %62 = tpu.matmul %61, %20, %cst_28 {dimension_numbers = #tpu.dot_dimension_numbers<[1], [0], [0], [1], [0, 0, 1, 1], [], []>, precision = #tpu.contract_precision<fp32>} : vector<16x16xf32>, vector<16x16xf32>, vector<16x16xf32> -> vector<16x16xf32>
    %cst_29 = arith.constant dense<0.000000e+00> : vector<16x16xf32>
    %63 = tpu.matmul %31, %62, %cst_29 {dimension_numbers = #tpu.dot_dimension_numbers<[1], [0], [0], [1], [0, 0, 1, 1], [], []>, precision = #tpu.contract_precision<fp32>} : vector<16x16xf32>, vector<16x16xf32>, vector<16x16xf32> -> vector<16x16xf32>
    %64 = arith.index_cast %c0_i32 : i32 to index
    %c3_30 = arith.constant 3 : index
    %c0_31 = arith.constant 0 : index
    %c0_32 = arith.constant 0 : index
    %65 = vector.load %arg3[%64, %c3_30, %c0_31, %c0_32] : memref<1x4x16x16xf32, #tpu.memory_space<vmem>>, vector<1x1x16x16xf32>
    %66 = vector.shape_cast %65 : vector<1x1x16x16xf32> to vector<16x16xf32>
    %67 = vector.shape_cast %63 : vector<16x16xf32> to vector<1x1x16x16xf32>
    tpu.vector_store %arg3[%64, %c3_30, %c0_31, %c0_32], %67 {strides = array<i32>} : memref<1x4x16x16xf32, #tpu.memory_space<vmem>>, vector<1x1x16x16xf32>,
    %c1_i32_33 = arith.constant 1 : i32
    return
  }
  func.func @transform_0(%arg0: i32, %arg1: memref<2x2xi32, #tpu.memory_space<smem>>) -> (i32, i32, i32, i32) {
    %c0_i32 = arith.constant 0 : i32
    %c0_i32_0 = arith.constant 0 : i32
    %c0_i32_1 = arith.constant 0 : i32
    %c0_i32_2 = arith.constant 0 : i32
    return %arg0, %c0_i32, %c0_i32_0, %c0_i32_1 : i32, i32, i32, i32
  }
  func.func @transform_1(%arg0: i32, %arg1: memref<2x2xi32, #tpu.memory_space<smem>>) -> (i32, i32, i32, i32) {
    %c0_i32 = arith.constant 0 : i32
    %c0_i32_0 = arith.constant 0 : i32
    %c0_i32_1 = arith.constant 0 : i32
    %c0_i32_2 = arith.constant 0 : i32
    return %arg0, %c0_i32, %c0_i32_0, %c0_i32_1 : i32, i32, i32, i32
  }
}

</mosaic_0001>

<llo_original>
// kernel: tpu_custom_call.1
$region0: #{tpu_custom_call.1}
  #allocation0 [shape = 'u32[]', space=smem, size = 0x4, offset = 0x4, fixed_abs, tag = 'smem constant byte address 0x4 - core index']
  #allocation1 [shape = 'u32[144,128]{1,0:T(1,128)}', space=vmem, size = 0x12000, scoped, tag = 'internal scratch']
  #allocation2 [shape = 's32[1]{0}', space=sflag, size = 0x4, scoped, tag = 'scoped memory for tpu_custom_call.1']
  #allocation3 [shape = 'u8[1024]{0}', space=smem, size = 0x400, scoped, tag = 'prefetched SMEM operand 0']
  %s0 = inlined_call_operand.hbm [shape: s32[2,2], index: 0, kind: input, shape index: {}]
  %s1 = inlined_call_operand.hbm [shape: f32[2,4,16,16], index: 1, kind: input, shape index: {}]
  %s2 = inlined_call_operand.hbm [shape: f32[2,4,16,16], index: 2, kind: output, shape index: {}]
  %s3 = sld [smem:[#allocation0]]
  $region41: #{tpu_custom_call.1} parent=0
    _
  %s5 = ssub.s32 1, %s3
  %s6 = scalar_select 0, %s5, %s3
  %8 = dma.hbm_to_smem %s0, 32, [#allocation3], [#allocation2]
  %9 = dma.done [#allocation2], 32
  %10 = sfence
  $region1: #{tpu_custom_call.1} parent=0
    #allocation4 [shape = 'u8[65536]{0}', space=vmem, size = 0x10000, scoped, tag = 'input window, operand 1']
    #allocation5 [shape = 's32[2]{0}', space=sflag, size = 0x8, scoped, tag = 'scoped memory for tpu_custom_call.1']
    #allocation6 [shape = 's32[2]{0}', space=sflag, size = 0x8, scoped, tag = 'scoped memory for tpu_custom_call.1']
    #allocation7 [shape = 'u8[65536]{0}', space=vmem, size = 0x10000, scoped, tag = 'output window, operand 0']
    %11 = vsyncpa [#allocation5], 0
    %s12 = scalar_lea.sflag [#allocation5], 1
    %13 = vsyncpa %s12, 0
    %14 = vsyncpa [#allocation6], 0
    %s15 = scalar_lea.sflag [#allocation6], 1
    %16 = vsyncpa %s15, 0
    loop: start=0, step=1, limit=4
    $region2: #{tpu_custom_call.1} parent=1 // loop_pre_header
      _
    $region3: #{tpu_custom_call.1} parent=1 // loop_header
      %s18 = sphi 0, %s22
      %p19 = scmp.ge.s32.totalorder %s18, 4
      %s28 = sphi 0, %s30
      %s31 = sphi 0, %s28
      %s32 = sphi 0, %s31
      %s48 = sphi 0, %s32
      %s54 = sphi 0, %s56
      %s57 = sphi 0, %s54
      %s58 = sphi 0, %s57
      %s74 = sphi 0, %s58
    $region4: #{tpu_custom_call.1} parent=1 // loop_header_branch
      %21 = sbr.rel (%p19) target = $region8
    $region5: #{tpu_custom_call.1} parent=1 // loop_body
      %s23 = ssub.s32 %s18, 1
      %s24 = ssub.s32 %s18, 2
      %s25 = sadd.s32 %s18, 1
      %s26 = ssub.s32 %s18, %s25
      %p27 = scmp.eq.s32.totalorder %s26, 0
      %s29 = sadd.s32 %s28, 1
      %s30 = scalar_select %p27, %s28, %s29
      %p33 = pneg %p27
      %p34 = scmp.eq.s32.totalorder %s18, 1
      %p35 = por %p33, %p34
      %p36 = scmp.ne.s32.totalorder %s28, %s31
      %p37 = scmp.eq.s32.totalorder %s18, 0
      %p38 = por %p36, %p37
      %p39 = scmp.ne.s32.totalorder %s28, %s31
      %p40 = scmp.eq.s32.totalorder %s23, 1
      %p41 = por %p39, %p40
      %p42 = scmp.ne.s32.totalorder %s31, %s32
      %p43 = scmp.eq.s32.totalorder %s23, 0
      %p44 = por %p42, %p43
      %p45 = scmp.ne.s32.totalorder %s31, %s32
      %p46 = scmp.eq.s32.totalorder %s24, 1
      %p47 = por %p45, %p46
      %p49 = scmp.ne.s32.totalorder %s32, %s48
      %p50 = scmp.eq.s32.totalorder %s24, 0
      %p51 = por %p49, %p50
      %s52 = ssub.s32 %s18, %s25
      %p53 = scmp.eq.s32.totalorder %s52, 0
      %s55 = sadd.s32 %s54, 1
      %s56 = scalar_select %p53, %s54, %s55
      %p59 = pneg %p53
      %p60 = scmp.eq.s32.totalorder %s18, 1
      %p61 = por %p59, %p60
      %p62 = scmp.ne.s32.totalorder %s54, %s57
      %p63 = scmp.eq.s32.totalorder %s18, 0
      %p64 = por %p62, %p63
      %p65 = scmp.ne.s32.totalorder %s54, %s57
      %p66 = scmp.eq.s32.totalorder %s23, 1
      %p67 = por %p65, %p66
      %p68 = scmp.ne.s32.totalorder %s57, %s58
      %p69 = scmp.eq.s32.totalorder %s23, 0
      %p70 = por %p68, %p69
      %p71 = scmp.ne.s32.totalorder %s57, %s58
      %p72 = scmp.eq.s32.totalorder %s24, 1
      %p73 = por %p71, %p72
      %p75 = scmp.ne.s32.totalorder %s58, %s74
      %p76 = scmp.eq.s32.totalorder %s24, 0
      %p77 = por %p75, %p76
      %p78 = scmp.le.s32.totalorder 1, %s18
      %p79 = scmp.lt.s32.totalorder %s18, 3
      %p80 = pnand %p78, %p79
      %p81 = pneg %p80
      // Predicated region
      $region9: #{tpu_custom_call.1} parent=5 // pred_check
        _
      $region10: #{tpu_custom_call.1} parent=5 // pred_check_branch
        %83 = sbr.rel (%p80) target = $region12
      $region11: #{tpu_custom_call.1} parent=5 // pred_region
        %s84 = ssub.s32 %s18, 1
      $region12: #{tpu_custom_call.1} parent=5 // pred_fallthru
        _
      %p85 = scmp.lt.s32.totalorder %s18, 2
      // Predicated region
      $region13: #{tpu_custom_call.1} parent=5 // pred_check
        %p86 = pneg %p85
      $region14: #{tpu_custom_call.1} parent=5 // pred_check_branch
        %88 = sbr.rel (%p86) target = $region16
      $region15: #{tpu_custom_call.1} parent=5 // pred_region
        // Predicated region
        $region17: #{tpu_custom_call.1} parent=15 // pred_check
          %p89 = pneg %p38
        $region18: #{tpu_custom_call.1} parent=15 // pred_check_branch
          %91 = sbr.rel (%p89) target = $region20
        $region19: #{tpu_custom_call.1} parent=15 // pred_region
          %s92 = sand.u32 %s28, 1
          %s93 = scalar_lea.sflag [#allocation5], %s92
          %s94 = sand.u32 %s28, 1
          %s95 = smul.addr %s94, 64
          %s96 = scalar_lea.vmem [#allocation4], %s95
          %s98 = ssub.s32 1024, 1024
          %99 = vsyncadd %s93, %s98
          %s100 = smul.addr %s18, 8
          %s101 = smul.addr %s100, 128
          %s102 = scalar_lea.hbm %s1, %s101
          %s103 = sshll.u32 %s96, 4
          %s104 = int_to_ptr.vmem [resolvable:$true] %s103
          %109 = dma.hbm_to_vmem [thread:$0]  %s102, 1024, %s104, %s93, 128, 128, 8
        $region20: #{tpu_custom_call.1} parent=15 // pred_fallthru
          _
      $region16: #{tpu_custom_call.1} parent=5 // pred_fallthru
        _
      %p110 = scmp.le.s32.totalorder 1, %s18
      %p111 = scmp.lt.s32.totalorder %s18, 3
      %p112 = pnand %p110, %p111
      %p113 = pneg %p112
      // Predicated region
      $region21: #{tpu_custom_call.1} parent=5 // pred_check
        _
      $region22: #{tpu_custom_call.1} parent=5 // pred_check_branch
        %115 = sbr.rel (%p112) target = $region24
      $region23: #{tpu_custom_call.1} parent=5 // pred_region
        %s116 = ssub.s32 %s18, 1
        %s117 = sand.u32 %s31, 1
        %s118 = scalar_lea.sflag [#allocation5], %s117
        %s119 = sand.u32 %s31, 1
        %s120 = smul.addr %s119, 64
        %s121 = scalar_lea.vmem [#allocation4], %s120
        // Predicated region
        $region25: #{tpu_custom_call.1} parent=23 // pred_check
          %p122 = pneg %p44
        $region26: #{tpu_custom_call.1} parent=23 // pred_check_branch
          %124 = sbr.rel (%p122) target = $region28
        $region27: #{tpu_custom_call.1} parent=23 // pred_region
          %125 = dma.done %s118, 1024
        $region28: #{tpu_custom_call.1} parent=23 // pred_fallthru
          _
        %s126 = sand.u32 %s31, 1
        %s127 = scalar_lea.sflag [#allocation5], %s126
        %s128 = sand.u32 %s31, 1
        %s129 = smul.addr %s128, 64
        %s130 = scalar_lea.vmem [#allocation4], %s129
        %p131 = pneg %p44
        %p132 = pneg %p41
        %p133 = pneg %p70
        %p134 = pneg %p67
        %s135 = sand.u32 %s57, 1
        %s136 = scalar_lea.sflag [#allocation6], %s135
        %s137 = sand.u32 %s57, 1
        %s138 = smul.addr %s137, 64
        %s139 = scalar_lea.vmem [#allocation7], %s138
        %v140 = vlaneseq
        %v141 = vshrl.u32 %v140, 7
        %v142 = vadd.s32 %v141, 8
        %v143 = vlaneseq
        %v144 = vand.u32 %v143, 127
        %s145 = sld [smem:[#allocation3 + %s23]]
        %s146 = sshra.s32 %s23, 7
        %s147 = sand.u32 %s23, 127
        %s148 = sadd.s32 %s146, 1
        %s149 = smul.u32 %s148, 128
        %s150 = sshra.s32 %s23, 7
        %s151 = sand.u32 %s23, 127
        %s152 = sadd.s32 %s149, %s151
        %s153 = sld [smem:[#allocation3 + %s152]]
        %v154 = vstv %s145
        %v155 = vadd.s32 %v144, %v154
        %v156 = vsub.s32 %v155, 4
        %vm157 = vcmp.gt.s32.totalorder %v156, 0
        %v158 = vsel %vm157, %v156, 0
        %vm159 = vcmp.lt.s32.totalorder %v158, 15
        %v160 = vsel %vm159, %v158, 15
        %vm161 = vcmp.eq.s32.totalorder %v141, %v160
        %vm162 = vcmp.eq.s32.totalorder %v142, %v160
        %v163 = vsel %vm161, 1, 0
        %v164 = vsel %vm162, 1, 0
        %v165 = vcvt.s32.f32 %v163
        %v166 = vcvt.s32.f32 %v164
        %v167 = vstv %s153
        %v168 = vadd.s32 %v141, %v167
        %v169 = vadd.s32 %v142, %v167
        %v170 = vsub.s32 %v168, 4
        %v171 = vsub.s32 %v169, 4
        %vm172 = vcmp.gt.s32.totalorder %v170, 0
        %v173 = vsel %vm172, %v170, 0
        %vm174 = vcmp.gt.s32.totalorder %v171, 0
        %v175 = vsel %vm174, %v171, 0
        %vm176 = vcmp.lt.s32.totalorder %v173, 15
        %v177 = vsel %vm176, %v173, 15
        %vm178 = vcmp.lt.s32.totalorder %v175, 15
        %v179 = vsel %vm178, %v175, 15
        %vm180 = vcmp.eq.s32.totalorder %v144, %v177
        %vm181 = vcmp.eq.s32.totalorder %v144, %v179
        %v182 = vsel %vm180, 1, 0
        %v183 = vsel %vm181, 1, 0
        %v184 = vcvt.s32.f32 %v182
        %v185 = vcvt.s32.f32 %v183
        %v186 = vld [vmem:[%s121] sm:$0xff]
        %v187 = vld [vmem:[%s121 + $0x8] sm:$0xff]
        %vm188 = vcmask 130048
        %v190 = vsel %vm188, %v186, 0
        %v193 = vsel %vm188, %v187, 0
        %195 = vmatprep.subr.mxu0 0.0
        %196 = vmatpush1.msra.mxu0 0.0
        %197 = vmatprep.subr.mxu0 0.0
        %198 = vmatpush1.msra.mxu0 0.0
        %199 = vmatprep.subr.mxu0 0.0
        %200 = vmatpush1.msra.mxu0 0.0
        %201 = vmatprep.subr.mxu0 0.0
        %202 = vmatpush1.msra.mxu0 0.0
        %203 = vmatprep.subr.mxu0 0.0
        %204 = vmatpush1.msra.mxu0 0.0
        %205 = vmatprep.subr.mxu0 0.0
        %206 = vmatpush1.msra.mxu0 0.0
        %207 = vmatprep.subr.mxu0 0.0
        %208 = vmatpush1.msra.mxu0 0.0
        %209 = vmatprep.subr.mxu0 0.0
        %210 = vmatpush1.msra.mxu0 0.0
        %211 = vmatprep.subr.mxu0 0.0
        %212 = vmatpush1.msra.mxu0 0.0
        %213 = vmatprep.subr.mxu0 0.0
        %214 = vmatpush1.msra.mxu0 0.0
        %215 = vmatprep.subr.mxu0 0.0
        %216 = vmatpush1.msra.mxu0 0.0
        %217 = vmatprep.subr.mxu0 0.0
        %218 = vmatpush1.msra.mxu0 0.0
        %219 = vmatprep.subr.mxu0 0.0
        %220 = vmatpush1.msra.mxu0 0.0
        %221 = vmatprep.subr.mxu0 0.0
        %222 = vmatpush1.msra.mxu0 0.0
        %223 = vmatprep.subr.mxu0 0.0
        %v224 = vand.u32 %v166, 4294901760
        %225 = vmatpush1.msra.mxu0 %v224
        %226 = vmatprep.subr.mxu0 0.0
        %v227 = vand.u32 %v165, 4294901760
        %228 = vmatpush1.msra.mxu0 %v227
        %229 = vmatprep.subr.mxu0 0.0
        %230 = vmatpush2.msra.mxu0 0.0
        %231 = vmatprep.subr.mxu0 0.0
        %232 = vmatpush2.msra.mxu0 0.0
        %233 = vmatprep.subr.mxu0 0.0
        %234 = vmatpush2.msra.mxu0 0.0
        %235 = vmatprep.subr.mxu0 0.0
        %236 = vmatpush2.msra.mxu0 0.0
        %237 = vmatprep.subr.mxu0 0.0
        %238 = vmatpush2.msra.mxu0 0.0
        %239 = vmatprep.subr.mxu0 0.0
        %240 = vmatpush2.msra.mxu0 0.0
        %241 = vmatprep.subr.mxu0 0.0
        %242 = vmatpush2.msra.mxu0 0.0
        %243 = vmatprep.subr.mxu0 0.0
        %244 = vmatpush2.msra.mxu0 0.0
        %245 = vmatprep.subr.mxu0 0.0
        %246 = vmatpush2.msra.mxu0 0.0
        %247 = vmatprep.subr.mxu0 0.0
        %248 = vmatpush2.msra.mxu0 0.0
        %249 = vmatprep.subr.mxu0 0.0
        %250 = vmatpush2.msra.mxu0 0.0
        %251 = vmatprep.subr.mxu0 0.0
        %252 = vmatpush2.msra.mxu0 0.0
        %253 = vmatprep.subr.mxu0 0.0
        %254 = vmatpush2.msra.mxu0 0.0
        %255 = vmatprep.subr.mxu0 0.0
        %256 = vmatpush2.msra.mxu0 0.0
        %257 = vmatprep.subr.mxu0 0.0
        %258 = vmatpush2.msra.mxu0 0.0
        %259 = vmatprep.subr.mxu0 0.0
        %260 = vmatpush2.msra.mxu0 0.0
        %261 = vmatprep.mubr.f32.mxu0 0.0
        %v262 = vand.u32 %v190, 4294901760
        %v263 = vsub.f32 %v190, %v262
        %v264 = vand.u32 %v263, 4294901760
        %v265 = vsub.f32 %v263, %v264
        %v266 = vand.u32 %v265, 4294901760
        %267 = vmatmul.mubr.f32.gmra.mxu0 %v266
        %v268 = vpop.f32.mrf.mxu0
        %v269 = vadd.f32 0.0, %v268
        %v270 = vpop.f32.mrf.mxu0
        %271 = vmatprep.mubr.f32.mxu0 0.0
        %v272 = vand.u32 %v193, 4294901760
        %v273 = vsub.f32 %v193, %v272
        %v274 = vand.u32 %v273, 4294901760
        %v275 = vsub.f32 %v273, %v274
        %v276 = vand.u32 %v275, 4294901760
        %277 = vmatmul.mubr.f32.gmra.mxu0 %v276
        %v278 = vpop.f32.mrf.mxu0
        %v279 = vadd.f32 0.0, %v278
        %v280 = vpop.f32.mrf.mxu0
        %281 = vdwg.mxu0
        %282 = vmatprep.subr.mxu0 0.0
        %283 = vmatpush1.msra.mxu0 0.0
        %284 = vmatprep.subr.mxu0 0.0
        %285 = vmatpush1.msra.mxu0 0.0
        %286 = vmatprep.subr.mxu0 0.0
        %287 = vmatpush1.msra.mxu0 0.0
        %288 = vmatprep.subr.mxu0 0.0
        %289 = vmatpush1.msra.mxu0 0.0
        %290 = vmatprep.subr.mxu0 0.0
        %291 = vmatpush1.msra.mxu0 0.0
        %292 = vmatprep.subr.mxu0 0.0
        %293 = vmatpush1.msra.mxu0 0.0
        %294 = vmatprep.subr.mxu0 0.0
        %295 = vmatpush1.msra.mxu0 0.0
        %296 = vmatprep.subr.mxu0 0.0
        %297 = vmatpush1.msra.mxu0 0.0
        %298 = vmatprep.subr.mxu0 0.0
        %299 = vmatpush1.msra.mxu0 0.0
        %300 = vmatprep.subr.mxu0 0.0
        %301 = vmatpush1.msra.mxu0 0.0
        %302 = vmatprep.subr.mxu0 0.0
        %303 = vmatpush1.msra.mxu0 0.0
        %304 = vmatprep.subr.mxu0 0.0
        %305 = vmatpush1.msra.mxu0 0.0
        %306 = vmatprep.subr.mxu0 0.0
        %307 = vmatpush1.msra.mxu0 0.0
        %308 = vmatprep.subr.mxu0 0.0
        %309 = vmatpush1.msra.mxu0 0.0
        %310 = vmatprep.subr.mxu0 0.0
        %v311 = vand.u32 %v166, 4294901760
        %v312 = vsub.f32 %v166, %v311
        %v313 = vand.u32 %v312, 4294901760
        %v314 = vsub.f32 %v312, %v313
        %v315 = vand.u32 %v314, 4294901760
        %316 = vmatpush1.msra.mxu0 %v315
        %317 = vmatprep.subr.mxu0 0.0
        %v318 = vand.u32 %v165, 4294901760
        %v319 = vsub.f32 %v165, %v318
        %v320 = vand.u32 %v319, 4294901760
        %v321 = vsub.f32 %v319, %v320
        %v322 = vand.u32 %v321, 4294901760
        %323 = vmatpush1.msra.mxu0 %v322
        %324 = vmatprep.subr.mxu0 0.0
        %325 = vmatpush2.msra.mxu0 0.0
        %326 = vmatprep.subr.mxu0 0.0
        %327 = vmatpush2.msra.mxu0 0.0
        %328 = vmatprep.subr.mxu0 0.0
        %329 = vmatpush2.msra.mxu0 0.0
        %330 = vmatprep.subr.mxu0 0.0
        %331 = vmatpush2.msra.mxu0 0.0
        %332 = vmatprep.subr.mxu0 0.0
        %333 = vmatpush2.msra.mxu0 0.0
        %334 = vmatprep.subr.mxu0 0.0
        %335 = vmatpush2.msra.mxu0 0.0
        %336 = vmatprep.subr.mxu0 0.0
        %337 = vmatpush2.msra.mxu0 0.0
        %338 = vmatprep.subr.mxu0 0.0
        %339 = vmatpush2.msra.mxu0 0.0
        %340 = vmatprep.subr.mxu0 0.0
        %341 = vmatpush2.msra.mxu0 0.0
        %342 = vmatprep.subr.mxu0 0.0
        %343 = vmatpush2.msra.mxu0 0.0
        %344 = vmatprep.subr.mxu0 0.0
        %345 = vmatpush2.msra.mxu0 0.0
        %346 = vmatprep.subr.mxu0 0.0
        %347 = vmatpush2.msra.mxu0 0.0
        %348 = vmatprep.subr.mxu0 0.0
        %349 = vmatpush2.msra.mxu0 0.0
        %350 = vmatprep.subr.mxu0 0.0
        %351 = vmatpush2.msra.mxu0 0.0
        %352 = vmatprep.subr.mxu0 0.0
        %353 = vmatpush2.msra.mxu0 0.0
        %354 = vmatprep.subr.mxu0 0.0
        %355 = vmatpush2.msra.mxu0 0.0
        %356 = vmatprep.mubr.f32.mxu0 0.0
        %v357 = vand.u32 %v190, 4294901760
        %358 = vmatmul.mubr.f32.gmra.mxu0 %v357
        %v359 = vpop.f32.mrf.mxu0
        %v360 = vadd.f32 %v269, %v359
        %v361 = vpop.f32.mrf.mxu0
        %362 = vmatprep.mubr.f32.mxu0 0.0
        %v363 = vand.u32 %v193, 4294901760
        %364 = vmatmul.mubr.f32.gmra.mxu0 %v363
        %v365 = vpop.f32.mrf.mxu0
        %v366 = vadd.f32 %v279, %v365
        %v367 = vpop.f32.mrf.mxu0
        %368 = vdwg.mxu0
        %369 = vmatprep.subr.mxu0 0.0
        %370 = vmatpush1.msra.mxu0 0.0
        %371 = vmatprep.subr.mxu0 0.0
        %372 = vmatpush1.msra.mxu0 0.0
        %373 = vmatprep.subr.mxu0 0.0
        %374 = vmatpush1.msra.mxu0 0.0
        %375 = vmatprep.subr.mxu0 0.0
        %376 = vmatpush1.msra.mxu0 0.0
        %377 = vmatprep.subr.mxu0 0.0
        %378 = vmatpush1.msra.mxu0 0.0
        %379 = vmatprep.subr.mxu0 0.0
        %380 = vmatpush1.msra.mxu0 0.0
        %381 = vmatprep.subr.mxu0 0.0
        %382 = vmatpush1.msra.mxu0 0.0
        %383 = vmatprep.subr.mxu0 0.0
        %384 = vmatpush1.msra.mxu0 0.0
        %385 = vmatprep.subr.mxu0 0.0
        %386 = vmatpush1.msra.mxu0 0.0
        %387 = vmatprep.subr.mxu0 0.0
        %388 = vmatpush1.msra.mxu0 0.0
        %389 = vmatprep.subr.mxu0 0.0
        %390 = vmatpush1.msra.mxu0 0.0
        %391 = vmatprep.subr.mxu0 0.0
        %392 = vmatpush1.msra.mxu0 0.0
        %393 = vmatprep.subr.mxu0 0.0
        %394 = vmatpush1.msra.mxu0 0.0
        %395 = vmatprep.subr.mxu0 0.0
        %396 = vmatpush1.msra.mxu0 0.0
        %397 = vmatprep.subr.mxu0 0.0
        %v398 = vand.u32 %v166, 4294901760
        %v399 = vsub.f32 %v166, %v398
        %400 = vmatpush1.msra.mxu0 %v399
        %401 = vmatprep.subr.mxu0 0.0
        %v402 = vand.u32 %v165, 4294901760
        %v403 = vsub.f32 %v165, %v402
        %404 = vmatpush1.msra.mxu0 %v403
        %405 = vmatprep.subr.mxu0 0.0
        %406 = vmatpush2.msra.mxu0 0.0
        %407 = vmatprep.subr.mxu0 0.0
        %408 = vmatpush2.msra.mxu0 0.0
        %409 = vmatprep.subr.mxu0 0.0
        %410 = vmatpush2.msra.mxu0 0.0
        %411 = vmatprep.subr.mxu0 0.0
        %412 = vmatpush2.msra.mxu0 0.0
        %413 = vmatprep.subr.mxu0 0.0
        %414 = vmatpush2.msra.mxu0 0.0
        %415 = vmatprep.subr.mxu0 0.0
        %416 = vmatpush2.msra.mxu0 0.0
        %417 = vmatprep.subr.mxu0 0.0
        %418 = vmatpush2.msra.mxu0 0.0
        %419 = vmatprep.subr.mxu0 0.0
        %420 = vmatpush2.msra.mxu0 0.0
        %421 = vmatprep.subr.mxu0 0.0
        %422 = vmatpush2.msra.mxu0 0.0
        %423 = vmatprep.subr.mxu0 0.0
        %424 = vmatpush2.msra.mxu0 0.0
        %425 = vmatprep.subr.mxu0 0.0
        %426 = vmatpush2.msra.mxu0 0.0
        %427 = vmatprep.subr.mxu0 0.0
        %428 = vmatpush2.msra.mxu0 0.0
        %429 = vmatprep.subr.mxu0 0.0
        %430 = vmatpush2.msra.mxu0 0.0
        %431 = vmatprep.subr.mxu0 0.0
        %432 = vmatpush2.msra.mxu0 0.0
        %433 = vmatprep.subr.mxu0 0.0
        %434 = vmatpush2.msra.mxu0 0.0
        %435 = vmatprep.subr.mxu0 0.0
        %436 = vmatpush2.msra.mxu0 0.0
        %437 = vmatprep.mubr.f32.mxu0 0.0
        %v438 = vand.u32 %v190, 4294901760
        %v439 = vsub.f32 %v190, %v438
        %440 = vmatmul.mubr.f32.gmra.mxu0 %v439
        %v441 = vpop.f32.mrf.mxu0
        %v442 = vadd.f32 %v360, %v441
        %v443 = vpop.f32.mrf.mxu0
        %444 = vmatprep.mubr.f32.mxu0 0.0
        %v445 = vand.u32 %v193, 4294901760
        %v446 = vsub.f32 %v193, %v445
        %447 = vmatmul.mubr.f32.gmra.mxu0 %v446
        %v448 = vpop.f32.mrf.mxu0
        %v449 = vadd.f32 %v366, %v448
        %v450 = vpop.f32.mrf.mxu0
        %451 = vdwg.mxu0
        %452 = vmatprep.subr.mxu0 0.0
        %453 = vmatpush1.msra.mxu0 0.0
        %454 = vmatprep.subr.mxu0 0.0
        %455 = vmatpush1.msra.mxu0 0.0
        %456 = vmatprep.subr.mxu0 0.0
        %457 = vmatpush1.msra.mxu0 0.0
        %458 = vmatprep.subr.mxu0 0.0
        %459 = vmatpush1.msra.mxu0 0.0
        %460 = vmatprep.subr.mxu0 0.0
        %461 = vmatpush1.msra.mxu0 0.0
        %462 = vmatprep.subr.mxu0 0.0
        %463 = vmatpush1.msra.mxu0 0.0
        %464 = vmatprep.subr.mxu0 0.0
        %465 = vmatpush1.msra.mxu0 0.0
        %466 = vmatprep.subr.mxu0 0.0
        %467 = vmatpush1.msra.mxu0 0.0
        %468 = vmatprep.subr.mxu0 0.0
        %469 = vmatpush1.msra.mxu0 0.0
        %470 = vmatprep.subr.mxu0 0.0
        %471 = vmatpush1.msra.mxu0 0.0
        %472 = vmatprep.subr.mxu0 0.0
        %473 = vmatpush1.msra.mxu0 0.0
        %474 = vmatprep.subr.mxu0 0.0
        %475 = vmatpush1.msra.mxu0 0.0
        %476 = vmatprep.subr.mxu0 0.0
        %477 = vmatpush1.msra.mxu0 0.0
        %478 = vmatprep.subr.mxu0 0.0
        %479 = vmatpush1.msra.mxu0 0.0
        %480 = vmatprep.subr.mxu0 0.0
        %v481 = vand.u32 %v166, 4294901760
        %482 = vmatpush1.msra.mxu0 %v481
        %483 = vmatprep.subr.mxu0 0.0
        %v484 = vand.u32 %v165, 4294901760
        %485 = vmatpush1.msra.mxu0 %v484
        %486 = vmatprep.subr.mxu0 0.0
        %487 = vmatpush2.msra.mxu0 0.0
        %488 = vmatprep.subr.mxu0 0.0
        %489 = vmatpush2.msra.mxu0 0.0
        %490 = vmatprep.subr.mxu0 0.0
        %491 = vmatpush2.msra.mxu0 0.0
        %492 = vmatprep.subr.mxu0 0.0
        %493 = vmatpush2.msra.mxu0 0.0
        %494 = vmatprep.subr.mxu0 0.0
        %495 = vmatpush2.msra.mxu0 0.0
        %496 = vmatprep.subr.mxu0 0.0
        %497 = vmatpush2.msra.mxu0 0.0
        %498 = vmatprep.subr.mxu0 0.0
        %499 = vmatpush2.msra.mxu0 0.0
        %500 = vmatprep.subr.mxu0 0.0
        %501 = vmatpush2.msra.mxu0 0.0
        %502 = vmatprep.subr.mxu0 0.0
        %503 = vmatpush2.msra.mxu0 0.0
        %504 = vmatprep.subr.mxu0 0.0
        %505 = vmatpush2.msra.mxu0 0.0
        %506 = vmatprep.subr.mxu0 0.0
        %507 = vmatpush2.msra.mxu0 0.0
        %508 = vmatprep.subr.mxu0 0.0
        %509 = vmatpush2.msra.mxu0 0.0
        %510 = vmatprep.subr.mxu0 0.0
        %511 = vmatpush2.msra.mxu0 0.0
        %512 = vmatprep.subr.mxu0 0.0
        %513 = vmatpush2.msra.mxu0 0.0
        %514 = vmatprep.subr.mxu0 0.0
        %515 = vmatpush2.msra.mxu0 0.0
        %516 = vmatprep.subr.mxu0 0.0
        %517 = vmatpush2.msra.mxu0 0.0
        %518 = vmatprep.mubr.f32.mxu0 0.0
        %v519 = vand.u32 %v190, 4294901760
        %v520 = vsub.f32 %v190, %v519
        %v521 = vand.u32 %v520, 4294901760
        %522 = vmatmul.mubr.f32.gmra.mxu0 %v521
        %v523 = vpop.f32.mrf.mxu0
        %v524 = vadd.f32 %v442, %v523
        %v525 = vpop.f32.mrf.mxu0
        %526 = vmatprep.mubr.f32.mxu0 0.0
        %v527 = vand.u32 %v193, 4294901760
        %v528 = vsub.f32 %v193, %v527
        %v529 = vand.u32 %v528, 4294901760
        %530 = vmatmul.mubr.f32.gmra.mxu0 %v529
        %v531 = vpop.f32.mrf.mxu0
        %v532 = vadd.f32 %v449, %v531
        %v533 = vpop.f32.mrf.mxu0
        %534 = vdwg.mxu0
        %535 = vmatprep.subr.mxu0 0.0
        %536 = vmatpush1.msra.mxu0 0.0
        %537 = vmatprep.subr.mxu0 0.0
        %538 = vmatpush1.msra.mxu0 0.0
        %539 = vmatprep.subr.mxu0 0.0
        %540 = vmatpush1.msra.mxu0 0.0
        %541 = vmatprep.subr.mxu0 0.0
        %542 = vmatpush1.msra.mxu0 0.0
        %543 = vmatprep.subr.mxu0 0.0
        %544 = vmatpush1.msra.mxu0 0.0
        %545 = vmatprep.subr.mxu0 0.0
        %546 = vmatpush1.msra.mxu0 0.0
        %547 = vmatprep.subr.mxu0 0.0
        %548 = vmatpush1.msra.mxu0 0.0
        %549 = vmatprep.subr.mxu0 0.0
        %550 = vmatpush1.msra.mxu0 0.0
        %551 = vmatprep.subr.mxu0 0.0
        %552 = vmatpush1.msra.mxu0 0.0
        %553 = vmatprep.subr.mxu0 0.0
        %554 = vmatpush1.msra.mxu0 0.0
        %555 = vmatprep.subr.mxu0 0.0
        %556 = vmatpush1.msra.mxu0 0.0
        %557 = vmatprep.subr.mxu0 0.0
        %558 = vmatpush1.msra.mxu0 0.0
        %559 = vmatprep.subr.mxu0 0.0
        %560 = vmatpush1.msra.mxu0 0.0
        %561 = vmatprep.subr.mxu0 0.0
        %562 = vmatpush1.msra.mxu0 0.0
        %563 = vmatprep.subr.mxu0 0.0
        %v564 = vand.u32 %v166, 4294901760
        %v565 = vsub.f32 %v166, %v564
        %v566 = vand.u32 %v565, 4294901760
        %567 = vmatpush1.msra.mxu0 %v566
        %568 = vmatprep.subr.mxu0 0.0
        %v569 = vand.u32 %v165, 4294901760
        %v570 = vsub.f32 %v165, %v569
        %v571 = vand.u32 %v570, 4294901760
        %572 = vmatpush1.msra.mxu0 %v571
        %573 = vmatprep.subr.mxu0 0.0
        %574 = vmatpush2.msra.mxu0 0.0
        %575 = vmatprep.subr.mxu0 0.0
        %576 = vmatpush2.msra.mxu0 0.0
        %577 = vmatprep.subr.mxu0 0.0
        %578 = vmatpush2.msra.mxu0 0.0
        %579 = vmatprep.subr.mxu0 0.0
        %580 = vmatpush2.msra.mxu0 0.0
        %581 = vmatprep.subr.mxu0 0.0
        %582 = vmatpush2.msra.mxu0 0.0
        %583 = vmatprep.subr.mxu0 0.0
        %584 = vmatpush2.msra.mxu0 0.0
        %585 = vmatprep.subr.mxu0 0.0
        %586 = vmatpush2.msra.mxu0 0.0
        %587 = vmatprep.subr.mxu0 0.0
        %588 = vmatpush2.msra.mxu0 0.0
        %589 = vmatprep.subr.mxu0 0.0
        %590 = vmatpush2.msra.mxu0 0.0
        %591 = vmatprep.subr.mxu0 0.0
        %592 = vmatpush2.msra.mxu0 0.0
        %593 = vmatprep.subr.mxu0 0.0
        %594 = vmatpush2.msra.mxu0 0.0
        %595 = vmatprep.subr.mxu0 0.0
        %596 = vmatpush2.msra.mxu0 0.0
        %597 = vmatprep.subr.mxu0 0.0
        %598 = vmatpush2.msra.mxu0 0.0
        %599 = vmatprep.subr.mxu0 0.0
        %600 = vmatpush2.msra.mxu0 0.0
        %601 = vmatprep.subr.mxu0 0.0
        %602 = vmatpush2.msra.mxu0 0.0
        %603 = vmatprep.subr.mxu0 0.0
        %604 = vmatpush2.msra.mxu0 0.0
        %605 = vmatprep.mubr.f32.mxu0 0.0
        %v606 = vand.u32 %v190, 4294901760
        %607 = vmatmul.mubr.f32.gmra.mxu0 %v606
        %v608 = vpop.f32.mrf.mxu0
        %v609 = vadd.f32 %v524, %v608
        %v610 = vpop.f32.mrf.mxu0
        %611 = vmatprep.mubr.f32.mxu0 0.0
        %v612 = vand.u32 %v193, 4294901760
        %613 = vmatmul.mubr.f32.gmra.mxu0 %v612
        %v614 = vpop.f32.mrf.mxu0
        %v615 = vadd.f32 %v532, %v614
        %v616 = vpop.f32.mrf.mxu0
        %617 = vdwg.mxu0
        %618 = vmatprep.subr.mxu0 0.0
        %619 = vmatpush1.msra.mxu0 0.0
        %620 = vmatprep.subr.mxu0 0.0
        %621 = vmatpush1.msra.mxu0 0.0
        %622 = vmatprep.subr.mxu0 0.0
        %623 = vmatpush1.msra.mxu0 0.0
        %624 = vmatprep.subr.mxu0 0.0
        %625 = vmatpush1.msra.mxu0 0.0
        %626 = vmatprep.subr.mxu0 0.0
        %627 = vmatpush1.msra.mxu0 0.0
        %628 = vmatprep.subr.mxu0 0.0
        %629 = vmatpush1.msra.mxu0 0.0
        %630 = vmatprep.subr.mxu0 0.0
        %631 = vmatpush1.msra.mxu0 0.0
        %632 = vmatprep.subr.mxu0 0.0
        %633 = vmatpush1.msra.mxu0 0.0
        %634 = vmatprep.subr.mxu0 0.0
        %635 = vmatpush1.msra.mxu0 0.0
        %636 = vmatprep.subr.mxu0 0.0
        %637 = vmatpush1.msra.mxu0 0.0
        %638 = vmatprep.subr.mxu0 0.0
        %639 = vmatpush1.msra.mxu0 0.0
        %640 = vmatprep.subr.mxu0 0.0
        %641 = vmatpush1.msra.mxu0 0.0
        %642 = vmatprep.subr.mxu0 0.0
        %643 = vmatpush1.msra.mxu0 0.0
        %644 = vmatprep.subr.mxu0 0.0
        %645 = vmatpush1.msra.mxu0 0.0
        %646 = vmatprep.subr.mxu0 0.0
        %v647 = vand.u32 %v166, 4294901760
        %648 = vmatpush1.msra.mxu0 %v647
        %649 = vmatprep.subr.mxu0 0.0
        %v650 = vand.u32 %v165, 4294901760
        %651 = vmatpush1.msra.mxu0 %v650
        %652 = vmatprep.subr.mxu0 0.0
        %653 = vmatpush2.msra.mxu0 0.0
        %654 = vmatprep.subr.mxu0 0.0
        %655 = vmatpush2.msra.mxu0 0.0
        %656 = vmatprep.subr.mxu0 0.0
        %657 = vmatpush2.msra.mxu0 0.0
        %658 = vmatprep.subr.mxu0 0.0
        %659 = vmatpush2.msra.mxu0 0.0
        %660 = vmatprep.subr.mxu0 0.0
        %661 = vmatpush2.msra.mxu0 0.0
        %662 = vmatprep.subr.mxu0 0.0
        %663 = vmatpush2.msra.mxu0 0.0
        %664 = vmatprep.subr.mxu0 0.0
        %665 = vmatpush2.msra.mxu0 0.0
        %666 = vmatprep.subr.mxu0 0.0
        %667 = vmatpush2.msra.mxu0 0.0
        %668 = vmatprep.subr.mxu0 0.0
        %669 = vmatpush2.msra.mxu0 0.0
        %670 = vmatprep.subr.mxu0 0.0
        %671 = vmatpush2.msra.mxu0 0.0
        %672 = vmatprep.subr.mxu0 0.0
        %673 = vmatpush2.msra.mxu0 0.0
        %674 = vmatprep.subr.mxu0 0.0
        %675 = vmatpush2.msra.mxu0 0.0
        %676 = vmatprep.subr.mxu0 0.0
        %677 = vmatpush2.msra.mxu0 0.0
        %678 = vmatprep.subr.mxu0 0.0
        %679 = vmatpush2.msra.mxu0 0.0
        %680 = vmatprep.subr.mxu0 0.0
        %681 = vmatpush2.msra.mxu0 0.0
        %682 = vmatprep.subr.mxu0 0.0
        %683 = vmatpush2.msra.mxu0 0.0
        %684 = vmatprep.mubr.f32.mxu0 0.0
        %v685 = vand.u32 %v190, 4294901760
        %686 = vmatmul.mubr.f32.gmra.mxu0 %v685
        %v687 = vpop.f32.mrf.mxu0
        %v688 = vadd.f32 %v609, %v687
        %v689 = vpop.f32.mrf.mxu0
        %690 = vmatprep.mubr.f32.mxu0 0.0
        %v691 = vand.u32 %v193, 4294901760
        %692 = vmatmul.mubr.f32.gmra.mxu0 %v691
        %v693 = vpop.f32.mrf.mxu0
        %v694 = vadd.f32 %v615, %v693
        %v695 = vpop.f32.mrf.mxu0
        %696 = vdwg.mxu0
        %v698 = vsel %vm188, %v184, 0
        %v701 = vsel %vm188, %v185, 0
        %703 = vmatprep.subr.mxu0 0.0
        %704 = vmatpush1.msra.mxu0 0.0
        %705 = vmatprep.subr.mxu0 0.0
        %706 = vmatpush1.msra.mxu0 0.0
        %707 = vmatprep.subr.mxu0 0.0
        %708 = vmatpush1.msra.mxu0 0.0
        %709 = vmatprep.subr.mxu0 0.0
        %710 = vmatpush1.msra.mxu0 0.0
        %711 = vmatprep.subr.mxu0 0.0
        %712 = vmatpush1.msra.mxu0 0.0
        %713 = vmatprep.subr.mxu0 0.0
        %714 = vmatpush1.msra.mxu0 0.0
        %715 = vmatprep.subr.mxu0 0.0
        %716 = vmatpush1.msra.mxu0 0.0
        %717 = vmatprep.subr.mxu0 0.0
        %718 = vmatpush1.msra.mxu0 0.0
        %719 = vmatprep.subr.mxu0 0.0
        %720 = vmatpush1.msra.mxu0 0.0
        %721 = vmatprep.subr.mxu0 0.0
        %722 = vmatpush1.msra.mxu0 0.0
        %723 = vmatprep.subr.mxu0 0.0
        %724 = vmatpush1.msra.mxu0 0.0
        %725 = vmatprep.subr.mxu0 0.0
        %726 = vmatpush1.msra.mxu0 0.0
        %727 = vmatprep.subr.mxu0 0.0
        %728 = vmatpush1.msra.mxu0 0.0
        %729 = vmatprep.subr.mxu0 0.0
        %730 = vmatpush1.msra.mxu0 0.0
        %731 = vmatprep.subr.mxu0 0.0
        %v732 = vand.u32 %v694, 4294901760
        %733 = vmatpush1.msra.mxu0 %v732
        %734 = vmatprep.subr.mxu0 0.0
        %v735 = vand.u32 %v688, 4294901760
        %736 = vmatpush1.msra.mxu0 %v735
        %737 = vmatprep.subr.mxu0 0.0
        %738 = vmatpush2.msra.mxu0 0.0
        %739 = vmatprep.subr.mxu0 0.0
        %740 = vmatpush2.msra.mxu0 0.0
        %741 = vmatprep.subr.mxu0 0.0
        %742 = vmatpush2.msra.mxu0 0.0
        %743 = vmatprep.subr.mxu0 0.0
        %744 = vmatpush2.msra.mxu0 0.0
        %745 = vmatprep.subr.mxu0 0.0
        %746 = vmatpush2.msra.mxu0 0.0
        %747 = vmatprep.subr.mxu0 0.0
        %748 = vmatpush2.msra.mxu0 0.0
        %749 = vmatprep.subr.mxu0 0.0
        %750 = vmatpush2.msra.mxu0 0.0
        %751 = vmatprep.subr.mxu0 0.0
        %752 = vmatpush2.msra.mxu0 0.0
        %753 = vmatprep.subr.mxu0 0.0
        %754 = vmatpush2.msra.mxu0 0.0
        %755 = vmatprep.subr.mxu0 0.0
        %756 = vmatpush2.msra.mxu0 0.0
        %757 = vmatprep.subr.mxu0 0.0
        %758 = vmatpush2.msra.mxu0 0.0
        %759 = vmatprep.subr.mxu0 0.0
        %760 = vmatpush2.msra.mxu0 0.0
        %761 = vmatprep.subr.mxu0 0.0
        %762 = vmatpush2.msra.mxu0 0.0
        %763 = vmatprep.subr.mxu0 0.0
        %764 = vmatpush2.msra.mxu0 0.0
        %765 = vmatprep.subr.mxu0 0.0
        %766 = vmatpush2.msra.mxu0 0.0
        %767 = vmatprep.subr.mxu0 0.0
        %768 = vmatpush2.msra.mxu0 0.0
        %769 = vmatprep.mubr.f32.mxu0 0.0
        %v770 = vand.u32 %v698, 4294901760
        %v771 = vsub.f32 %v698, %v770
        %v772 = vand.u32 %v771, 4294901760
        %v773 = vsub.f32 %v771, %v772
        %v774 = vand.u32 %v773, 4294901760
        %775 = vmatmul.mubr.f32.gmra.mxu0 %v774
        %v776 = vpop.f32.mrf.mxu0
        %v777 = vadd.f32 0.0, %v776
        %v778 = vpop.f32.mrf.mxu0
        %779 = vmatprep.mubr.f32.mxu0 0.0
        %v780 = vand.u32 %v701, 4294901760
        %v781 = vsub.f32 %v701, %v780
        %v782 = vand.u32 %v781, 4294901760
        %v783 = vsub.f32 %v781, %v782
        %v784 = vand.u32 %v783, 4294901760
        %785 = vmatmul.mubr.f32.gmra.mxu0 %v784
        %v786 = vpop.f32.mrf.mxu0
        %v787 = vadd.f32 0.0, %v786
        %v788 = vpop.f32.mrf.mxu0
        %789 = vdwg.mxu0
        %790 = vmatprep.subr.mxu0 0.0
        %791 = vmatpush1.msra.mxu0 0.0
        %792 = vmatprep.subr.mxu0 0.0
        %793 = vmatpush1.msra.mxu0 0.0
        %794 = vmatprep.subr.mxu0 0.0
        %795 = vmatpush1.msra.mxu0 0.0
        %796 = vmatprep.subr.mxu0 0.0
        %797 = vmatpush1.msra.mxu0 0.0
        %798 = vmatprep.subr.mxu0 0.0
        %799 = vmatpush1.msra.mxu0 0.0
        %800 = vmatprep.subr.mxu0 0.0
        %801 = vmatpush1.msra.mxu0 0.0
        %802 = vmatprep.subr.mxu0 0.0
        %803 = vmatpush1.msra.mxu0 0.0
        %804 = vmatprep.subr.mxu0 0.0
        %805 = vmatpush1.msra.mxu0 0.0
        %806 = vmatprep.subr.mxu0 0.0
        %807 = vmatpush1.msra.mxu0 0.0
        %808 = vmatprep.subr.mxu0 0.0
        %809 = vmatpush1.msra.mxu0 0.0
        %810 = vmatprep.subr.mxu0 0.0
        %811 = vmatpush1.msra.mxu0 0.0
        %812 = vmatprep.subr.mxu0 0.0
        %813 = vmatpush1.msra.mxu0 0.0
        %814 = vmatprep.subr.mxu0 0.0
        %815 = vmatpush1.msra.mxu0 0.0
        %816 = vmatprep.subr.mxu0 0.0
        %817 = vmatpush1.msra.mxu0 0.0
        %818 = vmatprep.subr.mxu0 0.0
        %v819 = vand.u32 %v694, 4294901760
        %v820 = vsub.f32 %v694, %v819
        %v821 = vand.u32 %v820, 4294901760
        %v822 = vsub.f32 %v820, %v821
        %v823 = vand.u32 %v822, 4294901760
        %824 = vmatpush1.msra.mxu0 %v823
        %825 = vmatprep.subr.mxu0 0.0
        %v826 = vand.u32 %v688, 4294901760
        %v827 = vsub.f32 %v688, %v826
        %v828 = vand.u32 %v827, 4294901760
        %v829 = vsub.f32 %v827, %v828
        %v830 = vand.u32 %v829, 4294901760
        %831 = vmatpush1.msra.mxu0 %v830
        %832 = vmatprep.subr.mxu0 0.0
        %833 = vmatpush2.msra.mxu0 0.0
        %834 = vmatprep.subr.mxu0 0.0
        %835 = vmatpush2.msra.mxu0 0.0
        %836 = vmatprep.subr.mxu0 0.0
        %837 = vmatpush2.msra.mxu0 0.0
        %838 = vmatprep.subr.mxu0 0.0
        %839 = vmatpush2.msra.mxu0 0.0
        %840 = vmatprep.subr.mxu0 0.0
        %841 = vmatpush2.msra.mxu0 0.0
        %842 = vmatprep.subr.mxu0 0.0
        %843 = vmatpush2.msra.mxu0 0.0
        %844 = vmatprep.subr.mxu0 0.0
        %845 = vmatpush2.msra.mxu0 0.0
        %846 = vmatprep.subr.mxu0 0.0
        %847 = vmatpush2.msra.mxu0 0.0
        %848 = vmatprep.subr.mxu0 0.0
        %849 = vmatpush2.msra.mxu0 0.0
        %850 = vmatprep.subr.mxu0 0.0
        %851 = vmatpush2.msra.mxu0 0.0
        %852 = vmatprep.subr.mxu0 0.0
        %853 = vmatpush2.msra.mxu0 0.0
        %854 = vmatprep.subr.mxu0 0.0
        %855 = vmatpush2.msra.mxu0 0.0
        %856 = vmatprep.subr.mxu0 0.0
        %857 = vmatpush2.msra.mxu0 0.0
        %858 = vmatprep.subr.mxu0 0.0
        %859 = vmatpush2.msra.mxu0 0.0
        %860 = vmatprep.subr.mxu0 0.0
        %861 = vmatpush2.msra.mxu0 0.0
        %862 = vmatprep.subr.mxu0 0.0
        %863 = vmatpush2.msra.mxu0 0.0
        %864 = vmatprep.mubr.f32.mxu0 0.0
        %v865 = vand.u32 %v698, 4294901760
        %866 = vmatmul.mubr.f32.gmra.mxu0 %v865
        %v867 = vpop.f32.mrf.mxu0
        %v868 = vadd.f32 %v777, %v867
        %v869 = vpop.f32.mrf.mxu0
        %870 = vmatprep.mubr.f32.mxu0 0.0
        %v871 = vand.u32 %v701, 4294901760
        %872 = vmatmul.mubr.f32.gmra.mxu0 %v871
        %v873 = vpop.f32.mrf.mxu0
        %v874 = vadd.f32 %v787, %v873
        %v875 = vpop.f32.mrf.mxu0
        %876 = vdwg.mxu0
        %877 = vmatprep.subr.mxu0 0.0
        %878 = vmatpush1.msra.mxu0 0.0
        %879 = vmatprep.subr.mxu0 0.0
        %880 = vmatpush1.msra.mxu0 0.0
        %881 = vmatprep.subr.mxu0 0.0
        %882 = vmatpush1.msra.mxu0 0.0
        %883 = vmatprep.subr.mxu0 0.0
        %884 = vmatpush1.msra.mxu0 0.0
        %885 = vmatprep.subr.mxu0 0.0
        %886 = vmatpush1.msra.mxu0 0.0
        %887 = vmatprep.subr.mxu0 0.0
        %888 = vmatpush1.msra.mxu0 0.0
        %889 = vmatprep.subr.mxu0 0.0
        %890 = vmatpush1.msra.mxu0 0.0
        %891 = vmatprep.subr.mxu0 0.0
        %892 = vmatpush1.msra.mxu0 0.0
        %893 = vmatprep.subr.mxu0 0.0
        %894 = vmatpush1.msra.mxu0 0.0
        %895 = vmatprep.subr.mxu0 0.0
        %896 = vmatpush1.msra.mxu0 0.0
        %897 = vmatprep.subr.mxu0 0.0
        %898 = vmatpush1.msra.mxu0 0.0
        %899 = vmatprep.subr.mxu0 0.0
        %900 = vmatpush1.msra.mxu0 0.0
        %901 = vmatprep.subr.mxu0 0.0
        %902 = vmatpush1.msra.mxu0 0.0
        %903 = vmatprep.subr.mxu0 0.0
        %904 = vmatpush1.msra.mxu0 0.0
        %905 = vmatprep.subr.mxu0 0.0
        %v906 = vand.u32 %v694, 4294901760
        %v907 = vsub.f32 %v694, %v906
        %908 = vmatpush1.msra.mxu0 %v907
        %909 = vmatprep.subr.mxu0 0.0
        %v910 = vand.u32 %v688, 4294901760
        %v911 = vsub.f32 %v688, %v910
        %912 = vmatpush1.msra.mxu0 %v911
        %913 = vmatprep.subr.mxu0 0.0
        %914 = vmatpush2.msra.mxu0 0.0
        %915 = vmatprep.subr.mxu0 0.0
        %916 = vmatpush2.msra.mxu0 0.0
        %917 = vmatprep.subr.mxu0 0.0
        %918 = vmatpush2.msra.mxu0 0.0
        %919 = vmatprep.subr.mxu0 0.0
        %920 = vmatpush2.msra.mxu0 0.0
        %921 = vmatprep.subr.mxu0 0.0
        %922 = vmatpush2.msra.mxu0 0.0
        %923 = vmatprep.subr.mxu0 0.0
        %924 = vmatpush2.msra.mxu0 0.0
        %925 = vmatprep.subr.mxu0 0.0
        %926 = vmatpush2.msra.mxu0 0.0
        %927 = vmatprep.subr.mxu0 0.0
        %928 = vmatpush2.msra.mxu0 0.0
        %929 = vmatprep.subr.mxu0 0.0
        %930 = vmatpush2.msra.mxu0 0.0
        %931 = vmatprep.subr.mxu0 0.0
        %932 = vmatpush2.msra.mxu0 0.0
        %933 = vmatprep.subr.mxu0 0.0
        %934 = vmatpush2.msra.mxu0 0.0
        %935 = vmatprep.subr.mxu0 0.0
        %936 = vmatpush2.msra.mxu0 0.0
        %937 = vmatprep.subr.mxu0 0.0
        %938 = vmatpush2.msra.mxu0 0.0
        %939 = vmatprep.subr.mxu0 0.0
        %940 = vmatpush2.msra.mxu0 0.0
        %941 = vmatprep.subr.mxu0 0.0
        %942 = vmatpush2.msra.mxu0 0.0
        %943 = vmatprep.subr.mxu0 0.0
        %944 = vmatpush2.msra.mxu0 0.0
        %945 = vmatprep.mubr.f32.mxu0 0.0
        %v946 = vand.u32 %v698, 4294901760
        %v947 = vsub.f32 %v698, %v946
        %948 = vmatmul.mubr.f32.gmra.mxu0 %v947
        %v949 = vpop.f32.mrf.mxu0
        %v950 = vadd.f32 %v868, %v949
        %v951 = vpop.f32.mrf.mxu0
        %952 = vmatprep.mubr.f32.mxu0 0.0
        %v953 = vand.u32 %v701, 4294901760
        %v954 = vsub.f32 %v701, %v953
        %955 = vmatmul.mubr.f32.gmra.mxu0 %v954
        %v956 = vpop.f32.mrf.mxu0
        %v957 = vadd.f32 %v874, %v956
        %v958 = vpop.f32.mrf.mxu0
        %959 = vdwg.mxu0
        %960 = vmatprep.subr.mxu0 0.0
        %961 = vmatpush1.msra.mxu0 0.0
        %962 = vmatprep.subr.mxu0 0.0
        %963 = vmatpush1.msra.mxu0 0.0
        %964 = vmatprep.subr.mxu0 0.0
        %965 = vmatpush1.msra.mxu0 0.0
        %966 = vmatprep.subr.mxu0 0.0
        %967 = vmatpush1.msra.mxu0 0.0
        %968 = vmatprep.subr.mxu0 0.0
        %969 = vmatpush1.msra.mxu0 0.0
        %970 = vmatprep.subr.mxu0 0.0
        %971 = vmatpush1.msra.mxu0 0.0
        %972 = vmatprep.subr.mxu0 0.0
        %973 = vmatpush1.msra.mxu0 0.0
        %974 = vmatprep.subr.mxu0 0.0
        %975 = vmatpush1.msra.mxu0 0.0
        %976 = vmatprep.subr.mxu0 0.0
        %977 = vmatpush1.msra.mxu0 0.0
        %978 = vmatprep.subr.mxu0 0.0
        %979 = vmatpush1.msra.mxu0 0.0
        %980 = vmatprep.subr.mxu0 0.0
        %981 = vmatpush1.msra.mxu0 0.0
        %982 = vmatprep.subr.mxu0 0.0
        %983 = vmatpush1.msra.mxu0 0.0
        %984 = vmatprep.subr.mxu0 0.0
        %985 = vmatpush1.msra.mxu0 0.0
        %986 = vmatprep.subr.mxu0 0.0
        %987 = vmatpush1.msra.mxu0 0.0
        %988 = vmatprep.subr.mxu0 0.0
        %v989 = vand.u32 %v694, 4294901760
        %990 = vmatpush1.msra.mxu0 %v989
        %991 = vmatprep.subr.mxu0 0.0
        %v992 = vand.u32 %v688, 4294901760
        %993 = vmatpush1.msra.mxu0 %v992
        %994 = vmatprep.subr.mxu0 0.0
        %995 = vmatpush2.msra.mxu0 0.0
        %996 = vmatprep.subr.mxu0 0.0
        %997 = vmatpush2.msra.mxu0 0.0
        %998 = vmatprep.subr.mxu0 0.0
        %999 = vmatpush2.msra.mxu0 0.0
        %1000 = vmatprep.subr.mxu0 0.0
        %1001 = vmatpush2.msra.mxu0 0.0
        %1002 = vmatprep.subr.mxu0 0.0
        %1003 = vmatpush2.msra.mxu0 0.0
        %1004 = vmatprep.subr.mxu0 0.0
        %1005 = vmatpush2.msra.mxu0 0.0
        %1006 = vmatprep.subr.mxu0 0.0
        %1007 = vmatpush2.msra.mxu0 0.0
        %1008 = vmatprep.subr.mxu0 0.0
        %1009 = vmatpush2.msra.mxu0 0.0
        %1010 = vmatprep.subr.mxu0 0.0
        %1011 = vmatpush2.msra.mxu0 0.0
        %1012 = vmatprep.subr.mxu0 0.0
        %1013 = vmatpush2.msra.mxu0 0.0
        %1014 = vmatprep.subr.mxu0 0.0
        %1015 = vmatpush2.msra.mxu0 0.0
        %1016 = vmatprep.subr.mxu0 0.0
        %1017 = vmatpush2.msra.mxu0 0.0
        %1018 = vmatprep.subr.mxu0 0.0
        %1019 = vmatpush2.msra.mxu0 0.0
        %1020 = vmatprep.subr.mxu0 0.0
        %1021 = vmatpush2.msra.mxu0 0.0
        %1022 = vmatprep.subr.mxu0 0.0
        %1023 = vmatpush2.msra.mxu0 0.0
        %1024 = vmatprep.subr.mxu0 0.0
        %1025 = vmatpush2.msra.mxu0 0.0
        %1026 = vmatprep.mubr.f32.mxu0 0.0
        %v1027 = vand.u32 %v698, 4294901760
        %v1028 = vsub.f32 %v698, %v1027
        %v1029 = vand.u32 %v1028, 4294901760
        %1030 = vmatmul.mubr.f32.gmra.mxu0 %v1029
        %v1031 = vpop.f32.mrf.mxu0
        %v1032 = vadd.f32 %v950, %v1031
        %v1033 = vpop.f32.mrf.mxu0
        %1034 = vmatprep.mubr.f32.mxu0 0.0
        %v1035 = vand.u32 %v701, 4294901760
        %v1036 = vsub.f32 %v701, %v1035
        %v1037 = vand.u32 %v1036, 4294901760
        %1038 = vmatmul.mubr.f32.gmra.mxu0 %v1037
        %v1039 = vpop.f32.mrf.mxu0
        %v1040 = vadd.f32 %v957, %v1039
        %v1041 = vpop.f32.mrf.mxu0
        %1042 = vdwg.mxu0
        %1043 = vmatprep.subr.mxu0 0.0
        %1044 = vmatpush1.msra.mxu0 0.0
        %1045 = vmatprep.subr.mxu0 0.0
        %1046 = vmatpush1.msra.mxu0 0.0
        %1047 = vmatprep.subr.mxu0 0.0
        %1048 = vmatpush1.msra.mxu0 0.0
        %1049 = vmatprep.subr.mxu0 0.0
        %1050 = vmatpush1.msra.mxu0 0.0
        %1051 = vmatprep.subr.mxu0 0.0
        %1052 = vmatpush1.msra.mxu0 0.0
        %1053 = vmatprep.subr.mxu0 0.0
        %1054 = vmatpush1.msra.mxu0 0.0
        %1055 = vmatprep.subr.mxu0 0.0
        %1056 = vmatpush1.msra.mxu0 0.0
        %1057 = vmatprep.subr.mxu0 0.0
        %1058 = vmatpush1.msra.mxu0 0.0
        %1059 = vmatprep.subr.mxu0 0.0
        %1060 = vmatpush1.msra.mxu0 0.0
        %1061 = vmatprep.subr.mxu0 0.0
        %1062 = vmatpush1.msra.mxu0 0.0
        %1063 = vmatprep.subr.mxu0 0.0
        %1064 = vmatpush1.msra.mxu0 0.0
        %1065 = vmatprep.subr.mxu0 0.0
        %1066 = vmatpush1.msra.mxu0 0.0
        %1067 = vmatprep.subr.mxu0 0.0
        %1068 = vmatpush1.msra.mxu0 0.0
        %1069 = vmatprep.subr.mxu0 0.0
        %1070 = vmatpush1.msra.mxu0 0.0
        %1071 = vmatprep.subr.mxu0 0.0
        %v1072 = vand.u32 %v694, 4294901760
        %v1073 = vsub.f32 %v694, %v1072
        %v1074 = vand.u32 %v1073, 4294901760
        %1075 = vmatpush1.msra.mxu0 %v1074
        %1076 = vmatprep.subr.mxu0 0.0
        %v1077 = vand.u32 %v688, 4294901760
        %v1078 = vsub.f32 %v688, %v1077
        %v1079 = vand.u32 %v1078, 4294901760
        %1080 = vmatpush1.msra.mxu0 %v1079
        %1081 = vmatprep.subr.mxu0 0.0
        %1082 = vmatpush2.msra.mxu0 0.0
        %1083 = vmatprep.subr.mxu0 0.0
        %1084 = vmatpush2.msra.mxu0 0.0
        %1085 = vmatprep.subr.mxu0 0.0
        %1086 = vmatpush2.msra.mxu0 0.0
        %1087 = vmatprep.subr.mxu0 0.0
        %1088 = vmatpush2.msra.mxu0 0.0
        %1089 = vmatprep.subr.mxu0 0.0
        %1090 = vmatpush2.msra.mxu0 0.0
        %1091 = vmatprep.subr.mxu0 0.0
        %1092 = vmatpush2.msra.mxu0 0.0
        %1093 = vmatprep.subr.mxu0 0.0
        %1094 = vmatpush2.msra.mxu0 0.0
        %1095 = vmatprep.subr.mxu0 0.0
        %1096 = vmatpush2.msra.mxu0 0.0
        %1097 = vmatprep.subr.mxu0 0.0
        %1098 = vmatpush2.msra.mxu0 0.0
        %1099 = vmatprep.subr.mxu0 0.0
        %1100 = vmatpush2.msra.mxu0 0.0
        %1101 = vmatprep.subr.mxu0 0.0
        %1102 = vmatpush2.msra.mxu0 0.0
        %1103 = vmatprep.subr.mxu0 0.0
        %1104 = vmatpush2.msra.mxu0 0.0
        %1105 = vmatprep.subr.mxu0 0.0
        %1106 = vmatpush2.msra.mxu0 0.0
        %1107 = vmatprep.subr.mxu0 0.0
        %1108 = vmatpush2.msra.mxu0 0.0
        %1109 = vmatprep.subr.mxu0 0.0
        %1110 = vmatpush2.msra.mxu0 0.0
        %1111 = vmatprep.subr.mxu0 0.0
        %1112 = vmatpush2.msra.mxu0 0.0
        %1113 = vmatprep.mubr.f32.mxu0 0.0
        %v1114 = vand.u32 %v698, 4294901760
        %1115 = vmatmul.mubr.f32.gmra.mxu0 %v1114
        %v1116 = vpop.f32.mrf.mxu0
        %v1117 = vadd.f32 %v1032, %v1116
        %v1118 = vpop.f32.mrf.mxu0
        %1119 = vmatprep.mubr.f32.mxu0 0.0
        %v1120 = vand.u32 %v701, 4294901760
        %1121 = vmatmul.mubr.f32.gmra.mxu0 %v1120
        %v1122 = vpop.f32.mrf.mxu0
        %v1123 = vadd.f32 %v1040, %v1122
        %v1124 = vpop.f32.mrf.mxu0
        %1125 = vdwg.mxu0
        %1126 = vmatprep.subr.mxu0 0.0
        %1127 = vmatpush1.msra.mxu0 0.0
        %1128 = vmatprep.subr.mxu0 0.0
        %1129 = vmatpush1.msra.mxu0 0.0
        %1130 = vmatprep.subr.mxu0 0.0
        %1131 = vmatpush1.msra.mxu0 0.0
        %1132 = vmatprep.subr.mxu0 0.0
        %1133 = vmatpush1.msra.mxu0 0.0
        %1134 = vmatprep.subr.mxu0 0.0
        %1135 = vmatpush1.msra.mxu0 0.0
        %1136 = vmatprep.subr.mxu0 0.0
        %1137 = vmatpush1.msra.mxu0 0.0
        %1138 = vmatprep.subr.mxu0 0.0
        %1139 = vmatpush1.msra.mxu0 0.0
        %1140 = vmatprep.subr.mxu0 0.0
        %1141 = vmatpush1.msra.mxu0 0.0
        %1142 = vmatprep.subr.mxu0 0.0
        %1143 = vmatpush1.msra.mxu0 0.0
        %1144 = vmatprep.subr.mxu0 0.0
        %1145 = vmatpush1.msra.mxu0 0.0
        %1146 = vmatprep.subr.mxu0 0.0
        %1147 = vmatpush1.msra.mxu0 0.0
        %1148 = vmatprep.subr.mxu0 0.0
        %1149 = vmatpush1.msra.mxu0 0.0
        %1150 = vmatprep.subr.mxu0 0.0
        %1151 = vmatpush1.msra.mxu0 0.0
        %1152 = vmatprep.subr.mxu0 0.0
        %1153 = vmatpush1.msra.mxu0 0.0
        %1154 = vmatprep.subr.mxu0 0.0
        %v1155 = vand.u32 %v694, 4294901760
        %1156 = vmatpush1.msra.mxu0 %v1155
        %1157 = vmatprep.subr.mxu0 0.0
        %v1158 = vand.u32 %v688, 4294901760
        %1159 = vmatpush1.msra.mxu0 %v1158
        %1160 = vmatprep.subr.mxu0 0.0
        %1161 = vmatpush2.msra.mxu0 0.0
        %1162 = vmatprep.subr.mxu0 0.0
        %1163 = vmatpush2.msra.mxu0 0.0
        %1164 = vmatprep.subr.mxu0 0.0
        %1165 = vmatpush2.msra.mxu0 0.0
        %1166 = vmatprep.subr.mxu0 0.0
        %1167 = vmatpush2.msra.mxu0 0.0
        %1168 = vmatprep.subr.mxu0 0.0
        %1169 = vmatpush2.msra.mxu0 0.0
        %1170 = vmatprep.subr.mxu0 0.0
        %1171 = vmatpush2.msra.mxu0 0.0
        %1172 = vmatprep.subr.mxu0 0.0
        %1173 = vmatpush2.msra.mxu0 0.0
        %1174 = vmatprep.subr.mxu0 0.0
        %1175 = vmatpush2.msra.mxu0 0.0
        %1176 = vmatprep.subr.mxu0 0.0
        %1177 = vmatpush2.msra.mxu0 0.0
        %1178 = vmatprep.subr.mxu0 0.0
        %1179 = vmatpush2.msra.mxu0 0.0
        %1180 = vmatprep.subr.mxu0 0.0
        %1181 = vmatpush2.msra.mxu0 0.0
        %1182 = vmatprep.subr.mxu0 0.0
        %1183 = vmatpush2.msra.mxu0 0.0
        %1184 = vmatprep.subr.mxu0 0.0
        %1185 = vmatpush2.msra.mxu0 0.0
        %1186 = vmatprep.subr.mxu0 0.0
        %1187 = vmatpush2.msra.mxu0 0.0
        %1188 = vmatprep.subr.mxu0 0.0
        %1189 = vmatpush2.msra.mxu0 0.0
        %1190 = vmatprep.subr.mxu0 0.0
        %1191 = vmatpush2.msra.mxu0 0.0
        %1192 = vmatprep.mubr.f32.mxu0 0.0
        %v1193 = vand.u32 %v698, 4294901760
        %1194 = vmatmul.mubr.f32.gmra.mxu0 %v1193
        %v1195 = vpop.f32.mrf.mxu0
        %v1196 = vadd.f32 %v1117, %v1195
        %v1197 = vpop.f32.mrf.mxu0
        %1198 = vmatprep.mubr.f32.mxu0 0.0
        %v1199 = vand.u32 %v701, 4294901760
        %1200 = vmatmul.mubr.f32.gmra.mxu0 %v1199
        %v1201 = vpop.f32.mrf.mxu0
        %v1202 = vadd.f32 %v1123, %v1201
        %v1203 = vpop.f32.mrf.mxu0
        %1204 = vdwg.mxu0
        %1205 = vst.msk [vmem:[%s139] sm:$0xff] %vm188, %v1196
        %1206 = vst.msk [vmem:[%s139 + $0x8] sm:$0xff] %vm188, %v1202
        %s1207 = scalar_lea.vmem %s121, 16 [#allocation4]
        %v1208 = vld [vmem:[%s1207] sm:$0xff]
        %v1209 = vld [vmem:[%s1207 + $0x8] sm:$0xff]
        %v1211 = vsel %vm188, %v1208, 0
        %v1214 = vsel %vm188, %v1209, 0
        %1216 = vmatprep.subr.mxu0 0.0
        %1217 = vmatpush1.msra.mxu0 0.0
        %1218 = vmatprep.subr.mxu0 0.0
        %1219 = vmatpush1.msra.mxu0 0.0
        %1220 = vmatprep.subr.mxu0 0.0
        %1221 = vmatpush1.msra.mxu0 0.0
        %1222 = vmatprep.subr.mxu0 0.0
        %1223 = vmatpush1.msra.mxu0 0.0
        %1224 = vmatprep.subr.mxu0 0.0
        %1225 = vmatpush1.msra.mxu0 0.0
        %1226 = vmatprep.subr.mxu0 0.0
        %1227 = vmatpush1.msra.mxu0 0.0
        %1228 = vmatprep.subr.mxu0 0.0
        %1229 = vmatpush1.msra.mxu0 0.0
        %1230 = vmatprep.subr.mxu0 0.0
        %1231 = vmatpush1.msra.mxu0 0.0
        %1232 = vmatprep.subr.mxu0 0.0
        %1233 = vmatpush1.msra.mxu0 0.0
        %1234 = vmatprep.subr.mxu0 0.0
        %1235 = vmatpush1.msra.mxu0 0.0
        %1236 = vmatprep.subr.mxu0 0.0
        %1237 = vmatpush1.msra.mxu0 0.0
        %1238 = vmatprep.subr.mxu0 0.0
        %1239 = vmatpush1.msra.mxu0 0.0
        %1240 = vmatprep.subr.mxu0 0.0
        %1241 = vmatpush1.msra.mxu0 0.0
        %1242 = vmatprep.subr.mxu0 0.0
        %1243 = vmatpush1.msra.mxu0 0.0
        %1244 = vmatprep.subr.mxu0 0.0
        %v1245 = vand.u32 %v166, 4294901760
        %1246 = vmatpush1.msra.mxu0 %v1245
        %1247 = vmatprep.subr.mxu0 0.0
        %v1248 = vand.u32 %v165, 4294901760
        %1249 = vmatpush1.msra.mxu0 %v1248
        %1250 = vmatprep.subr.mxu0 0.0
        %1251 = vmatpush2.msra.mxu0 0.0
        %1252 = vmatprep.subr.mxu0 0.0
        %1253 = vmatpush2.msra.mxu0 0.0
        %1254 = vmatprep.subr.mxu0 0.0
        %1255 = vmatpush2.msra.mxu0 0.0
        %1256 = vmatprep.subr.mxu0 0.0
        %1257 = vmatpush2.msra.mxu0 0.0
        %1258 = vmatprep.subr.mxu0 0.0
        %1259 = vmatpush2.msra.mxu0 0.0
        %1260 = vmatprep.subr.mxu0 0.0
        %1261 = vmatpush2.msra.mxu0 0.0
        %1262 = vmatprep.subr.mxu0 0.0
        %1263 = vmatpush2.msra.mxu0 0.0
        %1264 = vmatprep.subr.mxu0 0.0
        %1265 = vmatpush2.msra.mxu0 0.0
        %1266 = vmatprep.subr.mxu0 0.0
        %1267 = vmatpush2.msra.mxu0 0.0
        %1268 = vmatprep.subr.mxu0 0.0
        %1269 = vmatpush2.msra.mxu0 0.0
        %1270 = vmatprep.subr.mxu0 0.0
        %1271 = vmatpush2.msra.mxu0 0.0
        %1272 = vmatprep.subr.mxu0 0.0
        %1273 = vmatpush2.msra.mxu0 0.0
        %1274 = vmatprep.subr.mxu0 0.0
        %1275 = vmatpush2.msra.mxu0 0.0
        %1276 = vmatprep.subr.mxu0 0.0
        %1277 = vmatpush2.msra.mxu0 0.0
        %1278 = vmatprep.subr.mxu0 0.0
        %1279 = vmatpush2.msra.mxu0 0.0
        %1280 = vmatprep.subr.mxu0 0.0
        %1281 = vmatpush2.msra.mxu0 0.0
        %1282 = vmatprep.mubr.f32.mxu0 0.0
        %v1283 = vand.u32 %v1211, 4294901760
        %v1284 = vsub.f32 %v1211, %v1283
        %v1285 = vand.u32 %v1284, 4294901760
        %v1286 = vsub.f32 %v1284, %v1285
        %v1287 = vand.u32 %v1286, 4294901760
        %1288 = vmatmul.mubr.f32.gmra.mxu0 %v1287
        %v1289 = vpop.f32.mrf.mxu0
        %v1290 = vadd.f32 0.0, %v1289
        %v1291 = vpop.f32.mrf.mxu0
        %1292 = vmatprep.mubr.f32.mxu0 0.0
        %v1293 = vand.u32 %v1214, 4294901760
        %v1294 = vsub.f32 %v1214, %v1293
        %v1295 = vand.u32 %v1294, 4294901760
        %v1296 = vsub.f32 %v1294, %v1295
        %v1297 = vand.u32 %v1296, 4294901760
        %1298 = vmatmul.mubr.f32.gmra.mxu0 %v1297
        %v1299 = vpop.f32.mrf.mxu0
        %v1300 = vadd.f32 0.0, %v1299
        %v1301 = vpop.f32.mrf.mxu0
        %1302 = vdwg.mxu0
        %1303 = vmatprep.subr.mxu0 0.0
        %1304 = vmatpush1.msra.mxu0 0.0
        %1305 = vmatprep.subr.mxu0 0.0
        %1306 = vmatpush1.msra.mxu0 0.0
        %1307 = vmatprep.subr.mxu0 0.0
        %1308 = vmatpush1.msra.mxu0 0.0
        %1309 = vmatprep.subr.mxu0 0.0
        %1310 = vmatpush1.msra.mxu0 0.0
        %1311 = vmatprep.subr.mxu0 0.0
        %1312 = vmatpush1.msra.mxu0 0.0
        %1313 = vmatprep.subr.mxu0 0.0
        %1314 = vmatpush1.msra.mxu0 0.0
        %1315 = vmatprep.subr.mxu0 0.0
        %1316 = vmatpush1.msra.mxu0 0.0
        %1317 = vmatprep.subr.mxu0 0.0
        %1318 = vmatpush1.msra.mxu0 0.0
        %1319 = vmatprep.subr.mxu0 0.0
        %1320 = vmatpush1.msra.mxu0 0.0
        %1321 = vmatprep.subr.mxu0 0.0
        %1322 = vmatpush1.msra.mxu0 0.0
        %1323 = vmatprep.subr.mxu0 0.0
        %1324 = vmatpush1.msra.mxu0 0.0
        %1325 = vmatprep.subr.mxu0 0.0
        %1326 = vmatpush1.msra.mxu0 0.0
        %1327 = vmatprep.subr.mxu0 0.0
        %1328 = vmatpush1.msra.mxu0 0.0
        %1329 = vmatprep.subr.mxu0 0.0
        %1330 = vmatpush1.msra.mxu0 0.0
        %1331 = vmatprep.subr.mxu0 0.0
        %v1332 = vand.u32 %v166, 4294901760
        %v1333 = vsub.f32 %v166, %v1332
        %v1334 = vand.u32 %v1333, 4294901760
        %v1335 = vsub.f32 %v1333, %v1334
        %v1336 = vand.u32 %v1335, 4294901760
        %1337 = vmatpush1.msra.mxu0 %v1336
        %1338 = vmatprep.subr.mxu0 0.0
        %v1339 = vand.u32 %v165, 4294901760
        %v1340 = vsub.f32 %v165, %v1339
        %v1341 = vand.u32 %v1340, 4294901760
        %v1342 = vsub.f32 %v1340, %v1341
        %v1343 = vand.u32 %v1342, 4294901760
        %1344 = vmatpush1.msra.mxu0 %v1343
        %1345 = vmatprep.subr.mxu0 0.0
        %1346 = vmatpush2.msra.mxu0 0.0
        %1347 = vmatprep.subr.mxu0 0.0
        %1348 = vmatpush2.msra.mxu0 0.0
        %1349 = vmatprep.subr.mxu0 0.0
        %1350 = vmatpush2.msra.mxu0 0.0
        %1351 = vmatprep.subr.mxu0 0.0
        %1352 = vmatpush2.msra.mxu0 0.0
        %1353 = vmatprep.subr.mxu0 0.0
        %1354 = vmatpush2.msra.mxu0 0.0
        %1355 = vmatprep.subr.mxu0 0.0
        %1356 = vmatpush2.msra.mxu0 0.0
        %1357 = vmatprep.subr.mxu0 0.0
        %1358 = vmatpush2.msra.mxu0 0.0
        %1359 = vmatprep.subr.mxu0 0.0
        %1360 = vmatpush2.msra.mxu0 0.0
        %1361 = vmatprep.subr.mxu0 0.0
        %1362 = vmatpush2.msra.mxu0 0.0
        %1363 = vmatprep.subr.mxu0 0.0
        %1364 = vmatpush2.msra.mxu0 0.0
        %1365 = vmatprep.subr.mxu0 0.0
        %1366 = vmatpush2.msra.mxu0 0.0
        %1367 = vmatprep.subr.mxu0 0.0
        %1368 = vmatpush2.msra.mxu0 0.0
        %1369 = vmatprep.subr.mxu0 0.0
        %1370 = vmatpush2.msra.mxu0 0.0
        %1371 = vmatprep.subr.mxu0 0.0
        %1372 = vmatpush2.msra.mxu0 0.0
        %1373 = vmatprep.subr.mxu0 0.0
        %1374 = vmatpush2.msra.mxu0 0.0
        %1375 = vmatprep.subr.mxu0 0.0
        %1376 = vmatpush2.msra.mxu0 0.0
        %1377 = vmatprep.mubr.f32.mxu0 0.0
        %v1378 = vand.u32 %v1211, 4294901760
        %1379 = vmatmul.mubr.f32.gmra.mxu0 %v1378
        %v1380 = vpop.f32.mrf.mxu0
        %v1381 = vadd.f32 %v1290, %v1380
        %v1382 = vpop.f32.mrf.mxu0
        %1383 = vmatprep.mubr.f32.mxu0 0.0
        %v1384 = vand.u32 %v1214, 4294901760
        %1385 = vmatmul.mubr.f32.gmra.mxu0 %v1384
        %v1386 = vpop.f32.mrf.mxu0
        %v1387 = vadd.f32 %v1300, %v1386
        %v1388 = vpop.f32.mrf.mxu0
        %1389 = vdwg.mxu0
        %1390 = vmatprep.subr.mxu0 0.0
        %1391 = vmatpush1.msra.mxu0 0.0
        %1392 = vmatprep.subr.mxu0 0.0
        %1393 = vmatpush1.msra.mxu0 0.0
        %1394 = vmatprep.subr.mxu0 0.0
        %1395 = vmatpush1.msra.mxu0 0.0
        %1396 = vmatprep.subr.mxu0 0.0
        %1397 = vmatpush1.msra.mxu0 0.0
        %1398 = vmatprep.subr.mxu0 0.0
        %1399 = vmatpush1.msra.mxu0 0.0
        %1400 = vmatprep.subr.mxu0 0.0
        %1401 = vmatpush1.msra.mxu0 0.0
        %1402 = vmatprep.subr.mxu0 0.0
        %1403 = vmatpush1.msra.mxu0 0.0
        %1404 = vmatprep.subr.mxu0 0.0
        %1405 = vmatpush1.msra.mxu0 0.0
        %1406 = vmatprep.subr.mxu0 0.0
        %1407 = vmatpush1.msra.mxu0 0.0
        %1408 = vmatprep.subr.mxu0 0.0
        %1409 = vmatpush1.msra.mxu0 0.0
        %1410 = vmatprep.subr.mxu0 0.0
        %1411 = vmatpush1.msra.mxu0 0.0
        %1412 = vmatprep.subr.mxu0 0.0
        %1413 = vmatpush1.msra.mxu0 0.0
        %1414 = vmatprep.subr.mxu0 0.0
        %1415 = vmatpush1.msra.mxu0 0.0
        %1416 = vmatprep.subr.mxu0 0.0
        %1417 = vmatpush1.msra.mxu0 0.0
        %1418 = vmatprep.subr.mxu0 0.0
        %v1419 = vand.u32 %v166, 4294901760
        %v1420 = vsub.f32 %v166, %v1419
        %1421 = vmatpush1.msra.mxu0 %v1420
        %1422 = vmatprep.subr.mxu0 0.0
        %v1423 = vand.u32 %v165, 4294901760
        %v1424 = vsub.f32 %v165, %v1423
        %1425 = vmatpush1.msra.mxu0 %v1424
        %1426 = vmatprep.subr.mxu0 0.0
        %1427 = vmatpush2.msra.mxu0 0.0
        %1428 = vmatprep.subr.mxu0 0.0
        %1429 = vmatpush2.msra.mxu0 0.0
        %1430 = vmatprep.subr.mxu0 0.0
        %1431 = vmatpush2.msra.mxu0 0.0
        %1432 = vmatprep.subr.mxu0 0.0
        %1433 = vmatpush2.msra.mxu0 0.0
        %1434 = vmatprep.subr.mxu0 0.0
        %1435 = vmatpush2.msra.mxu0 0.0
        %1436 = vmatprep.subr.mxu0 0.0
        %1437 = vmatpush2.msra.mxu0 0.0
        %1438 = vmatprep.subr.mxu0 0.0
        %1439 = vmatpush2.msra.mxu0 0.0
        %1440 = vmatprep.subr.mxu0 0.0
        %1441 = vmatpush2.msra.mxu0 0.0
        %1442 = vmatprep.subr.mxu0 0.0
        %1443 = vmatpush2.msra.mxu0 0.0
        %1444 = vmatprep.subr.mxu0 0.0
        %1445 = vmatpush2.msra.mxu0 0.0
        %1446 = vmatprep.subr.mxu0 0.0
        %1447 = vmatpush2.msra.mxu0 0.0
        %1448 = vmatprep.subr.mxu0 0.0
        %1449 = vmatpush2.msra.mxu0 0.0
        %1450 = vmatprep.subr.mxu0 0.0
        %1451 = vmatpush2.msra.mxu0 0.0
        %1452 = vmatprep.subr.mxu0 0.0
        %1453 = vmatpush2.msra.mxu0 0.0
        %1454 = vmatprep.subr.mxu0 0.0
        %1455 = vmatpush2.msra.mxu0 0.0
        %1456 = vmatprep.subr.mxu0 0.0
        %1457 = vmatpush2.msra.mxu0 0.0
        %1458 = vmatprep.mubr.f32.mxu0 0.0
        %v1459 = vand.u32 %v1211, 4294901760
        %v1460 = vsub.f32 %v1211, %v1459
        %1461 = vmatmul.mubr.f32.gmra.mxu0 %v1460
        %v1462 = vpop.f32.mrf.mxu0
        %v1463 = vadd.f32 %v1381, %v1462
        %v1464 = vpop.f32.mrf.mxu0
        %1465 = vmatprep.mubr.f32.mxu0 0.0
        %v1466 = vand.u32 %v1214, 4294901760
        %v1467 = vsub.f32 %v1214, %v1466
        %1468 = vmatmul.mubr.f32.gmra.mxu0 %v1467
        %v1469 = vpop.f32.mrf.mxu0
        %v1470 = vadd.f32 %v1387, %v1469
        %v1471 = vpop.f32.mrf.mxu0
        %1472 = vdwg.mxu0
        %1473 = vmatprep.subr.mxu0 0.0
        %1474 = vmatpush1.msra.mxu0 0.0
        %1475 = vmatprep.subr.mxu0 0.0
        %1476 = vmatpush1.msra.mxu0 0.0
        %1477 = vmatprep.subr.mxu0 0.0
        %1478 = vmatpush1.msra.mxu0 0.0
        %1479 = vmatprep.subr.mxu0 0.0
        %1480 = vmatpush1.msra.mxu0 0.0
        %1481 = vmatprep.subr.mxu0 0.0
        %1482 = vmatpush1.msra.mxu0 0.0
        %1483 = vmatprep.subr.mxu0 0.0
        %1484 = vmatpush1.msra.mxu0 0.0
        %1485 = vmatprep.subr.mxu0 0.0
        %1486 = vmatpush1.msra.mxu0 0.0
        %1487 = vmatprep.subr.mxu0 0.0
        %1488 = vmatpush1.msra.mxu0 0.0
        %1489 = vmatprep.subr.mxu0 0.0
        %1490 = vmatpush1.msra.mxu0 0.0
        %1491 = vmatprep.subr.mxu0 0.0
        %1492 = vmatpush1.msra.mxu0 0.0
        %1493 = vmatprep.subr.mxu0 0.0
        %1494 = vmatpush1.msra.mxu0 0.0
        %1495 = vmatprep.subr.mxu0 0.0
        %1496 = vmatpush1.msra.mxu0 0.0
        %1497 = vmatprep.subr.mxu0 0.0
        %1498 = vmatpush1.msra.mxu0 0.0
        %1499 = vmatprep.subr.mxu0 0.0
        %1500 = vmatpush1.msra.mxu0 0.0
        %1501 = vmatprep.subr.mxu0 0.0
        %v1502 = vand.u32 %v166, 4294901760
        %1503 = vmatpush1.msra.mxu0 %v1502
        %1504 = vmatprep.subr.mxu0 0.0
        %v1505 = vand.u32 %v165, 4294901760
        %1506 = vmatpush1.msra.mxu0 %v1505
        %1507 = vmatprep.subr.mxu0 0.0
        %1508 = vmatpush2.msra.mxu0 0.0
        %1509 = vmatprep.subr.mxu0 0.0
        %1510 = vmatpush2.msra.mxu0 0.0
        %1511 = vmatprep.subr.mxu0 0.0
        %1512 = vmatpush2.msra.mxu0 0.0
        %1513 = vmatprep.subr.mxu0 0.0
        %1514 = vmatpush2.msra.mxu0 0.0
        %1515 = vmatprep.subr.mxu0 0.0
        %1516 = vmatpush2.msra.mxu0 0.0
        %1517 = vmatprep.subr.mxu0 0.0
        %1518 = vmatpush2.msra.mxu0 0.0
        %1519 = vmatprep.subr.mxu0 0.0
        %1520 = vmatpush2.msra.mxu0 0.0
        %1521 = vmatprep.subr.mxu0 0.0
        %1522 = vmatpush2.msra.mxu0 0.0
        %1523 = vmatprep.subr.mxu0 0.0
        %1524 = vmatpush2.msra.mxu0 0.0
        %1525 = vmatprep.subr.mxu0 0.0
        %1526 = vmatpush2.msra.mxu0 0.0
        %1527 = vmatprep.subr.mxu0 0.0
        %1528 = vmatpush2.msra.mxu0 0.0
        %1529 = vmatprep.subr.mxu0 0.0
        %1530 = vmatpush2.msra.mxu0 0.0
        %1531 = vmatprep.subr.mxu0 0.0
        %1532 = vmatpush2.msra.mxu0 0.0
        %1533 = vmatprep.subr.mxu0 0.0
        %1534 = vmatpush2.msra.mxu0 0.0
        %1535 = vmatprep.subr.mxu0 0.0
        %1536 = vmatpush2.msra.mxu0 0.0
        %1537 = vmatprep.subr.mxu0 0.0
        %1538 = vmatpush2.msra.mxu0 0.0
        %1539 = vmatprep.mubr.f32.mxu0 0.0
        %v1540 = vand.u32 %v1211, 4294901760
        %v1541 = vsub.f32 %v1211, %v1540
        %v1542 = vand.u32 %v1541, 4294901760
        %1543 = vmatmul.mubr.f32.gmra.mxu0 %v1542
        %v1544 = vpop.f32.mrf.mxu0
        %v1545 = vadd.f32 %v1463, %v1544
        %v1546 = vpop.f32.mrf.mxu0
        %1547 = vmatprep.mubr.f32.mxu0 0.0
        %v1548 = vand.u32 %v1214, 4294901760
        %v1549 = vsub.f32 %v1214, %v1548
        %v1550 = vand.u32 %v1549, 4294901760
        %1551 = vmatmul.mubr.f32.gmra.mxu0 %v1550
        %v1552 = vpop.f32.mrf.mxu0
        %v1553 = vadd.f32 %v1470, %v1552
        %v1554 = vpop.f32.mrf.mxu0
        %1555 = vdwg.mxu0
        %1556 = vmatprep.subr.mxu0 0.0
        %1557 = vmatpush1.msra.mxu0 0.0
        %1558 = vmatprep.subr.mxu0 0.0
        %1559 = vmatpush1.msra.mxu0 0.0
        %1560 = vmatprep.subr.mxu0 0.0
        %1561 = vmatpush1.msra.mxu0 0.0
        %1562 = vmatprep.subr.mxu0 0.0
        %1563 = vmatpush1.msra.mxu0 0.0
        %1564 = vmatprep.subr.mxu0 0.0
        %1565 = vmatpush1.msra.mxu0 0.0
        %1566 = vmatprep.subr.mxu0 0.0
        %1567 = vmatpush1.msra.mxu0 0.0
        %1568 = vmatprep.subr.mxu0 0.0
        %1569 = vmatpush1.msra.mxu0 0.0
        %1570 = vmatprep.subr.mxu0 0.0
        %1571 = vmatpush1.msra.mxu0 0.0
        %1572 = vmatprep.subr.mxu0 0.0
        %1573 = vmatpush1.msra.mxu0 0.0
        %1574 = vmatprep.subr.mxu0 0.0
        %1575 = vmatpush1.msra.mxu0 0.0
        %1576 = vmatprep.subr.mxu0 0.0
        %1577 = vmatpush1.msra.mxu0 0.0
        %1578 = vmatprep.subr.mxu0 0.0
        %1579 = vmatpush1.msra.mxu0 0.0
        %1580 = vmatprep.subr.mxu0 0.0
        %1581 = vmatpush1.msra.mxu0 0.0
        %1582 = vmatprep.subr.mxu0 0.0
        %1583 = vmatpush1.msra.mxu0 0.0
        %1584 = vmatprep.subr.mxu0 0.0
        %v1585 = vand.u32 %v166, 4294901760
        %v1586 = vsub.f32 %v166, %v1585
        %v1587 = vand.u32 %v1586, 4294901760
        %1588 = vmatpush1.msra.mxu0 %v1587
        %1589 = vmatprep.subr.mxu0 0.0
        %v1590 = vand.u32 %v165, 4294901760
        %v1591 = vsub.f32 %v165, %v1590
        %v1592 = vand.u32 %v1591, 4294901760
        %1593 = vmatpush1.msra.mxu0 %v1592
        %1594 = vmatprep.subr.mxu0 0.0
        %1595 = vmatpush2.msra.mxu0 0.0
        %1596 = vmatprep.subr.mxu0 0.0
        %1597 = vmatpush2.msra.mxu0 0.0
        %1598 = vmatprep.subr.mxu0 0.0
        %1599 = vmatpush2.msra.mxu0 0.0
        %1600 = vmatprep.subr.mxu0 0.0
        %1601 = vmatpush2.msra.mxu0 0.0
        %1602 = vmatprep.subr.mxu0 0.0
        %1603 = vmatpush2.msra.mxu0 0.0
        %1604 = vmatprep.subr.mxu0 0.0
        %1605 = vmatpush2.msra.mxu0 0.0
        %1606 = vmatprep.subr.mxu0 0.0
        %1607 = vmatpush2.msra.mxu0 0.0
        %1608 = vmatprep.subr.mxu0 0.0
        %1609 = vmatpush2.msra.mxu0 0.0
        %1610 = vmatprep.subr.mxu0 0.0
        %1611 = vmatpush2.msra.mxu0 0.0
        %1612 = vmatprep.subr.mxu0 0.0
        %1613 = vmatpush2.msra.mxu0 0.0
        %1614 = vmatprep.subr.mxu0 0.0
        %1615 = vmatpush2.msra.mxu0 0.0
        %1616 = vmatprep.subr.mxu0 0.0
        %1617 = vmatpush2.msra.mxu0 0.0
        %1618 = vmatprep.subr.mxu0 0.0
        %1619 = vmatpush2.msra.mxu0 0.0
        %1620 = vmatprep.subr.mxu0 0.0
        %1621 = vmatpush2.msra.mxu0 0.0
        %1622 = vmatprep.subr.mxu0 0.0
        %1623 = vmatpush2.msra.mxu0 0.0
        %1624 = vmatprep.subr.mxu0 0.0
        %1625 = vmatpush2.msra.mxu0 0.0
        %1626 = vmatprep.mubr.f32.mxu0 0.0
        %v1627 = vand.u32 %v1211, 4294901760
        %1628 = vmatmul.mubr.f32.gmra.mxu0 %v1627
        %v1629 = vpop.f32.mrf.mxu0
        %v1630 = vadd.f32 %v1545, %v1629
        %v1631 = vpop.f32.mrf.mxu0
        %1632 = vmatprep.mubr.f32.mxu0 0.0
        %v1633 = vand.u32 %v1214, 4294901760
        %1634 = vmatmul.mubr.f32.gmra.mxu0 %v1633
        %v1635 = vpop.f32.mrf.mxu0
        %v1636 = vadd.f32 %v1553, %v1635
        %v1637 = vpop.f32.mrf.mxu0
        %1638 = vdwg.mxu0
        %1639 = vmatprep.subr.mxu0 0.0
        %1640 = vmatpush1.msra.mxu0 0.0
        %1641 = vmatprep.subr.mxu0 0.0
        %1642 = vmatpush1.msra.mxu0 0.0
        %1643 = vmatprep.subr.mxu0 0.0
        %1644 = vmatpush1.msra.mxu0 0.0
        %1645 = vmatprep.subr.mxu0 0.0
        %1646 = vmatpush1.msra.mxu0 0.0
        %1647 = vmatprep.subr.mxu0 0.0
        %1648 = vmatpush1.msra.mxu0 0.0
        %1649 = vmatprep.subr.mxu0 0.0
        %1650 = vmatpush1.msra.mxu0 0.0
        %1651 = vmatprep.subr.mxu0 0.0
        %1652 = vmatpush1.msra.mxu0 0.0
        %1653 = vmatprep.subr.mxu0 0.0
        %1654 = vmatpush1.msra.mxu0 0.0
        %1655 = vmatprep.subr.mxu0 0.0
        %1656 = vmatpush1.msra.mxu0 0.0
        %1657 = vmatprep.subr.mxu0 0.0
        %1658 = vmatpush1.msra.mxu0 0.0
        %1659 = vmatprep.subr.mxu0 0.0
        %1660 = vmatpush1.msra.mxu0 0.0
        %1661 = vmatprep.subr.mxu0 0.0
        %1662 = vmatpush1.msra.mxu0 0.0
        %1663 = vmatprep.subr.mxu0 0.0
        %1664 = vmatpush1.msra.mxu0 0.0
        %1665 = vmatprep.subr.mxu0 0.0
        %1666 = vmatpush1.msra.mxu0 0.0
        %1667 = vmatprep.subr.mxu0 0.0
        %v1668 = vand.u32 %v166, 4294901760
        %1669 = vmatpush1.msra.mxu0 %v1668
        %1670 = vmatprep.subr.mxu0 0.0
        %v1671 = vand.u32 %v165, 4294901760
        %1672 = vmatpush1.msra.mxu0 %v1671
        %1673 = vmatprep.subr.mxu0 0.0
        %1674 = vmatpush2.msra.mxu0 0.0
        %1675 = vmatprep.subr.mxu0 0.0
        %1676 = vmatpush2.msra.mxu0 0.0
        %1677 = vmatprep.subr.mxu0 0.0
        %1678 = vmatpush2.msra.mxu0 0.0
        %1679 = vmatprep.subr.mxu0 0.0
        %1680 = vmatpush2.msra.mxu0 0.0
        %1681 = vmatprep.subr.mxu0 0.0
        %1682 = vmatpush2.msra.mxu0 0.0
        %1683 = vmatprep.subr.mxu0 0.0
        %1684 = vmatpush2.msra.mxu0 0.0
        %1685 = vmatprep.subr.mxu0 0.0
        %1686 = vmatpush2.msra.mxu0 0.0
        %1687 = vmatprep.subr.mxu0 0.0
        %1688 = vmatpush2.msra.mxu0 0.0
        %1689 = vmatprep.subr.mxu0 0.0
        %1690 = vmatpush2.msra.mxu0 0.0
        %1691 = vmatprep.subr.mxu0 0.0
        %1692 = vmatpush2.msra.mxu0 0.0
        %1693 = vmatprep.subr.mxu0 0.0
        %1694 = vmatpush2.msra.mxu0 0.0
        %1695 = vmatprep.subr.mxu0 0.0
        %1696 = vmatpush2.msra.mxu0 0.0
        %1697 = vmatprep.subr.mxu0 0.0
        %1698 = vmatpush2.msra.mxu0 0.0
        %1699 = vmatprep.subr.mxu0 0.0
        %1700 = vmatpush2.msra.mxu0 0.0
        %1701 = vmatprep.subr.mxu0 0.0
        %1702 = vmatpush2.msra.mxu0 0.0
        %1703 = vmatprep.subr.mxu0 0.0
        %1704 = vmatpush2.msra.mxu0 0.0
        %1705 = vmatprep.mubr.f32.mxu0 0.0
        %v1706 = vand.u32 %v1211, 4294901760
        %1707 = vmatmul.mubr.f32.gmra.mxu0 %v1706
        %v1708 = vpop.f32.mrf.mxu0
        %v1709 = vadd.f32 %v1630, %v1708
        %v1710 = vpop.f32.mrf.mxu0
        %1711 = vmatprep.mubr.f32.mxu0 0.0
        %v1712 = vand.u32 %v1214, 4294901760
        %1713 = vmatmul.mubr.f32.gmra.mxu0 %v1712
        %v1714 = vpop.f32.mrf.mxu0
        %v1715 = vadd.f32 %v1636, %v1714
        %v1716 = vpop.f32.mrf.mxu0
        %1717 = vdwg.mxu0
        %1718 = vmatprep.subr.mxu0 0.0
        %1719 = vmatpush1.msra.mxu0 0.0
        %1720 = vmatprep.subr.mxu0 0.0
        %1721 = vmatpush1.msra.mxu0 0.0
        %1722 = vmatprep.subr.mxu0 0.0
        %1723 = vmatpush1.msra.mxu0 0.0
        %1724 = vmatprep.subr.mxu0 0.0
        %1725 = vmatpush1.msra.mxu0 0.0
        %1726 = vmatprep.subr.mxu0 0.0
        %1727 = vmatpush1.msra.mxu0 0.0
        %1728 = vmatprep.subr.mxu0 0.0
        %1729 = vmatpush1.msra.mxu0 0.0
        %1730 = vmatprep.subr.mxu0 0.0
        %1731 = vmatpush1.msra.mxu0 0.0
        %1732 = vmatprep.subr.mxu0 0.0
        %1733 = vmatpush1.msra.mxu0 0.0
        %1734 = vmatprep.subr.mxu0 0.0
        %1735 = vmatpush1.msra.mxu0 0.0
        %1736 = vmatprep.subr.mxu0 0.0
        %1737 = vmatpush1.msra.mxu0 0.0
        %1738 = vmatprep.subr.mxu0 0.0
        %1739 = vmatpush1.msra.mxu0 0.0
        %1740 = vmatprep.subr.mxu0 0.0
        %1741 = vmatpush1.msra.mxu0 0.0
        %1742 = vmatprep.subr.mxu0 0.0
        %1743 = vmatpush1.msra.mxu0 0.0
        %1744 = vmatprep.subr.mxu0 0.0
        %1745 = vmatpush1.msra.mxu0 0.0
        %1746 = vmatprep.subr.mxu0 0.0
        %v1747 = vand.u32 %v1715, 4294901760
        %1748 = vmatpush1.msra.mxu0 %v1747
        %1749 = vmatprep.subr.mxu0 0.0
        %v1750 = vand.u32 %v1709, 4294901760
        %1751 = vmatpush1.msra.mxu0 %v1750
        %1752 = vmatprep.subr.mxu0 0.0
        %1753 = vmatpush2.msra.mxu0 0.0
        %1754 = vmatprep.subr.mxu0 0.0
        %1755 = vmatpush2.msra.mxu0 0.0
        %1756 = vmatprep.subr.mxu0 0.0
        %1757 = vmatpush2.msra.mxu0 0.0
        %1758 = vmatprep.subr.mxu0 0.0
        %1759 = vmatpush2.msra.mxu0 0.0
        %1760 = vmatprep.subr.mxu0 0.0
        %1761 = vmatpush2.msra.mxu0 0.0
        %1762 = vmatprep.subr.mxu0 0.0
        %1763 = vmatpush2.msra.mxu0 0.0
        %1764 = vmatprep.subr.mxu0 0.0
        %1765 = vmatpush2.msra.mxu0 0.0
        %1766 = vmatprep.subr.mxu0 0.0
        %1767 = vmatpush2.msra.mxu0 0.0
        %1768 = vmatprep.subr.mxu0 0.0
        %1769 = vmatpush2.msra.mxu0 0.0
        %1770 = vmatprep.subr.mxu0 0.0
        %1771 = vmatpush2.msra.mxu0 0.0
        %1772 = vmatprep.subr.mxu0 0.0
        %1773 = vmatpush2.msra.mxu0 0.0
        %1774 = vmatprep.subr.mxu0 0.0
        %1775 = vmatpush2.msra.mxu0 0.0
        %1776 = vmatprep.subr.mxu0 0.0
        %1777 = vmatpush2.msra.mxu0 0.0
        %1778 = vmatprep.subr.mxu0 0.0
        %1779 = vmatpush2.msra.mxu0 0.0
        %1780 = vmatprep.subr.mxu0 0.0
        %1781 = vmatpush2.msra.mxu0 0.0
        %1782 = vmatprep.subr.mxu0 0.0
        %1783 = vmatpush2.msra.mxu0 0.0
        %1784 = vmatprep.mubr.f32.mxu0 0.0
        %v1785 = vand.u32 %v698, 4294901760
        %v1786 = vsub.f32 %v698, %v1785
        %v1787 = vand.u32 %v1786, 4294901760
        %v1788 = vsub.f32 %v1786, %v1787
        %v1789 = vand.u32 %v1788, 4294901760
        %1790 = vmatmul.mubr.f32.gmra.mxu0 %v1789
        %v1791 = vpop.f32.mrf.mxu0
        %v1792 = vadd.f32 0.0, %v1791
        %v1793 = vpop.f32.mrf.mxu0
        %1794 = vmatprep.mubr.f32.mxu0 0.0
        %v1795 = vand.u32 %v701, 4294901760
        %v1796 = vsub.f32 %v701, %v1795
        %v1797 = vand.u32 %v1796, 4294901760
        %v1798 = vsub.f32 %v1796, %v1797
        %v1799 = vand.u32 %v1798, 4294901760
        %1800 = vmatmul.mubr.f32.gmra.mxu0 %v1799
        %v1801 = vpop.f32.mrf.mxu0
        %v1802 = vadd.f32 0.0, %v1801
        %v1803 = vpop.f32.mrf.mxu0
        %1804 = vdwg.mxu0
        %1805 = vmatprep.subr.mxu0 0.0
        %1806 = vmatpush1.msra.mxu0 0.0
        %1807 = vmatprep.subr.mxu0 0.0
        %1808 = vmatpush1.msra.mxu0 0.0
        %1809 = vmatprep.subr.mxu0 0.0
        %1810 = vmatpush1.msra.mxu0 0.0
        %1811 = vmatprep.subr.mxu0 0.0
        %1812 = vmatpush1.msra.mxu0 0.0
        %1813 = vmatprep.subr.mxu0 0.0
        %1814 = vmatpush1.msra.mxu0 0.0
        %1815 = vmatprep.subr.mxu0 0.0
        %1816 = vmatpush1.msra.mxu0 0.0
        %1817 = vmatprep.subr.mxu0 0.0
        %1818 = vmatpush1.msra.mxu0 0.0
        %1819 = vmatprep.subr.mxu0 0.0
        %1820 = vmatpush1.msra.mxu0 0.0
        %1821 = vmatprep.subr.mxu0 0.0
        %1822 = vmatpush1.msra.mxu0 0.0
        %1823 = vmatprep.subr.mxu0 0.0
        %1824 = vmatpush1.msra.mxu0 0.0
        %1825 = vmatprep.subr.mxu0 0.0
        %1826 = vmatpush1.msra.mxu0 0.0
        %1827 = vmatprep.subr.mxu0 0.0
        %1828 = vmatpush1.msra.mxu0 0.0
        %1829 = vmatprep.subr.mxu0 0.0
        %1830 = vmatpush1.msra.mxu0 0.0
        %1831 = vmatprep.subr.mxu0 0.0
        %1832 = vmatpush1.msra.mxu0 0.0
        %1833 = vmatprep.subr.mxu0 0.0
        %v1834 = vand.u32 %v1715, 4294901760
        %v1835 = vsub.f32 %v1715, %v1834
        %v1836 = vand.u32 %v1835, 4294901760
        %v1837 = vsub.f32 %v1835, %v1836
        %v1838 = vand.u32 %v1837, 4294901760
        %1839 = vmatpush1.msra.mxu0 %v1838
        %1840 = vmatprep.subr.mxu0 0.0
        %v1841 = vand.u32 %v1709, 4294901760
        %v1842 = vsub.f32 %v1709, %v1841
        %v1843 = vand.u32 %v1842, 4294901760
        %v1844 = vsub.f32 %v1842, %v1843
        %v1845 = vand.u32 %v1844, 4294901760
        %1846 = vmatpush1.msra.mxu0 %v1845
        %1847 = vmatprep.subr.mxu0 0.0
        %1848 = vmatpush2.msra.mxu0 0.0
        %1849 = vmatprep.subr.mxu0 0.0
        %1850 = vmatpush2.msra.mxu0 0.0
        %1851 = vmatprep.subr.mxu0 0.0
        %1852 = vmatpush2.msra.mxu0 0.0
        %1853 = vmatprep.subr.mxu0 0.0
        %1854 = vmatpush2.msra.mxu0 0.0
        %1855 = vmatprep.subr.mxu0 0.0
        %1856 = vmatpush2.msra.mxu0 0.0
        %1857 = vmatprep.subr.mxu0 0.0
        %1858 = vmatpush2.msra.mxu0 0.0
        %1859 = vmatprep.subr.mxu0 0.0
        %1860 = vmatpush2.msra.mxu0 0.0
        %1861 = vmatprep.subr.mxu0 0.0
        %1862 = vmatpush2.msra.mxu0 0.0
        %1863 = vmatprep.subr.mxu0 0.0
        %1864 = vmatpush2.msra.mxu0 0.0
        %1865 = vmatprep.subr.mxu0 0.0
        %1866 = vmatpush2.msra.mxu0 0.0
        %1867 = vmatprep.subr.mxu0 0.0
        %1868 = vmatpush2.msra.mxu0 0.0
        %1869 = vmatprep.subr.mxu0 0.0
        %1870 = vmatpush2.msra.mxu0 0.0
        %1871 = vmatprep.subr.mxu0 0.0
        %1872 = vmatpush2.msra.mxu0 0.0
        %1873 = vmatprep.subr.mxu0 0.0
        %1874 = vmatpush2.msra.mxu0 0.0
        %1875 = vmatprep.subr.mxu0 0.0
        %1876 = vmatpush2.msra.mxu0 0.0
        %1877 = vmatprep.subr.mxu0 0.0
        %1878 = vmatpush2.msra.mxu0 0.0
        %1879 = vmatprep.mubr.f32.mxu0 0.0
        %v1880 = vand.u32 %v698, 4294901760
        %1881 = vmatmul.mubr.f32.gmra.mxu0 %v1880
        %v1882 = vpop.f32.mrf.mxu0
        %v1883 = vadd.f32 %v1792, %v1882
        %v1884 = vpop.f32.mrf.mxu0
        %1885 = vmatprep.mubr.f32.mxu0 0.0
        %v1886 = vand.u32 %v701, 4294901760
        %1887 = vmatmul.mubr.f32.gmra.mxu0 %v1886
        %v1888 = vpop.f32.mrf.mxu0
        %v1889 = vadd.f32 %v1802, %v1888
        %v1890 = vpop.f32.mrf.mxu0
        %1891 = vdwg.mxu0
        %1892 = vmatprep.subr.mxu0 0.0
        %1893 = vmatpush1.msra.mxu0 0.0
        %1894 = vmatprep.subr.mxu0 0.0
        %1895 = vmatpush1.msra.mxu0 0.0
        %1896 = vmatprep.subr.mxu0 0.0
        %1897 = vmatpush1.msra.mxu0 0.0
        %1898 = vmatprep.subr.mxu0 0.0
        %1899 = vmatpush1.msra.mxu0 0.0
        %1900 = vmatprep.subr.mxu0 0.0
        %1901 = vmatpush1.msra.mxu0 0.0
        %1902 = vmatprep.subr.mxu0 0.0
        %1903 = vmatpush1.msra.mxu0 0.0
        %1904 = vmatprep.subr.mxu0 0.0
        %1905 = vmatpush1.msra.mxu0 0.0
        %1906 = vmatprep.subr.mxu0 0.0
        %1907 = vmatpush1.msra.mxu0 0.0
        %1908 = vmatprep.subr.mxu0 0.0
        %1909 = vmatpush1.msra.mxu0 0.0
        %1910 = vmatprep.subr.mxu0 0.0
        %1911 = vmatpush1.msra.mxu0 0.0
        %1912 = vmatprep.subr.mxu0 0.0
        %1913 = vmatpush1.msra.mxu0 0.0
        %1914 = vmatprep.subr.mxu0 0.0
        %1915 = vmatpush1.msra.mxu0 0.0
        %1916 = vmatprep.subr.mxu0 0.0
        %1917 = vmatpush1.msra.mxu0 0.0
        %1918 = vmatprep.subr.mxu0 0.0
        %1919 = vmatpush1.msra.mxu0 0.0
        %1920 = vmatprep.subr.mxu0 0.0
        %v1921 = vand.u32 %v1715, 4294901760
        %v1922 = vsub.f32 %v1715, %v1921
        %1923 = vmatpush1.msra.mxu0 %v1922
        %1924 = vmatprep.subr.mxu0 0.0
        %v1925 = vand.u32 %v1709, 4294901760
        %v1926 = vsub.f32 %v1709, %v1925
        %1927 = vmatpush1.msra.mxu0 %v1926
        %1928 = vmatprep.subr.mxu0 0.0
        %1929 = vmatpush2.msra.mxu0 0.0
        %1930 = vmatprep.subr.mxu0 0.0
        %1931 = vmatpush2.msra.mxu0 0.0
        %1932 = vmatprep.subr.mxu0 0.0
        %1933 = vmatpush2.msra.mxu0 0.0
        %1934 = vmatprep.subr.mxu0 0.0
        %1935 = vmatpush2.msra.mxu0 0.0
        %1936 = vmatprep.subr.mxu0 0.0
        %1937 = vmatpush2.msra.mxu0 0.0
        %1938 = vmatprep.subr.mxu0 0.0
        %1939 = vmatpush2.msra.mxu0 0.0
        %1940 = vmatprep.subr.mxu0 0.0
        %1941 = vmatpush2.msra.mxu0 0.0
        %1942 = vmatprep.subr.mxu0 0.0
        %1943 = vmatpush2.msra.mxu0 0.0
        %1944 = vmatprep.subr.mxu0 0.0
        %1945 = vmatpush2.msra.mxu0 0.0
        %1946 = vmatprep.subr.mxu0 0.0
        %1947 = vmatpush2.msra.mxu0 0.0
        %1948 = vmatprep.subr.mxu0 0.0
        %1949 = vmatpush2.msra.mxu0 0.0
        %1950 = vmatprep.subr.mxu0 0.0
        %1951 = vmatpush2.msra.mxu0 0.0
        %1952 = vmatprep.subr.mxu0 0.0
        %1953 = vmatpush2.msra.mxu0 0.0
        %1954 = vmatprep.subr.mxu0 0.0
        %1955 = vmatpush2.msra.mxu0 0.0
        %1956 = vmatprep.subr.mxu0 0.0
        %1957 = vmatpush2.msra.mxu0 0.0
        %1958 = vmatprep.subr.mxu0 0.0
        %1959 = vmatpush2.msra.mxu0 0.0
        %1960 = vmatprep.mubr.f32.mxu0 0.0
        %v1961 = vand.u32 %v698, 4294901760
        %v1962 = vsub.f32 %v698, %v1961
        %1963 = vmatmul.mubr.f32.gmra.mxu0 %v1962
        %v1964 = vpop.f32.mrf.mxu0
        %v1965 = vadd.f32 %v1883, %v1964
        %v1966 = vpop.f32.mrf.mxu0
        %1967 = vmatprep.mubr.f32.mxu0 0.0
        %v1968 = vand.u32 %v701, 4294901760
        %v1969 = vsub.f32 %v701, %v1968
        %1970 = vmatmul.mubr.f32.gmra.mxu0 %v1969
        %v1971 = vpop.f32.mrf.mxu0
        %v1972 = vadd.f32 %v1889, %v1971
        %v1973 = vpop.f32.mrf.mxu0
        %1974 = vdwg.mxu0
        %1975 = vmatprep.subr.mxu0 0.0
        %1976 = vmatpush1.msra.mxu0 0.0
        %1977 = vmatprep.subr.mxu0 0.0
        %1978 = vmatpush1.msra.mxu0 0.0
        %1979 = vmatprep.subr.mxu0 0.0
        %1980 = vmatpush1.msra.mxu0 0.0
        %1981 = vmatprep.subr.mxu0 0.0
        %1982 = vmatpush1.msra.mxu0 0.0
        %1983 = vmatprep.subr.mxu0 0.0
        %1984 = vmatpush1.msra.mxu0 0.0
        %1985 = vmatprep.subr.mxu0 0.0
        %1986 = vmatpush1.msra.mxu0 0.0
        %1987 = vmatprep.subr.mxu0 0.0
        %1988 = vmatpush1.msra.mxu0 0.0
        %1989 = vmatprep.subr.mxu0 0.0
        %1990 = vmatpush1.msra.mxu0 0.0
        %1991 = vmatprep.subr.mxu0 0.0
        %1992 = vmatpush1.msra.mxu0 0.0
        %1993 = vmatprep.subr.mxu0 0.0
        %1994 = vmatpush1.msra.mxu0 0.0
        %1995 = vmatprep.subr.mxu0 0.0
        %1996 = vmatpush1.msra.mxu0 0.0
        %1997 = vmatprep.subr.mxu0 0.0
        %1998 = vmatpush1.msra.mxu0 0.0
        %1999 = vmatprep.subr.mxu0 0.0
        %2000 = vmatpush1.msra.mxu0 0.0
        %2001 = vmatprep.subr.mxu0 0.0
        %2002 = vmatpush1.msra.mxu0 0.0
        %2003 = vmatprep.subr.mxu0 0.0
        %v2004 = vand.u32 %v1715, 4294901760
        %2005 = vmatpush1.msra.mxu0 %v2004
        %2006 = vmatprep.subr.mxu0 0.0
        %v2007 = vand.u32 %v1709, 4294901760
        %2008 = vmatpush1.msra.mxu0 %v2007
        %2009 = vmatprep.subr.mxu0 0.0
        %2010 = vmatpush2.msra.mxu0 0.0
        %2011 = vmatprep.subr.mxu0 0.0
        %2012 = vmatpush2.msra.mxu0 0.0
        %2013 = vmatprep.subr.mxu0 0.0
        %2014 = vmatpush2.msra.mxu0 0.0
        %2015 = vmatprep.subr.mxu0 0.0
        %2016 = vmatpush2.msra.mxu0 0.0
        %2017 = vmatprep.subr.mxu0 0.0
        %2018 = vmatpush2.msra.mxu0 0.0
        %2019 = vmatprep.subr.mxu0 0.0
        %2020 = vmatpush2.msra.mxu0 0.0
        %2021 = vmatprep.subr.mxu0 0.0
        %2022 = vmatpush2.msra.mxu0 0.0
        %2023 = vmatprep.subr.mxu0 0.0
        %2024 = vmatpush2.msra.mxu0 0.0
        %2025 = vmatprep.subr.mxu0 0.0
        %2026 = vmatpush2.msra.mxu0 0.0
        %2027 = vmatprep.subr.mxu0 0.0
        %2028 = vmatpush2.msra.mxu0 0.0
        %2029 = vmatprep.subr.mxu0 0.0
        %2030 = vmatpush2.msra.mxu0 0.0
        %2031 = vmatprep.subr.mxu0 0.0
        %2032 = vmatpush2.msra.mxu0 0.0
        %2033 = vmatprep.subr.mxu0 0.0
        %2034 = vmatpush2.msra.mxu0 0.0
        %2035 = vmatprep.subr.mxu0 0.0
        %2036 = vmatpush2.msra.mxu0 0.0
        %2037 = vmatprep.subr.mxu0 0.0
        %2038 = vmatpush2.msra.mxu0 0.0
        %2039 = vmatprep.subr.mxu0 0.0
        %2040 = vmatpush2.msra.mxu0 0.0
        %2041 = vmatprep.mubr.f32.mxu0 0.0
        %v2042 = vand.u32 %v698, 4294901760
        %v2043 = vsub.f32 %v698, %v2042
        %v2044 = vand.u32 %v2043, 4294901760
        %2045 = vmatmul.mubr.f32.gmra.mxu0 %v2044
        %v2046 = vpop.f32.mrf.mxu0
        %v2047 = vadd.f32 %v1965, %v2046
        %v2048 = vpop.f32.mrf.mxu0
        %2049 = vmatprep.mubr.f32.mxu0 0.0
        %v2050 = vand.u32 %v701, 4294901760
        %v2051 = vsub.f32 %v701, %v2050
        %v2052 = vand.u32 %v2051, 4294901760
        %2053 = vmatmul.mubr.f32.gmra.mxu0 %v2052
        %v2054 = vpop.f32.mrf.mxu0
        %v2055 = vadd.f32 %v1972, %v2054
        %v2056 = vpop.f32.mrf.mxu0
        %2057 = vdwg.mxu0
        %2058 = vmatprep.subr.mxu0 0.0
        %2059 = vmatpush1.msra.mxu0 0.0
        %2060 = vmatprep.subr.mxu0 0.0
        %2061 = vmatpush1.msra.mxu0 0.0
        %2062 = vmatprep.subr.mxu0 0.0
        %2063 = vmatpush1.msra.mxu0 0.0
        %2064 = vmatprep.subr.mxu0 0.0
        %2065 = vmatpush1.msra.mxu0 0.0
        %2066 = vmatprep.subr.mxu0 0.0
        %2067 = vmatpush1.msra.mxu0 0.0
        %2068 = vmatprep.subr.mxu0 0.0
        %2069 = vmatpush1.msra.mxu0 0.0
        %2070 = vmatprep.subr.mxu0 0.0
        %2071 = vmatpush1.msra.mxu0 0.0
        %2072 = vmatprep.subr.mxu0 0.0
        %2073 = vmatpush1.msra.mxu0 0.0
        %2074 = vmatprep.subr.mxu0 0.0
        %2075 = vmatpush1.msra.mxu0 0.0
        %2076 = vmatprep.subr.mxu0 0.0
        %2077 = vmatpush1.msra.mxu0 0.0
        %2078 = vmatprep.subr.mxu0 0.0
        %2079 = vmatpush1.msra.mxu0 0.0
        %2080 = vmatprep.subr.mxu0 0.0
        %2081 = vmatpush1.msra.mxu0 0.0
        %2082 = vmatprep.subr.mxu0 0.0
        %2083 = vmatpush1.msra.mxu0 0.0
        %2084 = vmatprep.subr.mxu0 0.0
        %2085 = vmatpush1.msra.mxu0 0.0
        %2086 = vmatprep.subr.mxu0 0.0
        %v2087 = vand.u32 %v1715, 4294901760
        %v2088 = vsub.f32 %v1715, %v2087
        %v2089 = vand.u32 %v2088, 4294901760
        %2090 = vmatpush1.msra.mxu0 %v2089
        %2091 = vmatprep.subr.mxu0 0.0
        %v2092 = vand.u32 %v1709, 4294901760
        %v2093 = vsub.f32 %v1709, %v2092
        %v2094 = vand.u32 %v2093, 4294901760
        %2095 = vmatpush1.msra.mxu0 %v2094
        %2096 = vmatprep.subr.mxu0 0.0
        %2097 = vmatpush2.msra.mxu0 0.0
        %2098 = vmatprep.subr.mxu0 0.0
        %2099 = vmatpush2.msra.mxu0 0.0
        %2100 = vmatprep.subr.mxu0 0.0
        %2101 = vmatpush2.msra.mxu0 0.0
        %2102 = vmatprep.subr.mxu0 0.0
        %2103 = vmatpush2.msra.mxu0 0.0
        %2104 = vmatprep.subr.mxu0 0.0
        %2105 = vmatpush2.msra.mxu0 0.0
        %2106 = vmatprep.subr.mxu0 0.0
        %2107 = vmatpush2.msra.mxu0 0.0
        %2108 = vmatprep.subr.mxu0 0.0
        %2109 = vmatpush2.msra.mxu0 0.0
        %2110 = vmatprep.subr.mxu0 0.0
        %2111 = vmatpush2.msra.mxu0 0.0
        %2112 = vmatprep.subr.mxu0 0.0
        %2113 = vmatpush2.msra.mxu0 0.0
        %2114 = vmatprep.subr.mxu0 0.0
        %2115 = vmatpush2.msra.mxu0 0.0
        %2116 = vmatprep.subr.mxu0 0.0
        %2117 = vmatpush2.msra.mxu0 0.0
        %2118 = vmatprep.subr.mxu0 0.0
        %2119 = vmatpush2.msra.mxu0 0.0
        %2120 = vmatprep.subr.mxu0 0.0
        %2121 = vmatpush2.msra.mxu0 0.0
        %2122 = vmatprep.subr.mxu0 0.0
        %2123 = vmatpush2.msra.mxu0 0.0
        %2124 = vmatprep.subr.mxu0 0.0
        %2125 = vmatpush2.msra.mxu0 0.0
        %2126 = vmatprep.subr.mxu0 0.0
        %2127 = vmatpush2.msra.mxu0 0.0
        %2128 = vmatprep.mubr.f32.mxu0 0.0
        %v2129 = vand.u32 %v698, 4294901760
        %2130 = vmatmul.mubr.f32.gmra.mxu0 %v2129
        %v2131 = vpop.f32.mrf.mxu0
        %v2132 = vadd.f32 %v2047, %v2131
        %v2133 = vpop.f32.mrf.mxu0
        %2134 = vmatprep.mubr.f32.mxu0 0.0
        %v2135 = vand.u32 %v701, 4294901760
        %2136 = vmatmul.mubr.f32.gmra.mxu0 %v2135
        %v2137 = vpop.f32.mrf.mxu0
        %v2138 = vadd.f32 %v2055, %v2137
        %v2139 = vpop.f32.mrf.mxu0
        %2140 = vdwg.mxu0
        %2141 = vmatprep.subr.mxu0 0.0
        %2142 = vmatpush1.msra.mxu0 0.0
        %2143 = vmatprep.subr.mxu0 0.0
        %2144 = vmatpush1.msra.mxu0 0.0
        %2145 = vmatprep.subr.mxu0 0.0
        %2146 = vmatpush1.msra.mxu0 0.0
        %2147 = vmatprep.subr.mxu0 0.0
        %2148 = vmatpush1.msra.mxu0 0.0
        %2149 = vmatprep.subr.mxu0 0.0
        %2150 = vmatpush1.msra.mxu0 0.0
        %2151 = vmatprep.subr.mxu0 0.0
        %2152 = vmatpush1.msra.mxu0 0.0
        %2153 = vmatprep.subr.mxu0 0.0
        %2154 = vmatpush1.msra.mxu0 0.0
        %2155 = vmatprep.subr.mxu0 0.0
        %2156 = vmatpush1.msra.mxu0 0.0
        %2157 = vmatprep.subr.mxu0 0.0
        %2158 = vmatpush1.msra.mxu0 0.0
        %2159 = vmatprep.subr.mxu0 0.0
        %2160 = vmatpush1.msra.mxu0 0.0
        %2161 = vmatprep.subr.mxu0 0.0
        %2162 = vmatpush1.msra.mxu0 0.0
        %2163 = vmatprep.subr.mxu0 0.0
        %2164 = vmatpush1.msra.mxu0 0.0
        %2165 = vmatprep.subr.mxu0 0.0
        %2166 = vmatpush1.msra.mxu0 0.0
        %2167 = vmatprep.subr.mxu0 0.0
        %2168 = vmatpush1.msra.mxu0 0.0
        %2169 = vmatprep.subr.mxu0 0.0
        %v2170 = vand.u32 %v1715, 4294901760
        %2171 = vmatpush1.msra.mxu0 %v2170
        %2172 = vmatprep.subr.mxu0 0.0
        %v2173 = vand.u32 %v1709, 4294901760
        %2174 = vmatpush1.msra.mxu0 %v2173
        %2175 = vmatprep.subr.mxu0 0.0
        %2176 = vmatpush2.msra.mxu0 0.0
        %2177 = vmatprep.subr.mxu0 0.0
        %2178 = vmatpush2.msra.mxu0 0.0
        %2179 = vmatprep.subr.mxu0 0.0
        %2180 = vmatpush2.msra.mxu0 0.0
        %2181 = vmatprep.subr.mxu0 0.0
        %2182 = vmatpush2.msra.mxu0 0.0
        %2183 = vmatprep.subr.mxu0 0.0
        %2184 = vmatpush2.msra.mxu0 0.0
        %2185 = vmatprep.subr.mxu0 0.0
        %2186 = vmatpush2.msra.mxu0 0.0
        %2187 = vmatprep.subr.mxu0 0.0
        %2188 = vmatpush2.msra.mxu0 0.0
        %2189 = vmatprep.subr.mxu0 0.0
        %2190 = vmatpush2.msra.mxu0 0.0
        %2191 = vmatprep.subr.mxu0 0.0
        %2192 = vmatpush2.msra.mxu0 0.0
        %2193 = vmatprep.subr.mxu0 0.0
        %2194 = vmatpush2.msra.mxu0 0.0
        %2195 = vmatprep.subr.mxu0 0.0
        %2196 = vmatpush2.msra.mxu0 0.0
        %2197 = vmatprep.subr.mxu0 0.0
        %2198 = vmatpush2.msra.mxu0 0.0
        %2199 = vmatprep.subr.mxu0 0.0
        %2200 = vmatpush2.msra.mxu0 0.0
        %2201 = vmatprep.subr.mxu0 0.0
        %2202 = vmatpush2.msra.mxu0 0.0
        %2203 = vmatprep.subr.mxu0 0.0
        %2204 = vmatpush2.msra.mxu0 0.0
        %2205 = vmatprep.subr.mxu0 0.0
        %2206 = vmatpush2.msra.mxu0 0.0
        %2207 = vmatprep.mubr.f32.mxu0 0.0
        %v2208 = vand.u32 %v698, 4294901760
        %2209 = vmatmul.mubr.f32.gmra.mxu0 %v2208
        %v2210 = vpop.f32.mrf.mxu0
        %v2211 = vadd.f32 %v2132, %v2210
        %v2212 = vpop.f32.mrf.mxu0
        %2213 = vmatprep.mubr.f32.mxu0 0.0
        %v2214 = vand.u32 %v701, 4294901760
        %2215 = vmatmul.mubr.f32.gmra.mxu0 %v2214
        %v2216 = vpop.f32.mrf.mxu0
        %v2217 = vadd.f32 %v2138, %v2216
        %v2218 = vpop.f32.mrf.mxu0
        %2219 = vdwg.mxu0
        %s2220 = scalar_lea.vmem %s139, 16 [#allocation7]
        %2221 = vst.msk [vmem:[%s2220] sm:$0xff] %vm188, %v2211
        %2222 = vst.msk [vmem:[%s2220 + $0x8] sm:$0xff] %vm188, %v2217
        %s2223 = scalar_lea.vmem %s121, 32 [#allocation4]
        %v2224 = vld [vmem:[%s2223] sm:$0xff]
        %v2225 = vld [vmem:[%s2223 + $0x8] sm:$0xff]
        %v2227 = vsel %vm188, %v2224, 0
        %v2230 = vsel %vm188, %v2225, 0
        %2232 = vmatprep.subr.mxu0 0.0
        %2233 = vmatpush1.msra.mxu0 0.0
        %2234 = vmatprep.subr.mxu0 0.0
        %2235 = vmatpush1.msra.mxu0 0.0
        %2236 = vmatprep.subr.mxu0 0.0
        %2237 = vmatpush1.msra.mxu0 0.0
        %2238 = vmatprep.subr.mxu0 0.0
        %2239 = vmatpush1.msra.mxu0 0.0
        %2240 = vmatprep.subr.mxu0 0.0
        %2241 = vmatpush1.msra.mxu0 0.0
        %2242 = vmatprep.subr.mxu0 0.0
        %2243 = vmatpush1.msra.mxu0 0.0
        %2244 = vmatprep.subr.mxu0 0.0
        %2245 = vmatpush1.msra.mxu0 0.0
        %2246 = vmatprep.subr.mxu0 0.0
        %2247 = vmatpush1.msra.mxu0 0.0
        %2248 = vmatprep.subr.mxu0 0.0
        %2249 = vmatpush1.msra.mxu0 0.0
        %2250 = vmatprep.subr.mxu0 0.0
        %2251 = vmatpush1.msra.mxu0 0.0
        %2252 = vmatprep.subr.mxu0 0.0
        %2253 = vmatpush1.msra.mxu0 0.0
        %2254 = vmatprep.subr.mxu0 0.0
        %2255 = vmatpush1.msra.mxu0 0.0
        %2256 = vmatprep.subr.mxu0 0.0
        %2257 = vmatpush1.msra.mxu0 0.0
        %2258 = vmatprep.subr.mxu0 0.0
        %2259 = vmatpush1.msra.mxu0 0.0
        %2260 = vmatprep.subr.mxu0 0.0
        %v2261 = vand.u32 %v166, 4294901760
        %2262 = vmatpush1.msra.mxu0 %v2261
        %2263 = vmatprep.subr.mxu0 0.0
        %v2264 = vand.u32 %v165, 4294901760
        %2265 = vmatpush1.msra.mxu0 %v2264
        %2266 = vmatprep.subr.mxu0 0.0
        %2267 = vmatpush2.msra.mxu0 0.0
        %2268 = vmatprep.subr.mxu0 0.0
        %2269 = vmatpush2.msra.mxu0 0.0
        %2270 = vmatprep.subr.mxu0 0.0
        %2271 = vmatpush2.msra.mxu0 0.0
        %2272 = vmatprep.subr.mxu0 0.0
        %2273 = vmatpush2.msra.mxu0 0.0
        %2274 = vmatprep.subr.mxu0 0.0
        %2275 = vmatpush2.msra.mxu0 0.0
        %2276 = vmatprep.subr.mxu0 0.0
        %2277 = vmatpush2.msra.mxu0 0.0
        %2278 = vmatprep.subr.mxu0 0.0
        %2279 = vmatpush2.msra.mxu0 0.0
        %2280 = vmatprep.subr.mxu0 0.0
        %2281 = vmatpush2.msra.mxu0 0.0
        %2282 = vmatprep.subr.mxu0 0.0
        %2283 = vmatpush2.msra.mxu0 0.0
        %2284 = vmatprep.subr.mxu0 0.0
        %2285 = vmatpush2.msra.mxu0 0.0
        %2286 = vmatprep.subr.mxu0 0.0
        %2287 = vmatpush2.msra.mxu0 0.0
        %2288 = vmatprep.subr.mxu0 0.0
        %2289 = vmatpush2.msra.mxu0 0.0
        %2290 = vmatprep.subr.mxu0 0.0
        %2291 = vmatpush2.msra.mxu0 0.0
        %2292 = vmatprep.subr.mxu0 0.0
        %2293 = vmatpush2.msra.mxu0 0.0
        %2294 = vmatprep.subr.mxu0 0.0
        %2295 = vmatpush2.msra.mxu0 0.0
        %2296 = vmatprep.subr.mxu0 0.0
        %2297 = vmatpush2.msra.mxu0 0.0
        %2298 = vmatprep.mubr.f32.mxu0 0.0
        %v2299 = vand.u32 %v2227, 4294901760
        %v2300 = vsub.f32 %v2227, %v2299
        %v2301 = vand.u32 %v2300, 4294901760
        %v2302 = vsub.f32 %v2300, %v2301
        %v2303 = vand.u32 %v2302, 4294901760
        %2304 = vmatmul.mubr.f32.gmra.mxu0 %v2303
        %v2305 = vpop.f32.mrf.mxu0
        %v2306 = vadd.f32 0.0, %v2305
        %v2307 = vpop.f32.mrf.mxu0
        %2308 = vmatprep.mubr.f32.mxu0 0.0
        %v2309 = vand.u32 %v2230, 4294901760
        %v2310 = vsub.f32 %v2230, %v2309
        %v2311 = vand.u32 %v2310, 4294901760
        %v2312 = vsub.f32 %v2310, %v2311
        %v2313 = vand.u32 %v2312, 4294901760
        %2314 = vmatmul.mubr.f32.gmra.mxu0 %v2313
        %v2315 = vpop.f32.mrf.mxu0
        %v2316 = vadd.f32 0.0, %v2315
        %v2317 = vpop.f32.mrf.mxu0
        %2318 = vdwg.mxu0
        %2319 = vmatprep.subr.mxu0 0.0
        %2320 = vmatpush1.msra.mxu0 0.0
        %2321 = vmatprep.subr.mxu0 0.0
        %2322 = vmatpush1.msra.mxu0 0.0
        %2323 = vmatprep.subr.mxu0 0.0
        %2324 = vmatpush1.msra.mxu0 0.0
        %2325 = vmatprep.subr.mxu0 0.0
        %2326 = vmatpush1.msra.mxu0 0.0
        %2327 = vmatprep.subr.mxu0 0.0
        %2328 = vmatpush1.msra.mxu0 0.0
        %2329 = vmatprep.subr.mxu0 0.0
        %2330 = vmatpush1.msra.mxu0 0.0
        %2331 = vmatprep.subr.mxu0 0.0
        %2332 = vmatpush1.msra.mxu0 0.0
        %2333 = vmatprep.subr.mxu0 0.0
        %2334 = vmatpush1.msra.mxu0 0.0
        %2335 = vmatprep.subr.mxu0 0.0
        %2336 = vmatpush1.msra.mxu0 0.0
        %2337 = vmatprep.subr.mxu0 0.0
        %2338 = vmatpush1.msra.mxu0 0.0
        %2339 = vmatprep.subr.mxu0 0.0
        %2340 = vmatpush1.msra.mxu0 0.0
        %2341 = vmatprep.subr.mxu0 0.0
        %2342 = vmatpush1.msra.mxu0 0.0
        %2343 = vmatprep.subr.mxu0 0.0
        %2344 = vmatpush1.msra.mxu0 0.0
        %2345 = vmatprep.subr.mxu0 0.0
        %2346 = vmatpush1.msra.mxu0 0.0
        %2347 = vmatprep.subr.mxu0 0.0
        %v2348 = vand.u32 %v166, 4294901760
        %v2349 = vsub.f32 %v166, %v2348
        %v2350 = vand.u32 %v2349, 4294901760
        %v2351 = vsub.f32 %v2349, %v2350
        %v2352 = vand.u32 %v2351, 4294901760
        %2353 = vmatpush1.msra.mxu0 %v2352
        %2354 = vmatprep.subr.mxu0 0.0
        %v2355 = vand.u32 %v165, 4294901760
        %v2356 = vsub.f32 %v165, %v2355
        %v2357 = vand.u32 %v2356, 4294901760
        %v2358 = vsub.f32 %v2356, %v2357
        %v2359 = vand.u32 %v2358, 4294901760
        %2360 = vmatpush1.msra.mxu0 %v2359
        %2361 = vmatprep.subr.mxu0 0.0
        %2362 = vmatpush2.msra.mxu0 0.0
        %2363 = vmatprep.subr.mxu0 0.0
        %2364 = vmatpush2.msra.mxu0 0.0
        %2365 = vmatprep.subr.mxu0 0.0
        %2366 = vmatpush2.msra.mxu0 0.0
        %2367 = vmatprep.subr.mxu0 0.0
        %2368 = vmatpush2.msra.mxu0 0.0
        %2369 = vmatprep.subr.mxu0 0.0
        %2370 = vmatpush2.msra.mxu0 0.0
        %2371 = vmatprep.subr.mxu0 0.0
        %2372 = vmatpush2.msra.mxu0 0.0
        %2373 = vmatprep.subr.mxu0 0.0
        %2374 = vmatpush2.msra.mxu0 0.0
        %2375 = vmatprep.subr.mxu0 0.0
        %2376 = vmatpush2.msra.mxu0 0.0
        %2377 = vmatprep.subr.mxu0 0.0
        %2378 = vmatpush2.msra.mxu0 0.0
        %2379 = vmatprep.subr.mxu0 0.0
        %2380 = vmatpush2.msra.mxu0 0.0
        %2381 = vmatprep.subr.mxu0 0.0
        %2382 = vmatpush2.msra.mxu0 0.0
        %2383 = vmatprep.subr.mxu0 0.0
        %2384 = vmatpush2.msra.mxu0 0.0
        %2385 = vmatprep.subr.mxu0 0.0
        %2386 = vmatpush2.msra.mxu0 0.0
        %2387 = vmatprep.subr.mxu0 0.0
        %2388 = vmatpush2.msra.mxu0 0.0
        %2389 = vmatprep.subr.mxu0 0.0
        %2390 = vmatpush2.msra.mxu0 0.0
        %2391 = vmatprep.subr.mxu0 0.0
        %2392 = vmatpush2.msra.mxu0 0.0
        %2393 = vmatprep.mubr.f32.mxu0 0.0
        %v2394 = vand.u32 %v2227, 4294901760
        %2395 = vmatmul.mubr.f32.gmra.mxu0 %v2394
        %v2396 = vpop.f32.mrf.mxu0
        %v2397 = vadd.f32 %v2306, %v2396
        %v2398 = vpop.f32.mrf.mxu0
        %2399 = vmatprep.mubr.f32.mxu0 0.0
        %v2400 = vand.u32 %v2230, 4294901760
        %2401 = vmatmul.mubr.f32.gmra.mxu0 %v2400
        %v2402 = vpop.f32.mrf.mxu0
        %v2403 = vadd.f32 %v2316, %v2402
        %v2404 = vpop.f32.mrf.mxu0
        %2405 = vdwg.mxu0
        %2406 = vmatprep.subr.mxu0 0.0
        %2407 = vmatpush1.msra.mxu0 0.0
        %2408 = vmatprep.subr.mxu0 0.0
        %2409 = vmatpush1.msra.mxu0 0.0
        %2410 = vmatprep.subr.mxu0 0.0
        %2411 = vmatpush1.msra.mxu0 0.0
        %2412 = vmatprep.subr.mxu0 0.0
        %2413 = vmatpush1.msra.mxu0 0.0
        %2414 = vmatprep.subr.mxu0 0.0
        %2415 = vmatpush1.msra.mxu0 0.0
        %2416 = vmatprep.subr.mxu0 0.0
        %2417 = vmatpush1.msra.mxu0 0.0
        %2418 = vmatprep.subr.mxu0 0.0
        %2419 = vmatpush1.msra.mxu0 0.0
        %2420 = vmatprep.subr.mxu0 0.0
        %2421 = vmatpush1.msra.mxu0 0.0
        %2422 = vmatprep.subr.mxu0 0.0
        %2423 = vmatpush1.msra.mxu0 0.0
        %2424 = vmatprep.subr.mxu0 0.0
        %2425 = vmatpush1.msra.mxu0 0.0
        %2426 = vmatprep.subr.mxu0 0.0
        %2427 = vmatpush1.msra.mxu0 0.0
        %2428 = vmatprep.subr.mxu0 0.0
        %2429 = vmatpush1.msra.mxu0 0.0
        %2430 = vmatprep.subr.mxu0 0.0
        %2431 = vmatpush1.msra.mxu0 0.0
        %2432 = vmatprep.subr.mxu0 0.0
        %2433 = vmatpush1.msra.mxu0 0.0
        %2434 = vmatprep.subr.mxu0 0.0
        %v2435 = vand.u32 %v166, 4294901760
        %v2436 = vsub.f32 %v166, %v2435
        %2437 = vmatpush1.msra.mxu0 %v2436
        %2438 = vmatprep.subr.mxu0 0.0
        %v2439 = vand.u32 %v165, 4294901760
        %v2440 = vsub.f32 %v165, %v2439
        %2441 = vmatpush1.msra.mxu0 %v2440
        %2442 = vmatprep.subr.mxu0 0.0
        %2443 = vmatpush2.msra.mxu0 0.0
        %2444 = vmatprep.subr.mxu0 0.0
        %2445 = vmatpush2.msra.mxu0 0.0
        %2446 = vmatprep.subr.mxu0 0.0
        %2447 = vmatpush2.msra.mxu0 0.0
        %2448 = vmatprep.subr.mxu0 0.0
        %2449 = vmatpush2.msra.mxu0 0.0
        %2450 = vmatprep.subr.mxu0 0.0
        %2451 = vmatpush2.msra.mxu0 0.0
        %2452 = vmatprep.subr.mxu0 0.0
        %2453 = vmatpush2.msra.mxu0 0.0
        %2454 = vmatprep.subr.mxu0 0.0
        %2455 = vmatpush2.msra.mxu0 0.0
        %2456 = vmatprep.subr.mxu0 0.0
        %2457 = vmatpush2.msra.mxu0 0.0
        %2458 = vmatprep.subr.mxu0 0.0
        %2459 = vmatpush2.msra.mxu0 0.0
        %2460 = vmatprep.subr.mxu0 0.0
        %2461 = vmatpush2.msra.mxu0 0.0
        %2462 = vmatprep.subr.mxu0 0.0
        %2463 = vmatpush2.msra.mxu0 0.0
        %2464 = vmatprep.subr.mxu0 0.0
        %2465 = vmatpush2.msra.mxu0 0.0
        %2466 = vmatprep.subr.mxu0 0.0
        %2467 = vmatpush2.msra.mxu0 0.0
        %2468 = vmatprep.subr.mxu0 0.0
        %2469 = vmatpush2.msra.mxu0 0.0
        %2470 = vmatprep.subr.mxu0 0.0
        %2471 = vmatpush2.msra.mxu0 0.0
        %2472 = vmatprep.subr.mxu0 0.0
        %2473 = vmatpush2.msra.mxu0 0.0
        %2474 = vmatprep.mubr.f32.mxu0 0.0
        %v2475 = vand.u32 %v2227, 4294901760
        %v2476 = vsub.f32 %v2227, %v2475
        %2477 = vmatmul.mubr.f32.gmra.mxu0 %v2476
        %v2478 = vpop.f32.mrf.mxu0
        %v2479 = vadd.f32 %v2397, %v2478
        %v2480 = vpop.f32.mrf.mxu0
        %2481 = vmatprep.mubr.f32.mxu0 0.0
        %v2482 = vand.u32 %v2230, 4294901760
        %v2483 = vsub.f32 %v2230, %v2482
        %2484 = vmatmul.mubr.f32.gmra.mxu0 %v2483
        %v2485 = vpop.f32.mrf.mxu0
        %v2486 = vadd.f32 %v2403, %v2485
        %v2487 = vpop.f32.mrf.mxu0
        %2488 = vdwg.mxu0
        %2489 = vmatprep.subr.mxu0 0.0
        %2490 = vmatpush1.msra.mxu0 0.0
        %2491 = vmatprep.subr.mxu0 0.0
        %2492 = vmatpush1.msra.mxu0 0.0
        %2493 = vmatprep.subr.mxu0 0.0
        %2494 = vmatpush1.msra.mxu0 0.0
        %2495 = vmatprep.subr.mxu0 0.0
        %2496 = vmatpush1.msra.mxu0 0.0
        %2497 = vmatprep.subr.mxu0 0.0
        %2498 = vmatpush1.msra.mxu0 0.0
        %2499 = vmatprep.subr.mxu0 0.0
        %2500 = vmatpush1.msra.mxu0 0.0
        %2501 = vmatprep.subr.mxu0 0.0
        %2502 = vmatpush1.msra.mxu0 0.0
        %2503 = vmatprep.subr.mxu0 0.0
        %2504 = vmatpush1.msra.mxu0 0.0
        %2505 = vmatprep.subr.mxu0 0.0
        %2506 = vmatpush1.msra.mxu0 0.0
        %2507 = vmatprep.subr.mxu0 0.0
        %2508 = vmatpush1.msra.mxu0 0.0
        %2509 = vmatprep.subr.mxu0 0.0
        %2510 = vmatpush1.msra.mxu0 0.0
        %2511 = vmatprep.subr.mxu0 0.0
        %2512 = vmatpush1.msra.mxu0 0.0
        %2513 = vmatprep.subr.mxu0 0.0
        %2514 = vmatpush1.msra.mxu0 0.0
        %2515 = vmatprep.subr.mxu0 0.0
        %2516 = vmatpush1.msra.mxu0 0.0
        %2517 = vmatprep.subr.mxu0 0.0
        %v2518 = vand.u32 %v166, 4294901760
        %2519 = vmatpush1.msra.mxu0 %v2518
        %2520 = vmatprep.subr.mxu0 0.0
        %v2521 = vand.u32 %v165, 4294901760
        %2522 = vmatpush1.msra.mxu0 %v2521
        %2523 = vmatprep.subr.mxu0 0.0
        %2524 = vmatpush2.msra.mxu0 0.0
        %2525 = vmatprep.subr.mxu0 0.0
        %2526 = vmatpush2.msra.mxu0 0.0
        %2527 = vmatprep.subr.mxu0 0.0
        %2528 = vmatpush2.msra.mxu0 0.0
        %2529 = vmatprep.subr.mxu0 0.0
        %2530 = vmatpush2.msra.mxu0 0.0
        %2531 = vmatprep.subr.mxu0 0.0
        %2532 = vmatpush2.msra.mxu0 0.0
        %2533 = vmatprep.subr.mxu0 0.0
        %2534 = vmatpush2.msra.mxu0 0.0
        %2535 = vmatprep.subr.mxu0 0.0
        %2536 = vmatpush2.msra.mxu0 0.0
        %2537 = vmatprep.subr.mxu0 0.0
        %2538 = vmatpush2.msra.mxu0 0.0
        %2539 = vmatprep.subr.mxu0 0.0
        %2540 = vmatpush2.msra.mxu0 0.0
        %2541 = vmatprep.subr.mxu0 0.0
        %2542 = vmatpush2.msra.mxu0 0.0
        %2543 = vmatprep.subr.mxu0 0.0
        %2544 = vmatpush2.msra.mxu0 0.0
        %2545 = vmatprep.subr.mxu0 0.0
        %2546 = vmatpush2.msra.mxu0 0.0
        %2547 = vmatprep.subr.mxu0 0.0
        %2548 = vmatpush2.msra.mxu0 0.0
        %2549 = vmatprep.subr.mxu0 0.0
        %2550 = vmatpush2.msra.mxu0 0.0
        %2551 = vmatprep.subr.mxu0 0.0
        %2552 = vmatpush2.msra.mxu0 0.0
        %2553 = vmatprep.subr.mxu0 0.0
        %2554 = vmatpush2.msra.mxu0 0.0
        %2555 = vmatprep.mubr.f32.mxu0 0.0
        %v2556 = vand.u32 %v2227, 4294901760
        %v2557 = vsub.f32 %v2227, %v2556
        %v2558 = vand.u32 %v2557, 4294901760
        %2559 = vmatmul.mubr.f32.gmra.mxu0 %v2558
        %v2560 = vpop.f32.mrf.mxu0
        %v2561 = vadd.f32 %v2479, %v2560
        %v2562 = vpop.f32.mrf.mxu0
        %2563 = vmatprep.mubr.f32.mxu0 0.0
        %v2564 = vand.u32 %v2230, 4294901760
        %v2565 = vsub.f32 %v2230, %v2564
        %v2566 = vand.u32 %v2565, 4294901760
        %2567 = vmatmul.mubr.f32.gmra.mxu0 %v2566
        %v2568 = vpop.f32.mrf.mxu0
        %v2569 = vadd.f32 %v2486, %v2568
        %v2570 = vpop.f32.mrf.mxu0
        %2571 = vdwg.mxu0
        %2572 = vmatprep.subr.mxu0 0.0
        %2573 = vmatpush1.msra.mxu0 0.0
        %2574 = vmatprep.subr.mxu0 0.0
        %2575 = vmatpush1.msra.mxu0 0.0
        %2576 = vmatprep.subr.mxu0 0.0
        %2577 = vmatpush1.msra.mxu0 0.0
        %2578 = vmatprep.subr.mxu0 0.0
        %2579 = vmatpush1.msra.mxu0 0.0
        %2580 = vmatprep.subr.mxu0 0.0
        %2581 = vmatpush1.msra.mxu0 0.0
        %2582 = vmatprep.subr.mxu0 0.0
        %2583 = vmatpush1.msra.mxu0 0.0
        %2584 = vmatprep.subr.mxu0 0.0
        %2585 = vmatpush1.msra.mxu0 0.0
        %2586 = vmatprep.subr.mxu0 0.0
        %2587 = vmatpush1.msra.mxu0 0.0
        %2588 = vmatprep.subr.mxu0 0.0
        %2589 = vmatpush1.msra.mxu0 0.0
        %2590 = vmatprep.subr.mxu0 0.0
        %2591 = vmatpush1.msra.mxu0 0.0
        %2592 = vmatprep.subr.mxu0 0.0
        %2593 = vmatpush1.msra.mxu0 0.0
        %2594 = vmatprep.subr.mxu0 0.0
        %2595 = vmatpush1.msra.mxu0 0.0
        %2596 = vmatprep.subr.mxu0 0.0
        %2597 = vmatpush1.msra.mxu0 0.0
        %2598 = vmatprep.subr.mxu0 0.0
        %2599 = vmatpush1.msra.mxu0 0.0
        %2600 = vmatprep.subr.mxu0 0.0
        %v2601 = vand.u32 %v166, 4294901760
        %v2602 = vsub.f32 %v166, %v2601
        %v2603 = vand.u32 %v2602, 4294901760
        %2604 = vmatpush1.msra.mxu0 %v2603
        %2605 = vmatprep.subr.mxu0 0.0
        %v2606 = vand.u32 %v165, 4294901760
        %v2607 = vsub.f32 %v165, %v2606
        %v2608 = vand.u32 %v2607, 4294901760
        %2609 = vmatpush1.msra.mxu0 %v2608
        %2610 = vmatprep.subr.mxu0 0.0
        %2611 = vmatpush2.msra.mxu0 0.0
        %2612 = vmatprep.subr.mxu0 0.0
        %2613 = vmatpush2.msra.mxu0 0.0
        %2614 = vmatprep.subr.mxu0 0.0
        %2615 = vmatpush2.msra.mxu0 0.0
        %2616 = vmatprep.subr.mxu0 0.0
        %2617 = vmatpush2.msra.mxu0 0.0
        %2618 = vmatprep.subr.mxu0 0.0
        %2619 = vmatpush2.msra.mxu0 0.0
        %2620 = vmatprep.subr.mxu0 0.0
        %2621 = vmatpush2.msra.mxu0 0.0
        %2622 = vmatprep.subr.mxu0 0.0
        %2623 = vmatpush2.msra.mxu0 0.0
        %2624 = vmatprep.subr.mxu0 0.0
        %2625 = vmatpush2.msra.mxu0 0.0
        %2626 = vmatprep.subr.mxu0 0.0
        %2627 = vmatpush2.msra.mxu0 0.0
        %2628 = vmatprep.subr.mxu0 0.0
        %2629 = vmatpush2.msra.mxu0 0.0
        %2630 = vmatprep.subr.mxu0 0.0
        %2631 = vmatpush2.msra.mxu0 0.0
        %2632 = vmatprep.subr.mxu0 0.0
        %2633 = vmatpush2.msra.mxu0 0.0
        %2634 = vmatprep.subr.mxu0 0.0
        %2635 = vmatpush2.msra.mxu0 0.0
        %2636 = vmatprep.subr.mxu0 0.0
        %2637 = vmatpush2.msra.mxu0 0.0
        %2638 = vmatprep.subr.mxu0 0.0
        %2639 = vmatpush2.msra.mxu0 0.0
        %2640 = vmatprep.subr.mxu0 0.0
        %2641 = vmatpush2.msra.mxu0 0.0
        %2642 = vmatprep.mubr.f32.mxu0 0.0
        %v2643 = vand.u32 %v2227, 4294901760
        %2644 = vmatmul.mubr.f32.gmra.mxu0 %v2643
        %v2645 = vpop.f32.mrf.mxu0
        %v2646 = vadd.f32 %v2561, %v2645
        %v2647 = vpop.f32.mrf.mxu0
        %2648 = vmatprep.mubr.f32.mxu0 0.0
        %v2649 = vand.u32 %v2230, 4294901760
        %2650 = vmatmul.mubr.f32.gmra.mxu0 %v2649
        %v2651 = vpop.f32.mrf.mxu0
        %v2652 = vadd.f32 %v2569, %v2651
        %v2653 = vpop.f32.mrf.mxu0
        %2654 = vdwg.mxu0
        %2655 = vmatprep.subr.mxu0 0.0
        %2656 = vmatpush1.msra.mxu0 0.0
        %2657 = vmatprep.subr.mxu0 0.0
        %2658 = vmatpush1.msra.mxu0 0.0
        %2659 = vmatprep.subr.mxu0 0.0
        %2660 = vmatpush1.msra.mxu0 0.0
        %2661 = vmatprep.subr.mxu0 0.0
        %2662 = vmatpush1.msra.mxu0 0.0
        %2663 = vmatprep.subr.mxu0 0.0
        %2664 = vmatpush1.msra.mxu0 0.0
        %2665 = vmatprep.subr.mxu0 0.0
        %2666 = vmatpush1.msra.mxu0 0.0
        %2667 = vmatprep.subr.mxu0 0.0
        %2668 = vmatpush1.msra.mxu0 0.0
        %2669 = vmatprep.subr.mxu0 0.0
        %2670 = vmatpush1.msra.mxu0 0.0
        %2671 = vmatprep.subr.mxu0 0.0
        %2672 = vmatpush1.msra.mxu0 0.0
        %2673 = vmatprep.subr.mxu0 0.0
        %2674 = vmatpush1.msra.mxu0 0.0
        %2675 = vmatprep.subr.mxu0 0.0
        %2676 = vmatpush1.msra.mxu0 0.0
        %2677 = vmatprep.subr.mxu0 0.0
        %2678 = vmatpush1.msra.mxu0 0.0
        %2679 = vmatprep.subr.mxu0 0.0
        %2680 = vmatpush1.msra.mxu0 0.0
        %2681 = vmatprep.subr.mxu0 0.0
        %2682 = vmatpush1.msra.mxu0 0.0
        %2683 = vmatprep.subr.mxu0 0.0
        %v2684 = vand.u32 %v166, 4294901760
        %2685 = vmatpush1.msra.mxu0 %v2684
        %2686 = vmatprep.subr.mxu0 0.0
        %v2687 = vand.u32 %v165, 4294901760
        %2688 = vmatpush1.msra.mxu0 %v2687
        %2689 = vmatprep.subr.mxu0 0.0
        %2690 = vmatpush2.msra.mxu0 0.0
        %2691 = vmatprep.subr.mxu0 0.0
        %2692 = vmatpush2.msra.mxu0 0.0
        %2693 = vmatprep.subr.mxu0 0.0
        %2694 = vmatpush2.msra.mxu0 0.0
        %2695 = vmatprep.subr.mxu0 0.0
        %2696 = vmatpush2.msra.mxu0 0.0
        %2697 = vmatprep.subr.mxu0 0.0
        %2698 = vmatpush2.msra.mxu0 0.0
        %2699 = vmatprep.subr.mxu0 0.0
        %2700 = vmatpush2.msra.mxu0 0.0
        %2701 = vmatprep.subr.mxu0 0.0
        %2702 = vmatpush2.msra.mxu0 0.0
        %2703 = vmatprep.subr.mxu0 0.0
        %2704 = vmatpush2.msra.mxu0 0.0
        %2705 = vmatprep.subr.mxu0 0.0
        %2706 = vmatpush2.msra.mxu0 0.0
        %2707 = vmatprep.subr.mxu0 0.0
        %2708 = vmatpush2.msra.mxu0 0.0
        %2709 = vmatprep.subr.mxu0 0.0
        %2710 = vmatpush2.msra.mxu0 0.0
        %2711 = vmatprep.subr.mxu0 0.0
        %2712 = vmatpush2.msra.mxu0 0.0
        %2713 = vmatprep.subr.mxu0 0.0
        %2714 = vmatpush2.msra.mxu0 0.0
        %2715 = vmatprep.subr.mxu0 0.0
        %2716 = vmatpush2.msra.mxu0 0.0
        %2717 = vmatprep.subr.mxu0 0.0
        %2718 = vmatpush2.msra.mxu0 0.0
        %2719 = vmatprep.subr.mxu0 0.0
        %2720 = vmatpush2.msra.mxu0 0.0
        %2721 = vmatprep.mubr.f32.mxu0 0.0
        %v2722 = vand.u32 %v2227, 4294901760
        %2723 = vmatmul.mubr.f32.gmra.mxu0 %v2722
        %v2724 = vpop.f32.mrf.mxu0
        %v2725 = vadd.f32 %v2646, %v2724
        %v2726 = vpop.f32.mrf.mxu0
        %2727 = vmatprep.mubr.f32.mxu0 0.0
        %v2728 = vand.u32 %v2230, 4294901760
        %2729 = vmatmul.mubr.f32.gmra.mxu0 %v2728
        %v2730 = vpop.f32.mrf.mxu0
        %v2731 = vadd.f32 %v2652, %v2730
        %v2732 = vpop.f32.mrf.mxu0
        %2733 = vdwg.mxu0
        %2734 = vmatprep.subr.mxu0 0.0
        %2735 = vmatpush1.msra.mxu0 0.0
        %2736 = vmatprep.subr.mxu0 0.0
        %2737 = vmatpush1.msra.mxu0 0.0
        %2738 = vmatprep.subr.mxu0 0.0
        %2739 = vmatpush1.msra.mxu0 0.0
        %2740 = vmatprep.subr.mxu0 0.0
        %2741 = vmatpush1.msra.mxu0 0.0
        %2742 = vmatprep.subr.mxu0 0.0
        %2743 = vmatpush1.msra.mxu0 0.0
        %2744 = vmatprep.subr.mxu0 0.0
        %2745 = vmatpush1.msra.mxu0 0.0
        %2746 = vmatprep.subr.mxu0 0.0
        %2747 = vmatpush1.msra.mxu0 0.0
        %2748 = vmatprep.subr.mxu0 0.0
        %2749 = vmatpush1.msra.mxu0 0.0
        %2750 = vmatprep.subr.mxu0 0.0
        %2751 = vmatpush1.msra.mxu0 0.0
        %2752 = vmatprep.subr.mxu0 0.0
        %2753 = vmatpush1.msra.mxu0 0.0
        %2754 = vmatprep.subr.mxu0 0.0
        %2755 = vmatpush1.msra.mxu0 0.0
        %2756 = vmatprep.subr.mxu0 0.0
        %2757 = vmatpush1.msra.mxu0 0.0
        %2758 = vmatprep.subr.mxu0 0.0
        %2759 = vmatpush1.msra.mxu0 0.0
        %2760 = vmatprep.subr.mxu0 0.0
        %2761 = vmatpush1.msra.mxu0 0.0
        %2762 = vmatprep.subr.mxu0 0.0
        %v2763 = vand.u32 %v2731, 4294901760
        %2764 = vmatpush1.msra.mxu0 %v2763
        %2765 = vmatprep.subr.mxu0 0.0
        %v2766 = vand.u32 %v2725, 4294901760
        %2767 = vmatpush1.msra.mxu0 %v2766
        %2768 = vmatprep.subr.mxu0 0.0
        %2769 = vmatpush2.msra.mxu0 0.0
        %2770 = vmatprep.subr.mxu0 0.0
        %2771 = vmatpush2.msra.mxu0 0.0
        %2772 = vmatprep.subr.mxu0 0.0
        %2773 = vmatpush2.msra.mxu0 0.0
        %2774 = vmatprep.subr.mxu0 0.0
        %2775 = vmatpush2.msra.mxu0 0.0
        %2776 = vmatprep.subr.mxu0 0.0
        %2777 = vmatpush2.msra.mxu0 0.0
        %2778 = vmatprep.subr.mxu0 0.0
        %2779 = vmatpush2.msra.mxu0 0.0
        %2780 = vmatprep.subr.mxu0 0.0
        %2781 = vmatpush2.msra.mxu0 0.0
        %2782 = vmatprep.subr.mxu0 0.0
        %2783 = vmatpush2.msra.mxu0 0.0
        %2784 = vmatprep.subr.mxu0 0.0
        %2785 = vmatpush2.msra.mxu0 0.0
        %2786 = vmatprep.subr.mxu0 0.0
        %2787 = vmatpush2.msra.mxu0 0.0
        %2788 = vmatprep.subr.mxu0 0.0
        %2789 = vmatpush2.msra.mxu0 0.0
        %2790 = vmatprep.subr.mxu0 0.0
        %2791 = vmatpush2.msra.mxu0 0.0
        %2792 = vmatprep.subr.mxu0 0.0
        %2793 = vmatpush2.msra.mxu0 0.0
        %2794 = vmatprep.subr.mxu0 0.0
        %2795 = vmatpush2.msra.mxu0 0.0
        %2796 = vmatprep.subr.mxu0 0.0
        %2797 = vmatpush2.msra.mxu0 0.0
        %2798 = vmatprep.subr.mxu0 0.0
        %2799 = vmatpush2.msra.mxu0 0.0
        %2800 = vmatprep.mubr.f32.mxu0 0.0
        %v2801 = vand.u32 %v698, 4294901760
        %v2802 = vsub.f32 %v698, %v2801
        %v2803 = vand.u32 %v2802, 4294901760
        %v2804 = vsub.f32 %v2802, %v2803
        %v2805 = vand.u32 %v2804, 4294901760
        %2806 = vmatmul.mubr.f32.gmra.mxu0 %v2805
        %v2807 = vpop.f32.mrf.mxu0
        %v2808 = vadd.f32 0.0, %v2807
        %v2809 = vpop.f32.mrf.mxu0
        %2810 = vmatprep.mubr.f32.mxu0 0.0
        %v2811 = vand.u32 %v701, 4294901760
        %v2812 = vsub.f32 %v701, %v2811
        %v2813 = vand.u32 %v2812, 4294901760
        %v2814 = vsub.f32 %v2812, %v2813
        %v2815 = vand.u32 %v2814, 4294901760
        %2816 = vmatmul.mubr.f32.gmra.mxu0 %v2815
        %v2817 = vpop.f32.mrf.mxu0
        %v2818 = vadd.f32 0.0, %v2817
        %v2819 = vpop.f32.mrf.mxu0
        %2820 = vdwg.mxu0
        %2821 = vmatprep.subr.mxu0 0.0
        %2822 = vmatpush1.msra.mxu0 0.0
        %2823 = vmatprep.subr.mxu0 0.0
        %2824 = vmatpush1.msra.mxu0 0.0
        %2825 = vmatprep.subr.mxu0 0.0
        %2826 = vmatpush1.msra.mxu0 0.0
        %2827 = vmatprep.subr.mxu0 0.0
        %2828 = vmatpush1.msra.mxu0 0.0
        %2829 = vmatprep.subr.mxu0 0.0
        %2830 = vmatpush1.msra.mxu0 0.0
        %2831 = vmatprep.subr.mxu0 0.0
        %2832 = vmatpush1.msra.mxu0 0.0
        %2833 = vmatprep.subr.mxu0 0.0
        %2834 = vmatpush1.msra.mxu0 0.0
        %2835 = vmatprep.subr.mxu0 0.0
        %2836 = vmatpush1.msra.mxu0 0.0
        %2837 = vmatprep.subr.mxu0 0.0
        %2838 = vmatpush1.msra.mxu0 0.0
        %2839 = vmatprep.subr.mxu0 0.0
        %2840 = vmatpush1.msra.mxu0 0.0
        %2841 = vmatprep.subr.mxu0 0.0
        %2842 = vmatpush1.msra.mxu0 0.0
        %2843 = vmatprep.subr.mxu0 0.0
        %2844 = vmatpush1.msra.mxu0 0.0
        %2845 = vmatprep.subr.mxu0 0.0
        %2846 = vmatpush1.msra.mxu0 0.0
        %2847 = vmatprep.subr.mxu0 0.0
        %2848 = vmatpush1.msra.mxu0 0.0
        %2849 = vmatprep.subr.mxu0 0.0
        %v2850 = vand.u32 %v2731, 4294901760
        %v2851 = vsub.f32 %v2731, %v2850
        %v2852 = vand.u32 %v2851, 4294901760
        %v2853 = vsub.f32 %v2851, %v2852
        %v2854 = vand.u32 %v2853, 4294901760
        %2855 = vmatpush1.msra.mxu0 %v2854
        %2856 = vmatprep.subr.mxu0 0.0
        %v2857 = vand.u32 %v2725, 4294901760
        %v2858 = vsub.f32 %v2725, %v2857
        %v2859 = vand.u32 %v2858, 4294901760
        %v2860 = vsub.f32 %v2858, %v2859
        %v2861 = vand.u32 %v2860, 4294901760
        %2862 = vmatpush1.msra.mxu0 %v2861
        %2863 = vmatprep.subr.mxu0 0.0
        %2864 = vmatpush2.msra.mxu0 0.0
        %2865 = vmatprep.subr.mxu0 0.0
        %2866 = vmatpush2.msra.mxu0 0.0
        %2867 = vmatprep.subr.mxu0 0.0
        %2868 = vmatpush2.msra.mxu0 0.0
        %2869 = vmatprep.subr.mxu0 0.0
        %2870 = vmatpush2.msra.mxu0 0.0
        %2871 = vmatprep.subr.mxu0 0.0
        %2872 = vmatpush2.msra.mxu0 0.0
        %2873 = vmatprep.subr.mxu0 0.0
        %2874 = vmatpush2.msra.mxu0 0.0
        %2875 = vmatprep.subr.mxu0 0.0
        %2876 = vmatpush2.msra.mxu0 0.0
        %2877 = vmatprep.subr.mxu0 0.0
        %2878 = vmatpush2.msra.mxu0 0.0
        %2879 = vmatprep.subr.mxu0 0.0
        %2880 = vmatpush2.msra.mxu0 0.0
        %2881 = vmatprep.subr.mxu0 0.0
        %2882 = vmatpush2.msra.mxu0 0.0
        %2883 = vmatprep.subr.mxu0 0.0
        %2884 = vmatpush2.msra.mxu0 0.0
        %2885 = vmatprep.subr.mxu0 0.0
        %2886 = vmatpush2.msra.mxu0 0.0
        %2887 = vmatprep.subr.mxu0 0.0
        %2888 = vmatpush2.msra.mxu0 0.0
        %2889 = vmatprep.subr.mxu0 0.0
        %2890 = vmatpush2.msra.mxu0 0.0
        %2891 = vmatprep.subr.mxu0 0.0
        %2892 = vmatpush2.msra.mxu0 0.0
        %2893 = vmatprep.subr.mxu0 0.0
        %2894 = vmatpush2.msra.mxu0 0.0
        %2895 = vmatprep.mubr.f32.mxu0 0.0
        %v2896 = vand.u32 %v698, 4294901760
        %2897 = vmatmul.mubr.f32.gmra.mxu0 %v2896
        %v2898 = vpop.f32.mrf.mxu0
        %v2899 = vadd.f32 %v2808, %v2898
        %v2900 = vpop.f32.mrf.mxu0
        %2901 = vmatprep.mubr.f32.mxu0 0.0
        %v2902 = vand.u32 %v701, 4294901760
        %2903 = vmatmul.mubr.f32.gmra.mxu0 %v2902
        %v2904 = vpop.f32.mrf.mxu0
        %v2905 = vadd.f32 %v2818, %v2904
        %v2906 = vpop.f32.mrf.mxu0
        %2907 = vdwg.mxu0
        %2908 = vmatprep.subr.mxu0 0.0
        %2909 = vmatpush1.msra.mxu0 0.0
        %2910 = vmatprep.subr.mxu0 0.0
        %2911 = vmatpush1.msra.mxu0 0.0
        %2912 = vmatprep.subr.mxu0 0.0
        %2913 = vmatpush1.msra.mxu0 0.0
        %2914 = vmatprep.subr.mxu0 0.0
        %2915 = vmatpush1.msra.mxu0 0.0
        %2916 = vmatprep.subr.mxu0 0.0
        %2917 = vmatpush1.msra.mxu0 0.0
        %2918 = vmatprep.subr.mxu0 0.0
        %2919 = vmatpush1.msra.mxu0 0.0
        %2920 = vmatprep.subr.mxu0 0.0
        %2921 = vmatpush1.msra.mxu0 0.0
        %2922 = vmatprep.subr.mxu0 0.0
        %2923 = vmatpush1.msra.mxu0 0.0
        %2924 = vmatprep.subr.mxu0 0.0
        %2925 = vmatpush1.msra.mxu0 0.0
        %2926 = vmatprep.subr.mxu0 0.0
        %2927 = vmatpush1.msra.mxu0 0.0
        %2928 = vmatprep.subr.mxu0 0.0
        %2929 = vmatpush1.msra.mxu0 0.0
        %2930 = vmatprep.subr.mxu0 0.0
        %2931 = vmatpush1.msra.mxu0 0.0
        %2932 = vmatprep.subr.mxu0 0.0
        %2933 = vmatpush1.msra.mxu0 0.0
        %2934 = vmatprep.subr.mxu0 0.0
        %2935 = vmatpush1.msra.mxu0 0.0
        %2936 = vmatprep.subr.mxu0 0.0
        %v2937 = vand.u32 %v2731, 4294901760
        %v2938 = vsub.f32 %v2731, %v2937
        %2939 = vmatpush1.msra.mxu0 %v2938
        %2940 = vmatprep.subr.mxu0 0.0
        %v2941 = vand.u32 %v2725, 4294901760
        %v2942 = vsub.f32 %v2725, %v2941
        %2943 = vmatpush1.msra.mxu0 %v2942
        %2944 = vmatprep.subr.mxu0 0.0
        %2945 = vmatpush2.msra.mxu0 0.0
        %2946 = vmatprep.subr.mxu0 0.0
        %2947 = vmatpush2.msra.mxu0 0.0
        %2948 = vmatprep.subr.mxu0 0.0
        %2949 = vmatpush2.msra.mxu0 0.0
        %2950 = vmatprep.subr.mxu0 0.0
        %2951 = vmatpush2.msra.mxu0 0.0
        %2952 = vmatprep.subr.mxu0 0.0
        %2953 = vmatpush2.msra.mxu0 0.0
        %2954 = vmatprep.subr.mxu0 0.0
        %2955 = vmatpush2.msra.mxu0 0.0
        %2956 = vmatprep.subr.mxu0 0.0
        %2957 = vmatpush2.msra.mxu0 0.0
        %2958 = vmatprep.subr.mxu0 0.0
        %2959 = vmatpush2.msra.mxu0 0.0
        %2960 = vmatprep.subr.mxu0 0.0
        %2961 = vmatpush2.msra.mxu0 0.0
        %2962 = vmatprep.subr.mxu0 0.0
        %2963 = vmatpush2.msra.mxu0 0.0
        %2964 = vmatprep.subr.mxu0 0.0
        %2965 = vmatpush2.msra.mxu0 0.0
        %2966 = vmatprep.subr.mxu0 0.0
        %2967 = vmatpush2.msra.mxu0 0.0
        %2968 = vmatprep.subr.mxu0 0.0
        %2969 = vmatpush2.msra.mxu0 0.0
        %2970 = vmatprep.subr.mxu0 0.0
        %2971 = vmatpush2.msra.mxu0 0.0
        %2972 = vmatprep.subr.mxu0 0.0
        %2973 = vmatpush2.msra.mxu0 0.0
        %2974 = vmatprep.subr.mxu0 0.0
        %2975 = vmatpush2.msra.mxu0 0.0
        %2976 = vmatprep.mubr.f32.mxu0 0.0
        %v2977 = vand.u32 %v698, 4294901760
        %v2978 = vsub.f32 %v698, %v2977
        %2979 = vmatmul.mubr.f32.gmra.mxu0 %v2978
        %v2980 = vpop.f32.mrf.mxu0
        %v2981 = vadd.f32 %v2899, %v2980
        %v2982 = vpop.f32.mrf.mxu0
        %2983 = vmatprep.mubr.f32.mxu0 0.0
        %v2984 = vand.u32 %v701, 4294901760
        %v2985 = vsub.f32 %v701, %v2984
        %2986 = vmatmul.mubr.f32.gmra.mxu0 %v2985
        %v2987 = vpop.f32.mrf.mxu0
        %v2988 = vadd.f32 %v2905, %v2987
        %v2989 = vpop.f32.mrf.mxu0
        %2990 = vdwg.mxu0
        %2991 = vmatprep.subr.mxu0 0.0
        %2992 = vmatpush1.msra.mxu0 0.0
        %2993 = vmatprep.subr.mxu0 0.0
        %2994 = vmatpush1.msra.mxu0 0.0
        %2995 = vmatprep.subr.mxu0 0.0
        %2996 = vmatpush1.msra.mxu0 0.0
        %2997 = vmatprep.subr.mxu0 0.0
        %2998 = vmatpush1.msra.mxu0 0.0
        %2999 = vmatprep.subr.mxu0 0.0
        %3000 = vmatpush1.msra.mxu0 0.0
        %3001 = vmatprep.subr.mxu0 0.0
        %3002 = vmatpush1.msra.mxu0 0.0
        %3003 = vmatprep.subr.mxu0 0.0
        %3004 = vmatpush1.msra.mxu0 0.0
        %3005 = vmatprep.subr.mxu0 0.0
        %3006 = vmatpush1.msra.mxu0 0.0
        %3007 = vmatprep.subr.mxu0 0.0
        %3008 = vmatpush1.msra.mxu0 0.0
        %3009 = vmatprep.subr.mxu0 0.0
        %3010 = vmatpush1.msra.mxu0 0.0
        %3011 = vmatprep.subr.mxu0 0.0
        %3012 = vmatpush1.msra.mxu0 0.0
        %3013 = vmatprep.subr.mxu0 0.0
        %3014 = vmatpush1.msra.mxu0 0.0
        %3015 = vmatprep.subr.mxu0 0.0
        %3016 = vmatpush1.msra.mxu0 0.0
        %3017 = vmatprep.subr.mxu0 0.0
        %3018 = vmatpush1.msra.mxu0 0.0
        %3019 = vmatprep.subr.mxu0 0.0
        %v3020 = vand.u32 %v2731, 4294901760
        %3021 = vmatpush1.msra.mxu0 %v3020
        %3022 = vmatprep.subr.mxu0 0.0
        %v3023 = vand.u32 %v2725, 4294901760
        %3024 = vmatpush1.msra.mxu0 %v3023
        %3025 = vmatprep.subr.mxu0 0.0
        %3026 = vmatpush2.msra.mxu0 0.0
        %3027 = vmatprep.subr.mxu0 0.0
        %3028 = vmatpush2.msra.mxu0 0.0
        %3029 = vmatprep.subr.mxu0 0.0
        %3030 = vmatpush2.msra.mxu0 0.0
        %3031 = vmatprep.subr.mxu0 0.0
        %3032 = vmatpush2.msra.mxu0 0.0
        %3033 = vmatprep.subr.mxu0 0.0
        %3034 = vmatpush2.msra.mxu0 0.0
        %3035 = vmatprep.subr.mxu0 0.0
        %3036 = vmatpush2.msra.mxu0 0.0
        %3037 = vmatprep.subr.mxu0 0.0
        %3038 = vmatpush2.msra.mxu0 0.0
        %3039 = vmatprep.subr.mxu0 0.0
        %3040 = vmatpush2.msra.mxu0 0.0
        %3041 = vmatprep.subr.mxu0 0.0
        %3042 = vmatpush2.msra.mxu0 0.0
        %3043 = vmatprep.subr.mxu0 0.0
        %3044 = vmatpush2.msra.mxu0 0.0
        %3045 = vmatprep.subr.mxu0 0.0
        %3046 = vmatpush2.msra.mxu0 0.0
        %3047 = vmatprep.subr.mxu0 0.0
        %3048 = vmatpush2.msra.mxu0 0.0
        %3049 = vmatprep.subr.mxu0 0.0
        %3050 = vmatpush2.msra.mxu0 0.0
        %3051 = vmatprep.subr.mxu0 0.0
        %3052 = vmatpush2.msra.mxu0 0.0
        %3053 = vmatprep.subr.mxu0 0.0
        %3054 = vmatpush2.msra.mxu0 0.0
        %3055 = vmatprep.subr.mxu0 0.0
        %3056 = vmatpush2.msra.mxu0 0.0
        %3057 = vmatprep.mubr.f32.mxu0 0.0
        %v3058 = vand.u32 %v698, 4294901760
        %v3059 = vsub.f32 %v698, %v3058
        %v3060 = vand.u32 %v3059, 4294901760
        %3061 = vmatmul.mubr.f32.gmra.mxu0 %v3060
        %v3062 = vpop.f32.mrf.mxu0
        %v3063 = vadd.f32 %v2981, %v3062
        %v3064 = vpop.f32.mrf.mxu0
        %3065 = vmatprep.mubr.f32.mxu0 0.0
        %v3066 = vand.u32 %v701, 4294901760
        %v3067 = vsub.f32 %v701, %v3066
        %v3068 = vand.u32 %v3067, 4294901760
        %3069 = vmatmul.mubr.f32.gmra.mxu0 %v3068
        %v3070 = vpop.f32.mrf.mxu0
        %v3071 = vadd.f32 %v2988, %v3070
        %v3072 = vpop.f32.mrf.mxu0
        %3073 = vdwg.mxu0
        %3074 = vmatprep.subr.mxu0 0.0
        %3075 = vmatpush1.msra.mxu0 0.0
        %3076 = vmatprep.subr.mxu0 0.0
        %3077 = vmatpush1.msra.mxu0 0.0
        %3078 = vmatprep.subr.mxu0 0.0
        %3079 = vmatpush1.msra.mxu0 0.0
        %3080 = vmatprep.subr.mxu0 0.0
        %3081 = vmatpush1.msra.mxu0 0.0
        %3082 = vmatprep.subr.mxu0 0.0
        %3083 = vmatpush1.msra.mxu0 0.0
        %3084 = vmatprep.subr.mxu0 0.0
        %3085 = vmatpush1.msra.mxu0 0.0
        %3086 = vmatprep.subr.mxu0 0.0
        %3087 = vmatpush1.msra.mxu0 0.0
        %3088 = vmatprep.subr.mxu0 0.0
        %3089 = vmatpush1.msra.mxu0 0.0
        %3090 = vmatprep.subr.mxu0 0.0
        %3091 = vmatpush1.msra.mxu0 0.0
        %3092 = vmatprep.subr.mxu0 0.0
        %3093 = vmatpush1.msra.mxu0 0.0
        %3094 = vmatprep.subr.mxu0 0.0
        %3095 = vmatpush1.msra.mxu0 0.0
        %3096 = vmatprep.subr.mxu0 0.0
        %3097 = vmatpush1.msra.mxu0 0.0
        %3098 = vmatprep.subr.mxu0 0.0
        %3099 = vmatpush1.msra.mxu0 0.0
        %3100 = vmatprep.subr.mxu0 0.0
        %3101 = vmatpush1.msra.mxu0 0.0
        %3102 = vmatprep.subr.mxu0 0.0
        %v3103 = vand.u32 %v2731, 4294901760
        %v3104 = vsub.f32 %v2731, %v3103
        %v3105 = vand.u32 %v3104, 4294901760
        %3106 = vmatpush1.msra.mxu0 %v3105
        %3107 = vmatprep.subr.mxu0 0.0
        %v3108 = vand.u32 %v2725, 4294901760
        %v3109 = vsub.f32 %v2725, %v3108
        %v3110 = vand.u32 %v3109, 4294901760
        %3111 = vmatpush1.msra.mxu0 %v3110
        %3112 = vmatprep.subr.mxu0 0.0
        %3113 = vmatpush2.msra.mxu0 0.0
        %3114 = vmatprep.subr.mxu0 0.0
        %3115 = vmatpush2.msra.mxu0 0.0
        %3116 = vmatprep.subr.mxu0 0.0
        %3117 = vmatpush2.msra.mxu0 0.0
        %3118 = vmatprep.subr.mxu0 0.0
        %3119 = vmatpush2.msra.mxu0 0.0
        %3120 = vmatprep.subr.mxu0 0.0
        %3121 = vmatpush2.msra.mxu0 0.0
        %3122 = vmatprep.subr.mxu0 0.0
        %3123 = vmatpush2.msra.mxu0 0.0
        %3124 = vmatprep.subr.mxu0 0.0
        %3125 = vmatpush2.msra.mxu0 0.0
        %3126 = vmatprep.subr.mxu0 0.0
        %3127 = vmatpush2.msra.mxu0 0.0
        %3128 = vmatprep.subr.mxu0 0.0
        %3129 = vmatpush2.msra.mxu0 0.0
        %3130 = vmatprep.subr.mxu0 0.0
        %3131 = vmatpush2.msra.mxu0 0.0
        %3132 = vmatprep.subr.mxu0 0.0
        %3133 = vmatpush2.msra.mxu0 0.0
        %3134 = vmatprep.subr.mxu0 0.0
        %3135 = vmatpush2.msra.mxu0 0.0
        %3136 = vmatprep.subr.mxu0 0.0
        %3137 = vmatpush2.msra.mxu0 0.0
        %3138 = vmatprep.subr.mxu0 0.0
        %3139 = vmatpush2.msra.mxu0 0.0
        %3140 = vmatprep.subr.mxu0 0.0
        %3141 = vmatpush2.msra.mxu0 0.0
        %3142 = vmatprep.subr.mxu0 0.0
        %3143 = vmatpush2.msra.mxu0 0.0
        %3144 = vmatprep.mubr.f32.mxu0 0.0
        %v3145 = vand.u32 %v698, 4294901760
        %3146 = vmatmul.mubr.f32.gmra.mxu0 %v3145
        %v3147 = vpop.f32.mrf.mxu0
        %v3148 = vadd.f32 %v3063, %v3147
        %v3149 = vpop.f32.mrf.mxu0
        %3150 = vmatprep.mubr.f32.mxu0 0.0
        %v3151 = vand.u32 %v701, 4294901760
        %3152 = vmatmul.mubr.f32.gmra.mxu0 %v3151
        %v3153 = vpop.f32.mrf.mxu0
        %v3154 = vadd.f32 %v3071, %v3153
        %v3155 = vpop.f32.mrf.mxu0
        %3156 = vdwg.mxu0
        %3157 = vmatprep.subr.mxu0 0.0
        %3158 = vmatpush1.msra.mxu0 0.0
        %3159 = vmatprep.subr.mxu0 0.0
        %3160 = vmatpush1.msra.mxu0 0.0
        %3161 = vmatprep.subr.mxu0 0.0
        %3162 = vmatpush1.msra.mxu0 0.0
        %3163 = vmatprep.subr.mxu0 0.0
        %3164 = vmatpush1.msra.mxu0 0.0
        %3165 = vmatprep.subr.mxu0 0.0
        %3166 = vmatpush1.msra.mxu0 0.0
        %3167 = vmatprep.subr.mxu0 0.0
        %3168 = vmatpush1.msra.mxu0 0.0
        %3169 = vmatprep.subr.mxu0 0.0
        %3170 = vmatpush1.msra.mxu0 0.0
        %3171 = vmatprep.subr.mxu0 0.0
        %3172 = vmatpush1.msra.mxu0 0.0
        %3173 = vmatprep.subr.mxu0 0.0
        %3174 = vmatpush1.msra.mxu0 0.0
        %3175 = vmatprep.subr.mxu0 0.0
        %3176 = vmatpush1.msra.mxu0 0.0
        %3177 = vmatprep.subr.mxu0 0.0
        %3178 = vmatpush1.msra.mxu0 0.0
        %3179 = vmatprep.subr.mxu0 0.0
        %3180 = vmatpush1.msra.mxu0 0.0
        %3181 = vmatprep.subr.mxu0 0.0
        %3182 = vmatpush1.msra.mxu0 0.0
        %3183 = vmatprep.subr.mxu0 0.0
        %3184 = vmatpush1.msra.mxu0 0.0
        %3185 = vmatprep.subr.mxu0 0.0
        %v3186 = vand.u32 %v2731, 4294901760
        %3187 = vmatpush1.msra.mxu0 %v3186
        %3188 = vmatprep.subr.mxu0 0.0
        %v3189 = vand.u32 %v2725, 4294901760
        %3190 = vmatpush1.msra.mxu0 %v3189
        %3191 = vmatprep.subr.mxu0 0.0
        %3192 = vmatpush2.msra.mxu0 0.0
        %3193 = vmatprep.subr.mxu0 0.0
        %3194 = vmatpush2.msra.mxu0 0.0
        %3195 = vmatprep.subr.mxu0 0.0
        %3196 = vmatpush2.msra.mxu0 0.0
        %3197 = vmatprep.subr.mxu0 0.0
        %3198 = vmatpush2.msra.mxu0 0.0
        %3199 = vmatprep.subr.mxu0 0.0
        %3200 = vmatpush2.msra.mxu0 0.0
        %3201 = vmatprep.subr.mxu0 0.0
        %3202 = vmatpush2.msra.mxu0 0.0
        %3203 = vmatprep.subr.mxu0 0.0
        %3204 = vmatpush2.msra.mxu0 0.0
        %3205 = vmatprep.subr.mxu0 0.0
        %3206 = vmatpush2.msra.mxu0 0.0
        %3207 = vmatprep.subr.mxu0 0.0
        %3208 = vmatpush2.msra.mxu0 0.0
        %3209 = vmatprep.subr.mxu0 0.0
        %3210 = vmatpush2.msra.mxu0 0.0
        %3211 = vmatprep.subr.mxu0 0.0
        %3212 = vmatpush2.msra.mxu0 0.0
        %3213 = vmatprep.subr.mxu0 0.0
        %3214 = vmatpush2.msra.mxu0 0.0
        %3215 = vmatprep.subr.mxu0 0.0
        %3216 = vmatpush2.msra.mxu0 0.0
        %3217 = vmatprep.subr.mxu0 0.0
        %3218 = vmatpush2.msra.mxu0 0.0
        %3219 = vmatprep.subr.mxu0 0.0
        %3220 = vmatpush2.msra.mxu0 0.0
        %3221 = vmatprep.subr.mxu0 0.0
        %3222 = vmatpush2.msra.mxu0 0.0
        %3223 = vmatprep.mubr.f32.mxu0 0.0
        %v3224 = vand.u32 %v698, 4294901760
        %3225 = vmatmul.mubr.f32.gmra.mxu0 %v3224
        %v3226 = vpop.f32.mrf.mxu0
        %v3227 = vadd.f32 %v3148, %v3226
        %v3228 = vpop.f32.mrf.mxu0
        %3229 = vmatprep.mubr.f32.mxu0 0.0
        %v3230 = vand.u32 %v701, 4294901760
        %3231 = vmatmul.mubr.f32.gmra.mxu0 %v3230
        %v3232 = vpop.f32.mrf.mxu0
        %v3233 = vadd.f32 %v3154, %v3232
        %v3234 = vpop.f32.mrf.mxu0
        %3235 = vdwg.mxu0
        %s3236 = scalar_lea.vmem %s139, 32 [#allocation7]
        %3237 = vst.msk [vmem:[%s3236] sm:$0xff] %vm188, %v3227
        %3238 = vst.msk [vmem:[%s3236 + $0x8] sm:$0xff] %vm188, %v3233
        %s3239 = scalar_lea.vmem %s121, 48 [#allocation4]
        %v3240 = vld [vmem:[%s3239] sm:$0xff]
        %v3241 = vld [vmem:[%s3239 + $0x8] sm:$0xff]
        %v3243 = vsel %vm188, %v3240, 0
        %v3246 = vsel %vm188, %v3241, 0
        %3248 = vmatprep.subr.mxu0 0.0
        %3249 = vmatpush1.msra.mxu0 0.0
        %3250 = vmatprep.subr.mxu0 0.0
        %3251 = vmatpush1.msra.mxu0 0.0
        %3252 = vmatprep.subr.mxu0 0.0
        %3253 = vmatpush1.msra.mxu0 0.0
        %3254 = vmatprep.subr.mxu0 0.0
        %3255 = vmatpush1.msra.mxu0 0.0
        %3256 = vmatprep.subr.mxu0 0.0
        %3257 = vmatpush1.msra.mxu0 0.0
        %3258 = vmatprep.subr.mxu0 0.0
        %3259 = vmatpush1.msra.mxu0 0.0
        %3260 = vmatprep.subr.mxu0 0.0
        %3261 = vmatpush1.msra.mxu0 0.0
        %3262 = vmatprep.subr.mxu0 0.0
        %3263 = vmatpush1.msra.mxu0 0.0
        %3264 = vmatprep.subr.mxu0 0.0
        %3265 = vmatpush1.msra.mxu0 0.0
        %3266 = vmatprep.subr.mxu0 0.0
        %3267 = vmatpush1.msra.mxu0 0.0
        %3268 = vmatprep.subr.mxu0 0.0
        %3269 = vmatpush1.msra.mxu0 0.0
        %3270 = vmatprep.subr.mxu0 0.0
        %3271 = vmatpush1.msra.mxu0 0.0
        %3272 = vmatprep.subr.mxu0 0.0
        %3273 = vmatpush1.msra.mxu0 0.0
        %3274 = vmatprep.subr.mxu0 0.0
        %3275 = vmatpush1.msra.mxu0 0.0
        %3276 = vmatprep.subr.mxu0 0.0
        %v3277 = vand.u32 %v166, 4294901760
        %3278 = vmatpush1.msra.mxu0 %v3277
        %3279 = vmatprep.subr.mxu0 0.0
        %v3280 = vand.u32 %v165, 4294901760
        %3281 = vmatpush1.msra.mxu0 %v3280
        %3282 = vmatprep.subr.mxu0 0.0
        %3283 = vmatpush2.msra.mxu0 0.0
        %3284 = vmatprep.subr.mxu0 0.0
        %3285 = vmatpush2.msra.mxu0 0.0
        %3286 = vmatprep.subr.mxu0 0.0
        %3287 = vmatpush2.msra.mxu0 0.0
        %3288 = vmatprep.subr.mxu0 0.0
        %3289 = vmatpush2.msra.mxu0 0.0
        %3290 = vmatprep.subr.mxu0 0.0
        %3291 = vmatpush2.msra.mxu0 0.0
        %3292 = vmatprep.subr.mxu0 0.0
        %3293 = vmatpush2.msra.mxu0 0.0
        %3294 = vmatprep.subr.mxu0 0.0
        %3295 = vmatpush2.msra.mxu0 0.0
        %3296 = vmatprep.subr.mxu0 0.0
        %3297 = vmatpush2.msra.mxu0 0.0
        %3298 = vmatprep.subr.mxu0 0.0
        %3299 = vmatpush2.msra.mxu0 0.0
        %3300 = vmatprep.subr.mxu0 0.0
        %3301 = vmatpush2.msra.mxu0 0.0
        %3302 = vmatprep.subr.mxu0 0.0
        %3303 = vmatpush2.msra.mxu0 0.0
        %3304 = vmatprep.subr.mxu0 0.0
        %3305 = vmatpush2.msra.mxu0 0.0
        %3306 = vmatprep.subr.mxu0 0.0
        %3307 = vmatpush2.msra.mxu0 0.0
        %3308 = vmatprep.subr.mxu0 0.0
        %3309 = vmatpush2.msra.mxu0 0.0
        %3310 = vmatprep.subr.mxu0 0.0
        %3311 = vmatpush2.msra.mxu0 0.0
        %3312 = vmatprep.subr.mxu0 0.0
        %3313 = vmatpush2.msra.mxu0 0.0
        %3314 = vmatprep.mubr.f32.mxu0 0.0
        %v3315 = vand.u32 %v3243, 4294901760
        %v3316 = vsub.f32 %v3243, %v3315
        %v3317 = vand.u32 %v3316, 4294901760
        %v3318 = vsub.f32 %v3316, %v3317
        %v3319 = vand.u32 %v3318, 4294901760
        %3320 = vmatmul.mubr.f32.gmra.mxu0 %v3319
        %v3321 = vpop.f32.mrf.mxu0
        %v3322 = vadd.f32 0.0, %v3321
        %v3323 = vpop.f32.mrf.mxu0
        %3324 = vmatprep.mubr.f32.mxu0 0.0
        %v3325 = vand.u32 %v3246, 4294901760
        %v3326 = vsub.f32 %v3246, %v3325
        %v3327 = vand.u32 %v3326, 4294901760
        %v3328 = vsub.f32 %v3326, %v3327
        %v3329 = vand.u32 %v3328, 4294901760
        %3330 = vmatmul.mubr.f32.gmra.mxu0 %v3329
        %v3331 = vpop.f32.mrf.mxu0
        %v3332 = vadd.f32 0.0, %v3331
        %v3333 = vpop.f32.mrf.mxu0
        %3334 = vdwg.mxu0
        %3335 = vmatprep.subr.mxu0 0.0
        %3336 = vmatpush1.msra.mxu0 0.0
        %3337 = vmatprep.subr.mxu0 0.0
        %3338 = vmatpush1.msra.mxu0 0.0
        %3339 = vmatprep.subr.mxu0 0.0
        %3340 = vmatpush1.msra.mxu0 0.0
        %3341 = vmatprep.subr.mxu0 0.0
        %3342 = vmatpush1.msra.mxu0 0.0
        %3343 = vmatprep.subr.mxu0 0.0
        %3344 = vmatpush1.msra.mxu0 0.0
        %3345 = vmatprep.subr.mxu0 0.0
        %3346 = vmatpush1.msra.mxu0 0.0
        %3347 = vmatprep.subr.mxu0 0.0
        %3348 = vmatpush1.msra.mxu0 0.0
        %3349 = vmatprep.subr.mxu0 0.0
        %3350 = vmatpush1.msra.mxu0 0.0
        %3351 = vmatprep.subr.mxu0 0.0
        %3352 = vmatpush1.msra.mxu0 0.0
        %3353 = vmatprep.subr.mxu0 0.0
        %3354 = vmatpush1.msra.mxu0 0.0
        %3355 = vmatprep.subr.mxu0 0.0
        %3356 = vmatpush1.msra.mxu0 0.0
        %3357 = vmatprep.subr.mxu0 0.0
        %3358 = vmatpush1.msra.mxu0 0.0
        %3359 = vmatprep.subr.mxu0 0.0
        %3360 = vmatpush1.msra.mxu0 0.0
        %3361 = vmatprep.subr.mxu0 0.0
        %3362 = vmatpush1.msra.mxu0 0.0
        %3363 = vmatprep.subr.mxu0 0.0
        %v3364 = vand.u32 %v166, 4294901760
        %v3365 = vsub.f32 %v166, %v3364
        %v3366 = vand.u32 %v3365, 4294901760
        %v3367 = vsub.f32 %v3365, %v3366
        %v3368 = vand.u32 %v3367, 4294901760
        %3369 = vmatpush1.msra.mxu0 %v3368
        %3370 = vmatprep.subr.mxu0 0.0
        %v3371 = vand.u32 %v165, 4294901760
        %v3372 = vsub.f32 %v165, %v3371
        %v3373 = vand.u32 %v3372, 4294901760
        %v3374 = vsub.f32 %v3372, %v3373
        %v3375 = vand.u32 %v3374, 4294901760
        %3376 = vmatpush1.msra.mxu0 %v3375
        %3377 = vmatprep.subr.mxu0 0.0
        %3378 = vmatpush2.msra.mxu0 0.0
        %3379 = vmatprep.subr.mxu0 0.0
        %3380 = vmatpush2.msra.mxu0 0.0
        %3381 = vmatprep.subr.mxu0 0.0
        %3382 = vmatpush2.msra.mxu0 0.0
        %3383 = vmatprep.subr.mxu0 0.0
        %3384 = vmatpush2.msra.mxu0 0.0
        %3385 = vmatprep.subr.mxu0 0.0
        %3386 = vmatpush2.msra.mxu0 0.0
        %3387 = vmatprep.subr.mxu0 0.0
        %3388 = vmatpush2.msra.mxu0 0.0
        %3389 = vmatprep.subr.mxu0 0.0
        %3390 = vmatpush2.msra.mxu0 0.0
        %3391 = vmatprep.subr.mxu0 0.0
        %3392 = vmatpush2.msra.mxu0 0.0
        %3393 = vmatprep.subr.mxu0 0.0
        %3394 = vmatpush2.msra.mxu0 0.0
        %3395 = vmatprep.subr.mxu0 0.0
        %3396 = vmatpush2.msra.mxu0 0.0
        %3397 = vmatprep.subr.mxu0 0.0
        %3398 = vmatpush2.msra.mxu0 0.0
        %3399 = vmatprep.subr.mxu0 0.0
        %3400 = vmatpush2.msra.mxu0 0.0
        %3401 = vmatprep.subr.mxu0 0.0
        %3402 = vmatpush2.msra.mxu0 0.0
        %3403 = vmatprep.subr.mxu0 0.0
        %3404 = vmatpush2.msra.mxu0 0.0
        %3405 = vmatprep.subr.mxu0 0.0
        %3406 = vmatpush2.msra.mxu0 0.0
        %3407 = vmatprep.subr.mxu0 0.0
        %3408 = vmatpush2.msra.mxu0 0.0
        %3409 = vmatprep.mubr.f32.mxu0 0.0
        %v3410 = vand.u32 %v3243, 4294901760
        %3411 = vmatmul.mubr.f32.gmra.mxu0 %v3410
        %v3412 = vpop.f32.mrf.mxu0
        %v3413 = vadd.f32 %v3322, %v3412
        %v3414 = vpop.f32.mrf.mxu0
        %3415 = vmatprep.mubr.f32.mxu0 0.0
        %v3416 = vand.u32 %v3246, 4294901760
        %3417 = vmatmul.mubr.f32.gmra.mxu0 %v3416
        %v3418 = vpop.f32.mrf.mxu0
        %v3419 = vadd.f32 %v3332, %v3418
        %v3420 = vpop.f32.mrf.mxu0
        %3421 = vdwg.mxu0
        %3422 = vmatprep.subr.mxu0 0.0
        %3423 = vmatpush1.msra.mxu0 0.0
        %3424 = vmatprep.subr.mxu0 0.0
        %3425 = vmatpush1.msra.mxu0 0.0
        %3426 = vmatprep.subr.mxu0 0.0
        %3427 = vmatpush1.msra.mxu0 0.0
        %3428 = vmatprep.subr.mxu0 0.0
        %3429 = vmatpush1.msra.mxu0 0.0
        %3430 = vmatprep.subr.mxu0 0.0
        %3431 = vmatpush1.msra.mxu0 0.0
        %3432 = vmatprep.subr.mxu0 0.0
        %3433 = vmatpush1.msra.mxu0 0.0
        %3434 = vmatprep.subr.mxu0 0.0
        %3435 = vmatpush1.msra.mxu0 0.0
        %3436 = vmatprep.subr.mxu0 0.0
        %3437 = vmatpush1.msra.mxu0 0.0
        %3438 = vmatprep.subr.mxu0 0.0
        %3439 = vmatpush1.msra.mxu0 0.0
        %3440 = vmatprep.subr.mxu0 0.0
        %3441 = vmatpush1.msra.mxu0 0.0
        %3442 = vmatprep.subr.mxu0 0.0
        %3443 = vmatpush1.msra.mxu0 0.0
        %3444 = vmatprep.subr.mxu0 0.0
        %3445 = vmatpush1.msra.mxu0 0.0
        %3446 = vmatprep.subr.mxu0 0.0
        %3447 = vmatpush1.msra.mxu0 0.0
        %3448 = vmatprep.subr.mxu0 0.0
        %3449 = vmatpush1.msra.mxu0 0.0
        %3450 = vmatprep.subr.mxu0 0.0
        %v3451 = vand.u32 %v166, 4294901760
        %v3452 = vsub.f32 %v166, %v3451
        %3453 = vmatpush1.msra.mxu0 %v3452
        %3454 = vmatprep.subr.mxu0 0.0
        %v3455 = vand.u32 %v165, 4294901760
        %v3456 = vsub.f32 %v165, %v3455
        %3457 = vmatpush1.msra.mxu0 %v3456
        %3458 = vmatprep.subr.mxu0 0.0
        %3459 = vmatpush2.msra.mxu0 0.0
        %3460 = vmatprep.subr.mxu0 0.0
        %3461 = vmatpush2.msra.mxu0 0.0
        %3462 = vmatprep.subr.mxu0 0.0
        %3463 = vmatpush2.msra.mxu0 0.0
        %3464 = vmatprep.subr.mxu0 0.0
        %3465 = vmatpush2.msra.mxu0 0.0
        %3466 = vmatprep.subr.mxu0 0.0
        %3467 = vmatpush2.msra.mxu0 0.0
        %3468 = vmatprep.subr.mxu0 0.0
        %3469 = vmatpush2.msra.mxu0 0.0
        %3470 = vmatprep.subr.mxu0 0.0
        %3471 = vmatpush2.msra.mxu0 0.0
        %3472 = vmatprep.subr.mxu0 0.0
        %3473 = vmatpush2.msra.mxu0 0.0
        %3474 = vmatprep.subr.mxu0 0.0
        %3475 = vmatpush2.msra.mxu0 0.0
        %3476 = vmatprep.subr.mxu0 0.0
        %3477 = vmatpush2.msra.mxu0 0.0
        %3478 = vmatprep.subr.mxu0 0.0
        %3479 = vmatpush2.msra.mxu0 0.0
        %3480 = vmatprep.subr.mxu0 0.0
        %3481 = vmatpush2.msra.mxu0 0.0
        %3482 = vmatprep.subr.mxu0 0.0
        %3483 = vmatpush2.msra.mxu0 0.0
        %3484 = vmatprep.subr.mxu0 0.0
        %3485 = vmatpush2.msra.mxu0 0.0
        %3486 = vmatprep.subr.mxu0 0.0
        %3487 = vmatpush2.msra.mxu0 0.0
        %3488 = vmatprep.subr.mxu0 0.0
        %3489 = vmatpush2.msra.mxu0 0.0
        %3490 = vmatprep.mubr.f32.mxu0 0.0
        %v3491 = vand.u32 %v3243, 4294901760
        %v3492 = vsub.f32 %v3243, %v3491
        %3493 = vmatmul.mubr.f32.gmra.mxu0 %v3492
        %v3494 = vpop.f32.mrf.mxu0
        %v3495 = vadd.f32 %v3413, %v3494
        %v3496 = vpop.f32.mrf.mxu0
        %3497 = vmatprep.mubr.f32.mxu0 0.0
        %v3498 = vand.u32 %v3246, 4294901760
        %v3499 = vsub.f32 %v3246, %v3498
        %3500 = vmatmul.mubr.f32.gmra.mxu0 %v3499
        %v3501 = vpop.f32.mrf.mxu0
        %v3502 = vadd.f32 %v3419, %v3501
        %v3503 = vpop.f32.mrf.mxu0
        %3504 = vdwg.mxu0
        %3505 = vmatprep.subr.mxu0 0.0
        %3506 = vmatpush1.msra.mxu0 0.0
        %3507 = vmatprep.subr.mxu0 0.0
        %3508 = vmatpush1.msra.mxu0 0.0
        %3509 = vmatprep.subr.mxu0 0.0
        %3510 = vmatpush1.msra.mxu0 0.0
        %3511 = vmatprep.subr.mxu0 0.0
        %3512 = vmatpush1.msra.mxu0 0.0
        %3513 = vmatprep.subr.mxu0 0.0
        %3514 = vmatpush1.msra.mxu0 0.0
        %3515 = vmatprep.subr.mxu0 0.0
        %3516 = vmatpush1.msra.mxu0 0.0
        %3517 = vmatprep.subr.mxu0 0.0
        %3518 = vmatpush1.msra.mxu0 0.0
        %3519 = vmatprep.subr.mxu0 0.0
        %3520 = vmatpush1.msra.mxu0 0.0
        %3521 = vmatprep.subr.mxu0 0.0
        %3522 = vmatpush1.msra.mxu0 0.0
        %3523 = vmatprep.subr.mxu0 0.0
        %3524 = vmatpush1.msra.mxu0 0.0
        %3525 = vmatprep.subr.mxu0 0.0
        %3526 = vmatpush1.msra.mxu0 0.0
        %3527 = vmatprep.subr.mxu0 0.0
        %3528 = vmatpush1.msra.mxu0 0.0
        %3529 = vmatprep.subr.mxu0 0.0
        %3530 = vmatpush1.msra.mxu0 0.0
        %3531 = vmatprep.subr.mxu0 0.0
        %3532 = vmatpush1.msra.mxu0 0.0
        %3533 = vmatprep.subr.mxu0 0.0
        %v3534 = vand.u32 %v166, 4294901760
        %3535 = vmatpush1.msra.mxu0 %v3534
        %3536 = vmatprep.subr.mxu0 0.0
        %v3537 = vand.u32 %v165, 4294901760
        %3538 = vmatpush1.msra.mxu0 %v3537
        %3539 = vmatprep.subr.mxu0 0.0
        %3540 = vmatpush2.msra.mxu0 0.0
        %3541 = vmatprep.subr.mxu0 0.0
        %3542 = vmatpush2.msra.mxu0 0.0
        %3543 = vmatprep.subr.mxu0 0.0
        %3544 = vmatpush2.msra.mxu0 0.0
        %3545 = vmatprep.subr.mxu0 0.0
        %3546 = vmatpush2.msra.mxu0 0.0
        %3547 = vmatprep.subr.mxu0 0.0
        %3548 = vmatpush2.msra.mxu0 0.0
        %3549 = vmatprep.subr.mxu0 0.0
        %3550 = vmatpush2.msra.mxu0 0.0
        %3551 = vmatprep.subr.mxu0 0.0
        %3552 = vmatpush2.msra.mxu0 0.0
        %3553 = vmatprep.subr.mxu0 0.0
        %3554 = vmatpush2.msra.mxu0 0.0
        %3555 = vmatprep.subr.mxu0 0.0
        %3556 = vmatpush2.msra.mxu0 0.0
        %3557 = vmatprep.subr.mxu0 0.0
        %3558 = vmatpush2.msra.mxu0 0.0
        %3559 = vmatprep.subr.mxu0 0.0
        %3560 = vmatpush2.msra.mxu0 0.0
        %3561 = vmatprep.subr.mxu0 0.0
        %3562 = vmatpush2.msra.mxu0 0.0
        %3563 = vmatprep.subr.mxu0 0.0
        %3564 = vmatpush2.msra.mxu0 0.0
        %3565 = vmatprep.subr.mxu0 0.0
        %3566 = vmatpush2.msra.mxu0 0.0
        %3567 = vmatprep.subr.mxu0 0.0
        %3568 = vmatpush2.msra.mxu0 0.0
        %3569 = vmatprep.subr.mxu0 0.0
        %3570 = vmatpush2.msra.mxu0 0.0
        %3571 = vmatprep.mubr.f32.mxu0 0.0
        %v3572 = vand.u32 %v3243, 4294901760
        %v3573 = vsub.f32 %v3243, %v3572
        %v3574 = vand.u32 %v3573, 4294901760
        %3575 = vmatmul.mubr.f32.gmra.mxu0 %v3574
        %v3576 = vpop.f32.mrf.mxu0
        %v3577 = vadd.f32 %v3495, %v3576
        %v3578 = vpop.f32.mrf.mxu0
        %3579 = vmatprep.mubr.f32.mxu0 0.0
        %v3580 = vand.u32 %v3246, 4294901760
        %v3581 = vsub.f32 %v3246, %v3580
        %v3582 = vand.u32 %v3581, 4294901760
        %3583 = vmatmul.mubr.f32.gmra.mxu0 %v3582
        %v3584 = vpop.f32.mrf.mxu0
        %v3585 = vadd.f32 %v3502, %v3584
        %v3586 = vpop.f32.mrf.mxu0
        %3587 = vdwg.mxu0
        %3588 = vmatprep.subr.mxu0 0.0
        %3589 = vmatpush1.msra.mxu0 0.0
        %3590 = vmatprep.subr.mxu0 0.0
        %3591 = vmatpush1.msra.mxu0 0.0
        %3592 = vmatprep.subr.mxu0 0.0
        %3593 = vmatpush1.msra.mxu0 0.0
        %3594 = vmatprep.subr.mxu0 0.0
        %3595 = vmatpush1.msra.mxu0 0.0
        %3596 = vmatprep.subr.mxu0 0.0
        %3597 = vmatpush1.msra.mxu0 0.0
        %3598 = vmatprep.subr.mxu0 0.0
        %3599 = vmatpush1.msra.mxu0 0.0
        %3600 = vmatprep.subr.mxu0 0.0
        %3601 = vmatpush1.msra.mxu0 0.0
        %3602 = vmatprep.subr.mxu0 0.0
        %3603 = vmatpush1.msra.mxu0 0.0
        %3604 = vmatprep.subr.mxu0 0.0
        %3605 = vmatpush1.msra.mxu0 0.0
        %3606 = vmatprep.subr.mxu0 0.0
        %3607 = vmatpush1.msra.mxu0 0.0
        %3608 = vmatprep.subr.mxu0 0.0
        %3609 = vmatpush1.msra.mxu0 0.0
        %3610 = vmatprep.subr.mxu0 0.0
        %3611 = vmatpush1.msra.mxu0 0.0
        %3612 = vmatprep.subr.mxu0 0.0
        %3613 = vmatpush1.msra.mxu0 0.0
        %3614 = vmatprep.subr.mxu0 0.0
        %3615 = vmatpush1.msra.mxu0 0.0
        %3616 = vmatprep.subr.mxu0 0.0
        %v3617 = vand.u32 %v166, 4294901760
        %v3618 = vsub.f32 %v166, %v3617
        %v3619 = vand.u32 %v3618, 4294901760
        %3620 = vmatpush1.msra.mxu0 %v3619
        %3621 = vmatprep.subr.mxu0 0.0
        %v3622 = vand.u32 %v165, 4294901760
        %v3623 = vsub.f32 %v165, %v3622
        %v3624 = vand.u32 %v3623, 4294901760
        %3625 = vmatpush1.msra.mxu0 %v3624
        %3626 = vmatprep.subr.mxu0 0.0
        %3627 = vmatpush2.msra.mxu0 0.0
        %3628 = vmatprep.subr.mxu0 0.0
        %3629 = vmatpush2.msra.mxu0 0.0
        %3630 = vmatprep.subr.mxu0 0.0
        %3631 = vmatpush2.msra.mxu0 0.0
        %3632 = vmatprep.subr.mxu0 0.0
        %3633 = vmatpush2.msra.mxu0 0.0
        %3634 = vmatprep.subr.mxu0 0.0
        %3635 = vmatpush2.msra.mxu0 0.0
        %3636 = vmatprep.subr.mxu0 0.0
        %3637 = vmatpush2.msra.mxu0 0.0
        %3638 = vmatprep.subr.mxu0 0.0
        %3639 = vmatpush2.msra.mxu0 0.0
        %3640 = vmatprep.subr.mxu0 0.0
        %3641 = vmatpush2.msra.mxu0 0.0
        %3642 = vmatprep.subr.mxu0 0.0
        %3643 = vmatpush2.msra.mxu0 0.0
        %3644 = vmatprep.subr.mxu0 0.0
        %3645 = vmatpush2.msra.mxu0 0.0
        %3646 = vmatprep.subr.mxu0 0.0
        %3647 = vmatpush2.msra.mxu0 0.0
        %3648 = vmatprep.subr.mxu0 0.0
        %3649 = vmatpush2.msra.mxu0 0.0
        %3650 = vmatprep.subr.mxu0 0.0
        %3651 = vmatpush2.msra.mxu0 0.0
        %3652 = vmatprep.subr.mxu0 0.0
        %3653 = vmatpush2.msra.mxu0 0.0
        %3654 = vmatprep.subr.mxu0 0.0
        %3655 = vmatpush2.msra.mxu0 0.0
        %3656 = vmatprep.subr.mxu0 0.0
        %3657 = vmatpush2.msra.mxu0 0.0
        %3658 = vmatprep.mubr.f32.mxu0 0.0
        %v3659 = vand.u32 %v3243, 4294901760
        %3660 = vmatmul.mubr.f32.gmra.mxu0 %v3659
        %v3661 = vpop.f32.mrf.mxu0
        %v3662 = vadd.f32 %v3577, %v3661
        %v3663 = vpop.f32.mrf.mxu0
        %3664 = vmatprep.mubr.f32.mxu0 0.0
        %v3665 = vand.u32 %v3246, 4294901760
        %3666 = vmatmul.mubr.f32.gmra.mxu0 %v3665
        %v3667 = vpop.f32.mrf.mxu0
        %v3668 = vadd.f32 %v3585, %v3667
        %v3669 = vpop.f32.mrf.mxu0
        %3670 = vdwg.mxu0
        %3671 = vmatprep.subr.mxu0 0.0
        %3672 = vmatpush1.msra.mxu0 0.0
        %3673 = vmatprep.subr.mxu0 0.0
        %3674 = vmatpush1.msra.mxu0 0.0
        %3675 = vmatprep.subr.mxu0 0.0
        %3676 = vmatpush1.msra.mxu0 0.0
        %3677 = vmatprep.subr.mxu0 0.0
        %3678 = vmatpush1.msra.mxu0 0.0
        %3679 = vmatprep.subr.mxu0 0.0
        %3680 = vmatpush1.msra.mxu0 0.0
        %3681 = vmatprep.subr.mxu0 0.0
        %3682 = vmatpush1.msra.mxu0 0.0
        %3683 = vmatprep.subr.mxu0 0.0
        %3684 = vmatpush1.msra.mxu0 0.0
        %3685 = vmatprep.subr.mxu0 0.0
        %3686 = vmatpush1.msra.mxu0 0.0
        %3687 = vmatprep.subr.mxu0 0.0
        %3688 = vmatpush1.msra.mxu0 0.0
        %3689 = vmatprep.subr.mxu0 0.0
        %3690 = vmatpush1.msra.mxu0 0.0
        %3691 = vmatprep.subr.mxu0 0.0
        %3692 = vmatpush1.msra.mxu0 0.0
        %3693 = vmatprep.subr.mxu0 0.0
        %3694 = vmatpush1.msra.mxu0 0.0
        %3695 = vmatprep.subr.mxu0 0.0
        %3696 = vmatpush1.msra.mxu0 0.0
        %3697 = vmatprep.subr.mxu0 0.0
        %3698 = vmatpush1.msra.mxu0 0.0
        %3699 = vmatprep.subr.mxu0 0.0
        %v3700 = vand.u32 %v166, 4294901760
        %3701 = vmatpush1.msra.mxu0 %v3700
        %3702 = vmatprep.subr.mxu0 0.0
        %v3703 = vand.u32 %v165, 4294901760
        %3704 = vmatpush1.msra.mxu0 %v3703
        %3705 = vmatprep.subr.mxu0 0.0
        %3706 = vmatpush2.msra.mxu0 0.0
        %3707 = vmatprep.subr.mxu0 0.0
        %3708 = vmatpush2.msra.mxu0 0.0
        %3709 = vmatprep.subr.mxu0 0.0
        %3710 = vmatpush2.msra.mxu0 0.0
        %3711 = vmatprep.subr.mxu0 0.0
        %3712 = vmatpush2.msra.mxu0 0.0
        %3713 = vmatprep.subr.mxu0 0.0
        %3714 = vmatpush2.msra.mxu0 0.0
        %3715 = vmatprep.subr.mxu0 0.0
        %3716 = vmatpush2.msra.mxu0 0.0
        %3717 = vmatprep.subr.mxu0 0.0
        %3718 = vmatpush2.msra.mxu0 0.0
        %3719 = vmatprep.subr.mxu0 0.0
        %3720 = vmatpush2.msra.mxu0 0.0
        %3721 = vmatprep.subr.mxu0 0.0
        %3722 = vmatpush2.msra.mxu0 0.0
        %3723 = vmatprep.subr.mxu0 0.0
        %3724 = vmatpush2.msra.mxu0 0.0
        %3725 = vmatprep.subr.mxu0 0.0
        %3726 = vmatpush2.msra.mxu0 0.0
        %3727 = vmatprep.subr.mxu0 0.0
        %3728 = vmatpush2.msra.mxu0 0.0
        %3729 = vmatprep.subr.mxu0 0.0
        %3730 = vmatpush2.msra.mxu0 0.0
        %3731 = vmatprep.subr.mxu0 0.0
        %3732 = vmatpush2.msra.mxu0 0.0
        %3733 = vmatprep.subr.mxu0 0.0
        %3734 = vmatpush2.msra.mxu0 0.0
        %3735 = vmatprep.subr.mxu0 0.0
        %3736 = vmatpush2.msra.mxu0 0.0
        %3737 = vmatprep.mubr.f32.mxu0 0.0
        %v3738 = vand.u32 %v3243, 4294901760
        %3739 = vmatmul.mubr.f32.gmra.mxu0 %v3738
        %v3740 = vpop.f32.mrf.mxu0
        %v3741 = vadd.f32 %v3662, %v3740
        %v3742 = vpop.f32.mrf.mxu0
        %3743 = vmatprep.mubr.f32.mxu0 0.0
        %v3744 = vand.u32 %v3246, 4294901760
        %3745 = vmatmul.mubr.f32.gmra.mxu0 %v3744
        %v3746 = vpop.f32.mrf.mxu0
        %v3747 = vadd.f32 %v3668, %v3746
        %v3748 = vpop.f32.mrf.mxu0
        %3749 = vdwg.mxu0
        %3750 = vmatprep.subr.mxu0 0.0
        %3751 = vmatpush1.msra.mxu0 0.0
        %3752 = vmatprep.subr.mxu0 0.0
        %3753 = vmatpush1.msra.mxu0 0.0
        %3754 = vmatprep.subr.mxu0 0.0
        %3755 = vmatpush1.msra.mxu0 0.0
        %3756 = vmatprep.subr.mxu0 0.0
        %3757 = vmatpush1.msra.mxu0 0.0
        %3758 = vmatprep.subr.mxu0 0.0
        %3759 = vmatpush1.msra.mxu0 0.0
        %3760 = vmatprep.subr.mxu0 0.0
        %3761 = vmatpush1.msra.mxu0 0.0
        %3762 = vmatprep.subr.mxu0 0.0
        %3763 = vmatpush1.msra.mxu0 0.0
        %3764 = vmatprep.subr.mxu0 0.0
        %3765 = vmatpush1.msra.mxu0 0.0
        %3766 = vmatprep.subr.mxu0 0.0
        %3767 = vmatpush1.msra.mxu0 0.0
        %3768 = vmatprep.subr.mxu0 0.0
        %3769 = vmatpush1.msra.mxu0 0.0
        %3770 = vmatprep.subr.mxu0 0.0
        %3771 = vmatpush1.msra.mxu0 0.0
        %3772 = vmatprep.subr.mxu0 0.0
        %3773 = vmatpush1.msra.mxu0 0.0
        %3774 = vmatprep.subr.mxu0 0.0
        %3775 = vmatpush1.msra.mxu0 0.0
        %3776 = vmatprep.subr.mxu0 0.0
        %3777 = vmatpush1.msra.mxu0 0.0
        %3778 = vmatprep.subr.mxu0 0.0
        %v3779 = vand.u32 %v3747, 4294901760
        %3780 = vmatpush1.msra.mxu0 %v3779
        %3781 = vmatprep.subr.mxu0 0.0
        %v3782 = vand.u32 %v3741, 4294901760
        %3783 = vmatpush1.msra.mxu0 %v3782
        %3784 = vmatprep.subr.mxu0 0.0
        %3785 = vmatpush2.msra.mxu0 0.0
        %3786 = vmatprep.subr.mxu0 0.0
        %3787 = vmatpush2.msra.mxu0 0.0
        %3788 = vmatprep.subr.mxu0 0.0
        %3789 = vmatpush2.msra.mxu0 0.0
        %3790 = vmatprep.subr.mxu0 0.0
        %3791 = vmatpush2.msra.mxu0 0.0
        %3792 = vmatprep.subr.mxu0 0.0
        %3793 = vmatpush2.msra.mxu0 0.0
        %3794 = vmatprep.subr.mxu0 0.0
        %3795 = vmatpush2.msra.mxu0 0.0
        %3796 = vmatprep.subr.mxu0 0.0
        %3797 = vmatpush2.msra.mxu0 0.0
        %3798 = vmatprep.subr.mxu0 0.0
        %3799 = vmatpush2.msra.mxu0 0.0
        %3800 = vmatprep.subr.mxu0 0.0
        %3801 = vmatpush2.msra.mxu0 0.0
        %3802 = vmatprep.subr.mxu0 0.0
        %3803 = vmatpush2.msra.mxu0 0.0
        %3804 = vmatprep.subr.mxu0 0.0
        %3805 = vmatpush2.msra.mxu0 0.0
        %3806 = vmatprep.subr.mxu0 0.0
        %3807 = vmatpush2.msra.mxu0 0.0
        %3808 = vmatprep.subr.mxu0 0.0
        %3809 = vmatpush2.msra.mxu0 0.0
        %3810 = vmatprep.subr.mxu0 0.0
        %3811 = vmatpush2.msra.mxu0 0.0
        %3812 = vmatprep.subr.mxu0 0.0
        %3813 = vmatpush2.msra.mxu0 0.0
        %3814 = vmatprep.subr.mxu0 0.0
        %3815 = vmatpush2.msra.mxu0 0.0
        %3816 = vmatprep.mubr.f32.mxu0 0.0
        %v3817 = vand.u32 %v698, 4294901760
        %v3818 = vsub.f32 %v698, %v3817
        %v3819 = vand.u32 %v3818, 4294901760
        %v3820 = vsub.f32 %v3818, %v3819
        %v3821 = vand.u32 %v3820, 4294901760
        %3822 = vmatmul.mubr.f32.gmra.mxu0 %v3821
        %v3823 = vpop.f32.mrf.mxu0
        %v3824 = vadd.f32 0.0, %v3823
        %v3825 = vpop.f32.mrf.mxu0
        %3826 = vmatprep.mubr.f32.mxu0 0.0
        %v3827 = vand.u32 %v701, 4294901760
        %v3828 = vsub.f32 %v701, %v3827
        %v3829 = vand.u32 %v3828, 4294901760
        %v3830 = vsub.f32 %v3828, %v3829
        %v3831 = vand.u32 %v3830, 4294901760
        %3832 = vmatmul.mubr.f32.gmra.mxu0 %v3831
        %v3833 = vpop.f32.mrf.mxu0
        %v3834 = vadd.f32 0.0, %v3833
        %v3835 = vpop.f32.mrf.mxu0
        %3836 = vdwg.mxu0
        %3837 = vmatprep.subr.mxu0 0.0
        %3838 = vmatpush1.msra.mxu0 0.0
        %3839 = vmatprep.subr.mxu0 0.0
        %3840 = vmatpush1.msra.mxu0 0.0
        %3841 = vmatprep.subr.mxu0 0.0
        %3842 = vmatpush1.msra.mxu0 0.0
        %3843 = vmatprep.subr.mxu0 0.0
        %3844 = vmatpush1.msra.mxu0 0.0
        %3845 = vmatprep.subr.mxu0 0.0
        %3846 = vmatpush1.msra.mxu0 0.0
        %3847 = vmatprep.subr.mxu0 0.0
        %3848 = vmatpush1.msra.mxu0 0.0
        %3849 = vmatprep.subr.mxu0 0.0
        %3850 = vmatpush1.msra.mxu0 0.0
        %3851 = vmatprep.subr.mxu0 0.0
        %3852 = vmatpush1.msra.mxu0 0.0
        %3853 = vmatprep.subr.mxu0 0.0
        %3854 = vmatpush1.msra.mxu0 0.0
        %3855 = vmatprep.subr.mxu0 0.0
        %3856 = vmatpush1.msra.mxu0 0.0
        %3857 = vmatprep.subr.mxu0 0.0
        %3858 = vmatpush1.msra.mxu0 0.0
        %3859 = vmatprep.subr.mxu0 0.0
        %3860 = vmatpush1.msra.mxu0 0.0
        %3861 = vmatprep.subr.mxu0 0.0
        %3862 = vmatpush1.msra.mxu0 0.0
        %3863 = vmatprep.subr.mxu0 0.0
        %3864 = vmatpush1.msra.mxu0 0.0
        %3865 = vmatprep.subr.mxu0 0.0
        %v3866 = vand.u32 %v3747, 4294901760
        %v3867 = vsub.f32 %v3747, %v3866
        %v3868 = vand.u32 %v3867, 4294901760
        %v3869 = vsub.f32 %v3867, %v3868
        %v3870 = vand.u32 %v3869, 4294901760
        %3871 = vmatpush1.msra.mxu0 %v3870
        %3872 = vmatprep.subr.mxu0 0.0
        %v3873 = vand.u32 %v3741, 4294901760
        %v3874 = vsub.f32 %v3741, %v3873
        %v3875 = vand.u32 %v3874, 4294901760
        %v3876 = vsub.f32 %v3874, %v3875
        %v3877 = vand.u32 %v3876, 4294901760
        %3878 = vmatpush1.msra.mxu0 %v3877
        %3879 = vmatprep.subr.mxu0 0.0
        %3880 = vmatpush2.msra.mxu0 0.0
        %3881 = vmatprep.subr.mxu0 0.0
        %3882 = vmatpush2.msra.mxu0 0.0
        %3883 = vmatprep.subr.mxu0 0.0
        %3884 = vmatpush2.msra.mxu0 0.0
        %3885 = vmatprep.subr.mxu0 0.0
        %3886 = vmatpush2.msra.mxu0 0.0
        %3887 = vmatprep.subr.mxu0 0.0
        %3888 = vmatpush2.msra.mxu0 0.0
        %3889 = vmatprep.subr.mxu0 0.0
        %3890 = vmatpush2.msra.mxu0 0.0
        %3891 = vmatprep.subr.mxu0 0.0
        %3892 = vmatpush2.msra.mxu0 0.0
        %3893 = vmatprep.subr.mxu0 0.0
        %3894 = vmatpush2.msra.mxu0 0.0
        %3895 = vmatprep.subr.mxu0 0.0
        %3896 = vmatpush2.msra.mxu0 0.0
        %3897 = vmatprep.subr.mxu0 0.0
        %3898 = vmatpush2.msra.mxu0 0.0
        %3899 = vmatprep.subr.mxu0 0.0
        %3900 = vmatpush2.msra.mxu0 0.0
        %3901 = vmatprep.subr.mxu0 0.0
        %3902 = vmatpush2.msra.mxu0 0.0
        %3903 = vmatprep.subr.mxu0 0.0
        %3904 = vmatpush2.msra.mxu0 0.0
        %3905 = vmatprep.subr.mxu0 0.0
        %3906 = vmatpush2.msra.mxu0 0.0
        %3907 = vmatprep.subr.mxu0 0.0
        %3908 = vmatpush2.msra.mxu0 0.0
        %3909 = vmatprep.subr.mxu0 0.0
        %3910 = vmatpush2.msra.mxu0 0.0
        %3911 = vmatprep.mubr.f32.mxu0 0.0
        %v3912 = vand.u32 %v698, 4294901760
        %3913 = vmatmul.mubr.f32.gmra.mxu0 %v3912
        %v3914 = vpop.f32.mrf.mxu0
        %v3915 = vadd.f32 %v3824, %v3914
        %v3916 = vpop.f32.mrf.mxu0
        %3917 = vmatprep.mubr.f32.mxu0 0.0
        %v3918 = vand.u32 %v701, 4294901760
        %3919 = vmatmul.mubr.f32.gmra.mxu0 %v3918
        %v3920 = vpop.f32.mrf.mxu0
        %v3921 = vadd.f32 %v3834, %v3920
        %v3922 = vpop.f32.mrf.mxu0
        %3923 = vdwg.mxu0
        %3924 = vmatprep.subr.mxu0 0.0
        %3925 = vmatpush1.msra.mxu0 0.0
        %3926 = vmatprep.subr.mxu0 0.0
        %3927 = vmatpush1.msra.mxu0 0.0
        %3928 = vmatprep.subr.mxu0 0.0
        %3929 = vmatpush1.msra.mxu0 0.0
        %3930 = vmatprep.subr.mxu0 0.0
        %3931 = vmatpush1.msra.mxu0 0.0
        %3932 = vmatprep.subr.mxu0 0.0
        %3933 = vmatpush1.msra.mxu0 0.0
        %3934 = vmatprep.subr.mxu0 0.0
        %3935 = vmatpush1.msra.mxu0 0.0
        %3936 = vmatprep.subr.mxu0 0.0
        %3937 = vmatpush1.msra.mxu0 0.0
        %3938 = vmatprep.subr.mxu0 0.0
        %3939 = vmatpush1.msra.mxu0 0.0
        %3940 = vmatprep.subr.mxu0 0.0
        %3941 = vmatpush1.msra.mxu0 0.0
        %3942 = vmatprep.subr.mxu0 0.0
        %3943 = vmatpush1.msra.mxu0 0.0
        %3944 = vmatprep.subr.mxu0 0.0
        %3945 = vmatpush1.msra.mxu0 0.0
        %3946 = vmatprep.subr.mxu0 0.0
        %3947 = vmatpush1.msra.mxu0 0.0
        %3948 = vmatprep.subr.mxu0 0.0
        %3949 = vmatpush1.msra.mxu0 0.0
        %3950 = vmatprep.subr.mxu0 0.0
        %3951 = vmatpush1.msra.mxu0 0.0
        %3952 = vmatprep.subr.mxu0 0.0
        %v3953 = vand.u32 %v3747, 4294901760
        %v3954 = vsub.f32 %v3747, %v3953
        %3955 = vmatpush1.msra.mxu0 %v3954
        %3956 = vmatprep.subr.mxu0 0.0
        %v3957 = vand.u32 %v3741, 4294901760
        %v3958 = vsub.f32 %v3741, %v3957
        %3959 = vmatpush1.msra.mxu0 %v3958
        %3960 = vmatprep.subr.mxu0 0.0
        %3961 = vmatpush2.msra.mxu0 0.0
        %3962 = vmatprep.subr.mxu0 0.0
        %3963 = vmatpush2.msra.mxu0 0.0
        %3964 = vmatprep.subr.mxu0 0.0
        %3965 = vmatpush2.msra.mxu0 0.0
        %3966 = vmatprep.subr.mxu0 0.0
        %3967 = vmatpush2.msra.mxu0 0.0
        %3968 = vmatprep.subr.mxu0 0.0
        %3969 = vmatpush2.msra.mxu0 0.0
        %3970 = vmatprep.subr.mxu0 0.0
        %3971 = vmatpush2.msra.mxu0 0.0
        %3972 = vmatprep.subr.mxu0 0.0
        %3973 = vmatpush2.msra.mxu0 0.0
        %3974 = vmatprep.subr.mxu0 0.0
        %3975 = vmatpush2.msra.mxu0 0.0
        %3976 = vmatprep.subr.mxu0 0.0
        %3977 = vmatpush2.msra.mxu0 0.0
        %3978 = vmatprep.subr.mxu0 0.0
        %3979 = vmatpush2.msra.mxu0 0.0
        %3980 = vmatprep.subr.mxu0 0.0
        %3981 = vmatpush2.msra.mxu0 0.0
        %3982 = vmatprep.subr.mxu0 0.0
        %3983 = vmatpush2.msra.mxu0 0.0
        %3984 = vmatprep.subr.mxu0 0.0
        %3985 = vmatpush2.msra.mxu0 0.0
        %3986 = vmatprep.subr.mxu0 0.0
        %3987 = vmatpush2.msra.mxu0 0.0
        %3988 = vmatprep.subr.mxu0 0.0
        %3989 = vmatpush2.msra.mxu0 0.0
        %3990 = vmatprep.subr.mxu0 0.0
        %3991 = vmatpush2.msra.mxu0 0.0
        %3992 = vmatprep.mubr.f32.mxu0 0.0
        %v3993 = vand.u32 %v698, 4294901760
        %v3994 = vsub.f32 %v698, %v3993
        %3995 = vmatmul.mubr.f32.gmra.mxu0 %v3994
        %v3996 = vpop.f32.mrf.mxu0
        %v3997 = vadd.f32 %v3915, %v3996
        %v3998 = vpop.f32.mrf.mxu0
        %3999 = vmatprep.mubr.f32.mxu0 0.0
        %v4000 = vand.u32 %v701, 4294901760
        %v4001 = vsub.f32 %v701, %v4000
        %4002 = vmatmul.mubr.f32.gmra.mxu0 %v4001
        %v4003 = vpop.f32.mrf.mxu0
        %v4004 = vadd.f32 %v3921, %v4003
        %v4005 = vpop.f32.mrf.mxu0
        %4006 = vdwg.mxu0
        %4007 = vmatprep.subr.mxu0 0.0
        %4008 = vmatpush1.msra.mxu0 0.0
        %4009 = vmatprep.subr.mxu0 0.0
        %4010 = vmatpush1.msra.mxu0 0.0
        %4011 = vmatprep.subr.mxu0 0.0
        %4012 = vmatpush1.msra.mxu0 0.0
        %4013 = vmatprep.subr.mxu0 0.0
        %4014 = vmatpush1.msra.mxu0 0.0
        %4015 = vmatprep.subr.mxu0 0.0
        %4016 = vmatpush1.msra.mxu0 0.0
        %4017 = vmatprep.subr.mxu0 0.0
        %4018 = vmatpush1.msra.mxu0 0.0
        %4019 = vmatprep.subr.mxu0 0.0
        %4020 = vmatpush1.msra.mxu0 0.0
        %4021 = vmatprep.subr.mxu0 0.0
        %4022 = vmatpush1.msra.mxu0 0.0
        %4023 = vmatprep.subr.mxu0 0.0
        %4024 = vmatpush1.msra.mxu0 0.0
        %4025 = vmatprep.subr.mxu0 0.0
        %4026 = vmatpush1.msra.mxu0 0.0
        %4027 = vmatprep.subr.mxu0 0.0
        %4028 = vmatpush1.msra.mxu0 0.0
        %4029 = vmatprep.subr.mxu0 0.0
        %4030 = vmatpush1.msra.mxu0 0.0
        %4031 = vmatprep.subr.mxu0 0.0
        %4032 = vmatpush1.msra.mxu0 0.0
        %4033 = vmatprep.subr.mxu0 0.0
        %4034 = vmatpush1.msra.mxu0 0.0
        %4035 = vmatprep.subr.mxu0 0.0
        %v4036 = vand.u32 %v3747, 4294901760
        %4037 = vmatpush1.msra.mxu0 %v4036
        %4038 = vmatprep.subr.mxu0 0.0
        %v4039 = vand.u32 %v3741, 4294901760
        %4040 = vmatpush1.msra.mxu0 %v4039
        %4041 = vmatprep.subr.mxu0 0.0
        %4042 = vmatpush2.msra.mxu0 0.0
        %4043 = vmatprep.subr.mxu0 0.0
        %4044 = vmatpush2.msra.mxu0 0.0
        %4045 = vmatprep.subr.mxu0 0.0
        %4046 = vmatpush2.msra.mxu0 0.0
        %4047 = vmatprep.subr.mxu0 0.0
        %4048 = vmatpush2.msra.mxu0 0.0
        %4049 = vmatprep.subr.mxu0 0.0
        %4050 = vmatpush2.msra.mxu0 0.0
        %4051 = vmatprep.subr.mxu0 0.0
        %4052 = vmatpush2.msra.mxu0 0.0
        %4053 = vmatprep.subr.mxu0 0.0
        %4054 = vmatpush2.msra.mxu0 0.0
        %4055 = vmatprep.subr.mxu0 0.0
        %4056 = vmatpush2.msra.mxu0 0.0
        %4057 = vmatprep.subr.mxu0 0.0
        %4058 = vmatpush2.msra.mxu0 0.0
        %4059 = vmatprep.subr.mxu0 0.0
        %4060 = vmatpush2.msra.mxu0 0.0
        %4061 = vmatprep.subr.mxu0 0.0
        %4062 = vmatpush2.msra.mxu0 0.0
        %4063 = vmatprep.subr.mxu0 0.0
        %4064 = vmatpush2.msra.mxu0 0.0
        %4065 = vmatprep.subr.mxu0 0.0
        %4066 = vmatpush2.msra.mxu0 0.0
        %4067 = vmatprep.subr.mxu0 0.0
        %4068 = vmatpush2.msra.mxu0 0.0
        %4069 = vmatprep.subr.mxu0 0.0
        %4070 = vmatpush2.msra.mxu0 0.0
        %4071 = vmatprep.subr.mxu0 0.0
        %4072 = vmatpush2.msra.mxu0 0.0
        %4073 = vmatprep.mubr.f32.mxu0 0.0
        %v4074 = vand.u32 %v698, 4294901760
        %v4075 = vsub.f32 %v698, %v4074
        %v4076 = vand.u32 %v4075, 4294901760
        %4077 = vmatmul.mubr.f32.gmra.mxu0 %v4076
        %v4078 = vpop.f32.mrf.mxu0
        %v4079 = vadd.f32 %v3997, %v4078
        %v4080 = vpop.f32.mrf.mxu0
        %4081 = vmatprep.mubr.f32.mxu0 0.0
        %v4082 = vand.u32 %v701, 4294901760
        %v4083 = vsub.f32 %v701, %v4082
        %v4084 = vand.u32 %v4083, 4294901760
        %4085 = vmatmul.mubr.f32.gmra.mxu0 %v4084
        %v4086 = vpop.f32.mrf.mxu0
        %v4087 = vadd.f32 %v4004, %v4086
        %v4088 = vpop.f32.mrf.mxu0
        %4089 = vdwg.mxu0
        %4090 = vmatprep.subr.mxu0 0.0
        %4091 = vmatpush1.msra.mxu0 0.0
        %4092 = vmatprep.subr.mxu0 0.0
        %4093 = vmatpush1.msra.mxu0 0.0
        %4094 = vmatprep.subr.mxu0 0.0
        %4095 = vmatpush1.msra.mxu0 0.0
        %4096 = vmatprep.subr.mxu0 0.0
        %4097 = vmatpush1.msra.mxu0 0.0
        %4098 = vmatprep.subr.mxu0 0.0
        %4099 = vmatpush1.msra.mxu0 0.0
        %4100 = vmatprep.subr.mxu0 0.0
        %4101 = vmatpush1.msra.mxu0 0.0
        %4102 = vmatprep.subr.mxu0 0.0
        %4103 = vmatpush1.msra.mxu0 0.0
        %4104 = vmatprep.subr.mxu0 0.0
        %4105 = vmatpush1.msra.mxu0 0.0
        %4106 = vmatprep.subr.mxu0 0.0
        %4107 = vmatpush1.msra.mxu0 0.0
        %4108 = vmatprep.subr.mxu0 0.0
        %4109 = vmatpush1.msra.mxu0 0.0
        %4110 = vmatprep.subr.mxu0 0.0
        %4111 = vmatpush1.msra.mxu0 0.0
        %4112 = vmatprep.subr.mxu0 0.0
        %4113 = vmatpush1.msra.mxu0 0.0
        %4114 = vmatprep.subr.mxu0 0.0
        %4115 = vmatpush1.msra.mxu0 0.0
        %4116 = vmatprep.subr.mxu0 0.0
        %4117 = vmatpush1.msra.mxu0 0.0
        %4118 = vmatprep.subr.mxu0 0.0
        %v4119 = vand.u32 %v3747, 4294901760
        %v4120 = vsub.f32 %v3747, %v4119
        %v4121 = vand.u32 %v4120, 4294901760
        %4122 = vmatpush1.msra.mxu0 %v4121
        %4123 = vmatprep.subr.mxu0 0.0
        %v4124 = vand.u32 %v3741, 4294901760
        %v4125 = vsub.f32 %v3741, %v4124
        %v4126 = vand.u32 %v4125, 4294901760
        %4127 = vmatpush1.msra.mxu0 %v4126
        %4128 = vmatprep.subr.mxu0 0.0
        %4129 = vmatpush2.msra.mxu0 0.0
        %4130 = vmatprep.subr.mxu0 0.0
        %4131 = vmatpush2.msra.mxu0 0.0
        %4132 = vmatprep.subr.mxu0 0.0
        %4133 = vmatpush2.msra.mxu0 0.0
        %4134 = vmatprep.subr.mxu0 0.0
        %4135 = vmatpush2.msra.mxu0 0.0
        %4136 = vmatprep.subr.mxu0 0.0
        %4137 = vmatpush2.msra.mxu0 0.0
        %4138 = vmatprep.subr.mxu0 0.0
        %4139 = vmatpush2.msra.mxu0 0.0
        %4140 = vmatprep.subr.mxu0 0.0
        %4141 = vmatpush2.msra.mxu0 0.0
        %4142 = vmatprep.subr.mxu0 0.0
        %4143 = vmatpush2.msra.mxu0 0.0
        %4144 = vmatprep.subr.mxu0 0.0
        %4145 = vmatpush2.msra.mxu0 0.0
        %4146 = vmatprep.subr.mxu0 0.0
        %4147 = vmatpush2.msra.mxu0 0.0
        %4148 = vmatprep.subr.mxu0 0.0
        %4149 = vmatpush2.msra.mxu0 0.0
        %4150 = vmatprep.subr.mxu0 0.0
        %4151 = vmatpush2.msra.mxu0 0.0
        %4152 = vmatprep.subr.mxu0 0.0
        %4153 = vmatpush2.msra.mxu0 0.0
        %4154 = vmatprep.subr.mxu0 0.0
        %4155 = vmatpush2.msra.mxu0 0.0
        %4156 = vmatprep.subr.mxu0 0.0
        %4157 = vmatpush2.msra.mxu0 0.0
        %4158 = vmatprep.subr.mxu0 0.0
        %4159 = vmatpush2.msra.mxu0 0.0
        %4160 = vmatprep.mubr.f32.mxu0 0.0
        %v4161 = vand.u32 %v698, 4294901760
        %4162 = vmatmul.mubr.f32.gmra.mxu0 %v4161
        %v4163 = vpop.f32.mrf.mxu0
        %v4164 = vadd.f32 %v4079, %v4163
        %v4165 = vpop.f32.mrf.mxu0
        %4166 = vmatprep.mubr.f32.mxu0 0.0
        %v4167 = vand.u32 %v701, 4294901760
        %4168 = vmatmul.mubr.f32.gmra.mxu0 %v4167
        %v4169 = vpop.f32.mrf.mxu0
        %v4170 = vadd.f32 %v4087, %v4169
        %v4171 = vpop.f32.mrf.mxu0
        %4172 = vdwg.mxu0
        %4173 = vmatprep.subr.mxu0 0.0
        %4174 = vmatpush1.msra.mxu0 0.0
        %4175 = vmatprep.subr.mxu0 0.0
        %4176 = vmatpush1.msra.mxu0 0.0
        %4177 = vmatprep.subr.mxu0 0.0
        %4178 = vmatpush1.msra.mxu0 0.0
        %4179 = vmatprep.subr.mxu0 0.0
        %4180 = vmatpush1.msra.mxu0 0.0
        %4181 = vmatprep.subr.mxu0 0.0
        %4182 = vmatpush1.msra.mxu0 0.0
        %4183 = vmatprep.subr.mxu0 0.0
        %4184 = vmatpush1.msra.mxu0 0.0
        %4185 = vmatprep.subr.mxu0 0.0
        %4186 = vmatpush1.msra.mxu0 0.0
        %4187 = vmatprep.subr.mxu0 0.0
        %4188 = vmatpush1.msra.mxu0 0.0
        %4189 = vmatprep.subr.mxu0 0.0
        %4190 = vmatpush1.msra.mxu0 0.0
        %4191 = vmatprep.subr.mxu0 0.0
        %4192 = vmatpush1.msra.mxu0 0.0
        %4193 = vmatprep.subr.mxu0 0.0
        %4194 = vmatpush1.msra.mxu0 0.0
        %4195 = vmatprep.subr.mxu0 0.0
        %4196 = vmatpush1.msra.mxu0 0.0
        %4197 = vmatprep.subr.mxu0 0.0
        %4198 = vmatpush1.msra.mxu0 0.0
        %4199 = vmatprep.subr.mxu0 0.0
        %4200 = vmatpush1.msra.mxu0 0.0
        %4201 = vmatprep.subr.mxu0 0.0
        %v4202 = vand.u32 %v3747, 4294901760
        %4203 = vmatpush1.msra.mxu0 %v4202
        %4204 = vmatprep.subr.mxu0 0.0
        %v4205 = vand.u32 %v3741, 4294901760
        %4206 = vmatpush1.msra.mxu0 %v4205
        %4207 = vmatprep.subr.mxu0 0.0
        %4208 = vmatpush2.msra.mxu0 0.0
        %4209 = vmatprep.subr.mxu0 0.0
        %4210 = vmatpush2.msra.mxu0 0.0
        %4211 = vmatprep.subr.mxu0 0.0
        %4212 = vmatpush2.msra.mxu0 0.0
        %4213 = vmatprep.subr.mxu0 0.0
        %4214 = vmatpush2.msra.mxu0 0.0
        %4215 = vmatprep.subr.mxu0 0.0
        %4216 = vmatpush2.msra.mxu0 0.0
        %4217 = vmatprep.subr.mxu0 0.0
        %4218 = vmatpush2.msra.mxu0 0.0
        %4219 = vmatprep.subr.mxu0 0.0
        %4220 = vmatpush2.msra.mxu0 0.0
        %4221 = vmatprep.subr.mxu0 0.0
        %4222 = vmatpush2.msra.mxu0 0.0
        %4223 = vmatprep.subr.mxu0 0.0
        %4224 = vmatpush2.msra.mxu0 0.0
        %4225 = vmatprep.subr.mxu0 0.0
        %4226 = vmatpush2.msra.mxu0 0.0
        %4227 = vmatprep.subr.mxu0 0.0
        %4228 = vmatpush2.msra.mxu0 0.0
        %4229 = vmatprep.subr.mxu0 0.0
        %4230 = vmatpush2.msra.mxu0 0.0
        %4231 = vmatprep.subr.mxu0 0.0
        %4232 = vmatpush2.msra.mxu0 0.0
        %4233 = vmatprep.subr.mxu0 0.0
        %4234 = vmatpush2.msra.mxu0 0.0
        %4235 = vmatprep.subr.mxu0 0.0
        %4236 = vmatpush2.msra.mxu0 0.0
        %4237 = vmatprep.subr.mxu0 0.0
        %4238 = vmatpush2.msra.mxu0 0.0
        %4239 = vmatprep.mubr.f32.mxu0 0.0
        %v4240 = vand.u32 %v698, 4294901760
        %4241 = vmatmul.mubr.f32.gmra.mxu0 %v4240
        %v4242 = vpop.f32.mrf.mxu0
        %v4243 = vadd.f32 %v4164, %v4242
        %v4244 = vpop.f32.mrf.mxu0
        %4245 = vmatprep.mubr.f32.mxu0 0.0
        %v4246 = vand.u32 %v701, 4294901760
        %4247 = vmatmul.mubr.f32.gmra.mxu0 %v4246
        %v4248 = vpop.f32.mrf.mxu0
        %v4249 = vadd.f32 %v4170, %v4248
        %v4250 = vpop.f32.mrf.mxu0
        %4251 = vdwg.mxu0
        %s4252 = scalar_lea.vmem %s139, 48 [#allocation7]
        %4253 = vst.msk [vmem:[%s4252] sm:$0xff] %vm188, %v4243
        %4254 = vst.msk [vmem:[%s4252 + $0x8] sm:$0xff] %vm188, %v4249
        %s4255 = sand.u32 %s57, 1
        %s4256 = scalar_lea.sflag [#allocation6], %s4255
        %s4257 = sand.u32 %s57, 1
        %s4258 = smul.addr %s4257, 64
        %s4259 = scalar_lea.vmem [#allocation7], %s4258
        // Predicated region
        $region29: #{tpu_custom_call.1} parent=23 // pred_check
          %p4260 = pneg %p67
        $region30: #{tpu_custom_call.1} parent=23 // pred_check_branch
          %4262 = sbr.rel (%p4260) target = $region32
        $region31: #{tpu_custom_call.1} parent=23 // pred_region
          %s4264 = ssub.s32 1024, 1024
          %4265 = vsyncadd %s4256, %s4264
          %s4266 = smul.addr %s23, 8
          %s4267 = smul.addr %s4266, 128
          %s4268 = scalar_lea.hbm %s2, %s4267
          %s4269 = sshll.u32 %s4259, 4
          %s4270 = int_to_ptr.vmem [resolvable:$true] %s4269
          %4275 = dma.vmem_to_hbm [thread:$0]  %s4270, 1024, %s4268, %s4256, 128, 128, 8
        $region32: #{tpu_custom_call.1} parent=23 // pred_fallthru
          _
      $region24: #{tpu_custom_call.1} parent=5 // pred_fallthru
        _
      %p4276 = scmp.le.s32.totalorder 2, %s18
      // Predicated region
      $region33: #{tpu_custom_call.1} parent=5 // pred_check
        %p4277 = pneg %p4276
      $region34: #{tpu_custom_call.1} parent=5 // pred_check_branch
        %4279 = sbr.rel (%p4277) target = $region36
      $region35: #{tpu_custom_call.1} parent=5 // pred_region
        %s4280 = ssub.s32 %s18, 2
        // Predicated region
        $region37: #{tpu_custom_call.1} parent=35 // pred_check
          %p4281 = pneg %p73
        $region38: #{tpu_custom_call.1} parent=35 // pred_check_branch
          %4283 = sbr.rel (%p4281) target = $region40
        $region39: #{tpu_custom_call.1} parent=35 // pred_region
          %s4284 = sand.u32 %s58, 1
          %s4285 = scalar_lea.sflag [#allocation6], %s4284
          %s4286 = sand.u32 %s58, 1
          %s4287 = smul.addr %s4286, 64
          %s4288 = scalar_lea.vmem [#allocation7], %s4287
          %4289 = dma.done %s4285, 1024
        $region40: #{tpu_custom_call.1} parent=35 // pred_fallthru
          _
      $region36: #{tpu_custom_call.1} parent=5 // pred_fallthru
        _
    $region6: #{tpu_custom_call.1} parent=1 // loop_footer
      %s22 = sadd.s32 1, %s18
    $region7: #{tpu_custom_call.1} parent=1 // loop_footer_branch
      %17 = sbr.rel target = $region3
    $region8: #{tpu_custom_call.1} parent=1 // loop_exit
      _
    %4290 = vsyncpa [#allocation5], 1
    %s4291 = scalar_lea.sflag [#allocation5], 1
    %4292 = vsyncpa %s4291, 1
    %4293 = vsyncpa [#allocation6], 1
    %s4294 = scalar_lea.sflag [#allocation6], 1
    %4295 = vsyncpa %s4294, 1

</llo_original>
